<compile_context>
chip_gen: v6e
topology: v6e:2x2x1
jax: 0.10.0
libtpu: 0.0.40
codegen_flags: <defaults>
</compile_context>

<pallas_src>
import numpy as np
import jax
import jax.numpy as jnp
from jax.experimental import pallas as pl
from jax.experimental.pallas import tpu as pltpu

SEQ, BATCH, IN, HID, OUT = 8, 8, 16, 32, 8


def _make_hybrid_kernel(T, B, D_IN, H, D_OUT, last_output):
    """Single-invocation kernel: whole forward pass, everything in VMEM."""

    def kernel(x_ref,        # (T*B, D_IN)       inputs, time-major rows
               wih_ref,      # (D_IN, 4H)        W_ih^T  (pre-transposed)
               whh_ref,      # (4, H, H)         per-gate W_hh^T (pre-transposed)
               bsum_ref,     # (1, 4H)           b_ih + b_hh
               wflow_ref,    # (H, H)            W_flow^T
               bflow_ref,    # (1, H)            b_flow
               wout_ref,     # (H, D_OUT)        W_out^T
               bout_ref,     # (1, D_OUT)        b_out
               o_ref):       # (B, D_OUT) or (T*B, D_OUT)

        # ---- pre-phase (off the serial critical path) -----------------------
        # One lane-dense (T*B, D_IN) x (D_IN, 4H) matmul for every timestep's
        # input projection, biases folded in.
        gx_all = (jnp.dot(x_ref[...], wih_ref[...],
                          preferred_element_type=jnp.float32)
                  + bsum_ref[...])                               # (T*B, 4H)
        # One-time split into per-gate slabs (3 lane relayouts, outside loop).
        gx = [gx_all[:, g * H:(g + 1) * H] for g in range(4)]    # 4 x (T*B, H)

        # Hoisted weight / bias loads & broadcasts (no re-emission per step).
        whh = whh_ref[...]                                       # (4, H, H)
        w_i, w_f, w_g, w_o = whh[0], whh[1], whh[2], whh[3]
        wflow = wflow_ref[...]                                   # (H, H)
        bflow = jnp.broadcast_to(bflow_ref[...], (B, H))         # (B, H)
        wout = wout_ref[...]                                     # (H, D_OUT)
        bout = bout_ref[...]                                     # (1, D_OUT)

        # h = c = zeros  (== _init_latent)
        h = jnp.zeros((B, H), jnp.float32)
        c = jnp.zeros((B, H), jnp.float32)

        # T is tiny and static: a fully unrolled loop (equivalent to
        # lax.fori_loop(..., unroll=True)) -- single kernel invocation, no
        # per-step grid/pipeline overhead, LLO sees the whole chain.
        for t in range(T):
            r = slice(t * B, (t + 1) * B)   # sublane-aligned row slice (B==8)
            # LSTMCell gates: per-gate dot avoids 32-lane slices on the chain.
            gi = jax.nn.sigmoid(gx[0][r, :] + jnp.dot(
                h, w_i, preferred_element_type=jnp.float32))
            gf = jax.nn.sigmoid(gx[1][r, :] + jnp.dot(
                h, w_f, preferred_element_type=jnp.float32))
            gg = jnp.tanh(gx[2][r, :] + jnp.dot(
                h, w_g, preferred_element_type=jnp.float32))
            go = jax.nn.sigmoid(gx[3][r, :] + jnp.dot(
                h, w_o, preferred_element_type=jnp.float32))
            c = gf * c + gi * gg
            h = go * jnp.tanh(c)
            # flow(h) = tanh(Linear(h)); carried as the new hidden state.
            h = jnp.tanh(jnp.dot(h, wflow,
                                 preferred_element_type=jnp.float32) + bflow)
            if not last_output:
                # Fused out(.) applied per step; Y itself never hits HBM.
                o_ref[r, :] = (jnp.dot(h, wout,
                                       preferred_element_type=jnp.float32)
                               + bout).astype(o_ref.dtype)

        if last_output:
            # Only the final timestep's projection is ever computed/written.
            o_ref[...] = (jnp.dot(h, wout,
                                  preferred_element_type=jnp.float32)
                          + bout).astype(o_ref.dtype)

    return kernel


def hybrid_neural_de(x, params, last_output=True):
    """x: (seq, batch, input_size) float32.  Forward pass of HybridNeuralDE."""
    wih, whh, bih, bhh, wflow, bflow, wout, bout = params
    T, B, D_IN = x.shape

    # Wrapper-side re-layout (free in XLA; keeps all transposes out of the
    # kernel and makes the gate axis a leading axis for W_hh).
    wih_t = wih.T                                            # (D_IN, 4H)
    whh_g = whh.reshape(4, HID, HID).transpose(0, 2, 1)      # (4, H, H), W_g^T
    bsum = bih + bhh                                         # (1, 4H)
    wflow_t = wflow.T                                        # (H, H)
    wout_t = wout.T                                          # (H, OUT)
    x2 = x.reshape(T * B, D_IN)                              # time-major rows

    out_rows = B if last_output else T * B
    kernel = _make_hybrid_kernel(T, B, D_IN, HID, OUT, last_output)

    # No grid, no BlockSpecs: every operand (< 100 KiB total) is placed whole
    # in VMEM for a single kernel invocation -- no pipelining, no
    # double-buffering of invariant weights, one output writeback.
    out = pl.pallas_call(
        kernel,
        out_shape=jax.ShapeDtypeStruct((out_rows, OUT), x.dtype),
    )(x2, wih_t, whh_g, bsum, wflow_t, bflow, wout_t, bout)

    # TODO(synk): reverse=True branch in the reference code references an
    # undefined variable (`x_t.flip(0)` before the loop); only reverse=False
    # is implemented here.
    return out if last_output else out.reshape(T, B, OUT)


def init_params(key):
    ks = jax.random.split(key, 8)
    s = 1.0 / np.sqrt(HID)   # PyTorch default init scale for LSTMCell/Linear(H,.)
    wih = jax.random.uniform(ks[0], (4 * HID, IN), jnp.float32, -s, s)
    whh = jax.random.uniform(ks[1], (4 * HID, HID), jnp.float32, -s, s)
    bih = jax.random.uniform(ks[2], (1, 4 * HID), jnp.float32, -s, s)
    bhh = jax.random.uniform(ks[3], (1, 4 * HID), jnp.float32, -s, s)
    wflow = jax.random.uniform(ks[4], (HID, HID), jnp.float32, -s, s)
    bflow = jax.random.uniform(ks[5], (1, HID), jnp.float32, -s, s)
    wout = jax.random.uniform(ks[6], (OUT, HID), jnp.float32, -s, s)
    bout = jax.random.uniform(ks[7], (1, OUT), jnp.float32, -s, s)
    return (wih, whh, bih, bhh, wflow, bflow, wout, bout)


def reference(x, params, last_output=True):
    """Pure-JAX reference mirroring HybridNeuralDE.forward."""
    wih, whh, bih, bhh, wflow, bflow, wout, bout = params
    B = x.shape[1]
    h = jnp.zeros((B, HID), jnp.float32)
    c = jnp.zeros((B, HID), jnp.float32)
    Ys = []
    for t in range(x.shape[0]):
        gates = x[t] @ wih.T + h @ whh.T + bih[0] + bhh[0]
        i, f, g, o = jnp.split(gates, 4, axis=-1)
        i, f, o = jax.nn.sigmoid(i), jax.nn.sigmoid(f), jax.nn.sigmoid(o)
        g = jnp.tanh(g)
        c = f * c + i * g
        h = o * jnp.tanh(c)
        h = jnp.tanh(h @ wflow.T + bflow[0])
        Ys.append(h)
    Y = jnp.stack(Ys)
    out = Y @ wout.T + bout[0]
    return out[-1] if last_output else out


if __name__ == "__main__":
    key = jax.random.PRNGKey(0)
    kx, kp = jax.random.split(key)
    x = jax.random.normal(kx, (SEQ, BATCH, IN), jnp.float32)
    params = init_params(kp)

    # last_output=True (module default)
    y_last = jax.block_until_ready(hybrid_neural_de(x, params, last_output=True))
    y_last_ref = jax.block_until_ready(reference(x, params, last_output=True))
    assert y_last.shape == (BATCH, OUT), y_last.shape
    np.testing.assert_allclose(np.asarray(y_last), np.asarray(y_last_ref),
                               rtol=1e-5, atol=2e-5)

    # last_output=False (full trajectory output)
    y_all = jax.block_until_ready(hybrid_neural_de(x, params, last_output=False))
    y_all_ref = jax.block_until_ready(reference(x, params, last_output=False))
    assert y_all.shape == (SEQ, BATCH, OUT), y_all.shape
    np.testing.assert_allclose(np.asarray(y_all), np.asarray(y_all_ref),
                               rtol=1e-5, atol=2e-5)

    print("KERNEL_OK")
</pallas_src>

<mosaic_0001>
module attributes {stable_mosaic.version = 11 : i64} {
  func.func @kernel(%arg0: memref<64x16xf32, #tpu.memory_space<vmem>>, %arg1: memref<16x128xf32, #tpu.memory_space<vmem>>, %arg2: memref<4x32x32xf32, #tpu.memory_space<vmem>>, %arg3: memref<1x128xf32, #tpu.memory_space<vmem>>, %arg4: memref<32x32xf32, #tpu.memory_space<vmem>>, %arg5: memref<1x32xf32, #tpu.memory_space<vmem>>, %arg6: memref<32x8xf32, #tpu.memory_space<vmem>>, %arg7: memref<1x8xf32, #tpu.memory_space<vmem>>, %arg8: memref<8x8xf32, #tpu.memory_space<vmem>>) attributes {dimension_semantics = [], scalar_prefetch = 0 : i64, scratch_operands = 0 : i64, tpu.core_type = #tpu.core_type<tc>} {
    %c0 = arith.constant 0 : index
    %c0_0 = arith.constant 0 : index
    %0 = vector.load %arg0[%c0, %c0_0] : memref<64x16xf32, #tpu.memory_space<vmem>>, vector<64x16xf32>
    %c0_1 = arith.constant 0 : index
    %c0_2 = arith.constant 0 : index
    %1 = vector.load %arg1[%c0_1, %c0_2] : memref<16x128xf32, #tpu.memory_space<vmem>>, vector<16x128xf32>
    %cst = arith.constant dense<0.000000e+00> : vector<64x128xf32>
    %2 = tpu.matmul %0, %1, %cst {dimension_numbers = #tpu.dot_dimension_numbers<[1], [0], [0], [1], [0, 0, 1, 1], [], []>} : vector<64x16xf32>, vector<16x128xf32>, vector<64x128xf32> -> vector<64x128xf32>
    %c0_3 = arith.constant 0 : index
    %c0_4 = arith.constant 0 : index
    %3 = vector.load %arg3[%c0_3, %c0_4] : memref<1x128xf32, #tpu.memory_space<vmem>>, vector<1x128xf32>
    %4 = vector.broadcast %3 : vector<1x128xf32> to vector<64x128xf32>
    %5 = arith.addf %2, %4 : vector<64x128xf32>
    %6 = vector.extract_strided_slice %5 {offsets = [0, 0], sizes = [64, 32], strides = [1, 1]} : vector<64x128xf32> to vector<64x32xf32>
    %7 = vector.extract_strided_slice %5 {offsets = [0, 32], sizes = [64, 32], strides = [1, 1]} : vector<64x128xf32> to vector<64x32xf32>
    %8 = vector.extract_strided_slice %5 {offsets = [0, 64], sizes = [64, 32], strides = [1, 1]} : vector<64x128xf32> to vector<64x32xf32>
    %9 = vector.extract_strided_slice %5 {offsets = [0, 96], sizes = [64, 32], strides = [1, 1]} : vector<64x128xf32> to vector<64x32xf32>
    %c0_5 = arith.constant 0 : index
    %c0_6 = arith.constant 0 : index
    %c0_7 = arith.constant 0 : index
    %10 = vector.load %arg2[%c0_5, %c0_6, %c0_7] : memref<4x32x32xf32, #tpu.memory_space<vmem>>, vector<4x32x32xf32>
    %11 = vector.extract_strided_slice %10 {offsets = [0, 0, 0], sizes = [1, 32, 32], strides = [1, 1, 1]} : vector<4x32x32xf32> to vector<1x32x32xf32>
    %12 = vector.shape_cast %11 : vector<1x32x32xf32> to vector<32x32xf32>
    %13 = vector.extract_strided_slice %10 {offsets = [1, 0, 0], sizes = [1, 32, 32], strides = [1, 1, 1]} : vector<4x32x32xf32> to vector<1x32x32xf32>
    %14 = vector.shape_cast %13 : vector<1x32x32xf32> to vector<32x32xf32>
    %15 = vector.extract_strided_slice %10 {offsets = [2, 0, 0], sizes = [1, 32, 32], strides = [1, 1, 1]} : vector<4x32x32xf32> to vector<1x32x32xf32>
    %16 = vector.shape_cast %15 : vector<1x32x32xf32> to vector<32x32xf32>
    %17 = vector.extract_strided_slice %10 {offsets = [3, 0, 0], sizes = [1, 32, 32], strides = [1, 1, 1]} : vector<4x32x32xf32> to vector<1x32x32xf32>
    %18 = vector.shape_cast %17 : vector<1x32x32xf32> to vector<32x32xf32>
    %c0_8 = arith.constant 0 : index
    %c0_9 = arith.constant 0 : index
    %19 = vector.load %arg4[%c0_8, %c0_9] : memref<32x32xf32, #tpu.memory_space<vmem>>, vector<32x32xf32>
    %c0_10 = arith.constant 0 : index
    %c0_11 = arith.constant 0 : index
    %20 = vector.load %arg5[%c0_10, %c0_11] : memref<1x32xf32, #tpu.memory_space<vmem>>, vector<1x32xf32>
    %21 = vector.shape_cast %20 : vector<1x32xf32> to vector<1x32xf32>
    %22 = vector.broadcast %21 : vector<1x32xf32> to vector<8x32xf32>
    %c0_12 = arith.constant 0 : index
    %c0_13 = arith.constant 0 : index
    %23 = vector.load %arg6[%c0_12, %c0_13] : memref<32x8xf32, #tpu.memory_space<vmem>>, vector<32x8xf32>
    %c0_14 = arith.constant 0 : index
    %c0_15 = arith.constant 0 : index
    %24 = vector.load %arg7[%c0_14, %c0_15] : memref<1x8xf32, #tpu.memory_space<vmem>>, vector<1x8xf32>
    %cst_16 = arith.constant 0.000000e+00 : f32
    %25 = vector.broadcast %cst_16 : f32 to vector<8x32xf32>
    %cst_17 = arith.constant 0.000000e+00 : f32
    %26 = vector.broadcast %cst_17 : f32 to vector<8x32xf32>
    %27 = vector.extract_strided_slice %6 {offsets = [0, 0], sizes = [8, 32], strides = [1, 1]} : vector<64x32xf32> to vector<8x32xf32>
    %cst_18 = arith.constant dense<0.000000e+00> : vector<8x32xf32>
    %28 = tpu.matmul %25, %12, %cst_18 {dimension_numbers = #tpu.dot_dimension_numbers<[1], [0], [0], [1], [0, 0, 1, 1], [], []>} : vector<8x32xf32>, vector<32x32xf32>, vector<8x32xf32> -> vector<8x32xf32>
    %29 = arith.addf %27, %28 : vector<8x32xf32>
    %30 = arith.negf %29 : vector<8x32xf32>
    %31 = math.exp %30 : vector<8x32xf32>
    %cst_19 = arith.constant 1.000000e+00 : f32
    %32 = vector.broadcast %cst_19 : f32 to vector<8x32xf32>
    %33 = arith.addf %32, %31 : vector<8x32xf32>
    %34 = arith.divf %32, %33 : vector<8x32xf32>
    %35 = vector.extract_strided_slice %7 {offsets = [0, 0], sizes = [8, 32], strides = [1, 1]} : vector<64x32xf32> to vector<8x32xf32>
    %cst_20 = arith.constant dense<0.000000e+00> : vector<8x32xf32>
    %36 = tpu.matmul %25, %14, %cst_20 {dimension_numbers = #tpu.dot_dimension_numbers<[1], [0], [0], [1], [0, 0, 1, 1], [], []>} : vector<8x32xf32>, vector<32x32xf32>, vector<8x32xf32> -> vector<8x32xf32>
    %37 = arith.addf %35, %36 : vector<8x32xf32>
    %38 = arith.negf %37 : vector<8x32xf32>
    %39 = math.exp %38 : vector<8x32xf32>
    %cst_21 = arith.constant 1.000000e+00 : f32
    %40 = vector.broadcast %cst_21 : f32 to vector<8x32xf32>
    %41 = arith.addf %40, %39 : vector<8x32xf32>
    %42 = arith.divf %40, %41 : vector<8x32xf32>
    %43 = vector.extract_strided_slice %8 {offsets = [0, 0], sizes = [8, 32], strides = [1, 1]} : vector<64x32xf32> to vector<8x32xf32>
    %cst_22 = arith.constant dense<0.000000e+00> : vector<8x32xf32>
    %44 = tpu.matmul %25, %16, %cst_22 {dimension_numbers = #tpu.dot_dimension_numbers<[1], [0], [0], [1], [0, 0, 1, 1], [], []>} : vector<8x32xf32>, vector<32x32xf32>, vector<8x32xf32> -> vector<8x32xf32>
    %45 = arith.addf %43, %44 : vector<8x32xf32>
    %46 = math.tanh %45 : vector<8x32xf32>
    %47 = vector.extract_strided_slice %9 {offsets = [0, 0], sizes = [8, 32], strides = [1, 1]} : vector<64x32xf32> to vector<8x32xf32>
    %cst_23 = arith.constant dense<0.000000e+00> : vector<8x32xf32>
    %48 = tpu.matmul %25, %18, %cst_23 {dimension_numbers = #tpu.dot_dimension_numbers<[1], [0], [0], [1], [0, 0, 1, 1], [], []>} : vector<8x32xf32>, vector<32x32xf32>, vector<8x32xf32> -> vector<8x32xf32>
    %49 = arith.addf %47, %48 : vector<8x32xf32>
    %50 = arith.negf %49 : vector<8x32xf32>
    %51 = math.exp %50 : vector<8x32xf32>
    %cst_24 = arith.constant 1.000000e+00 : f32
    %52 = vector.broadcast %cst_24 : f32 to vector<8x32xf32>
    %53 = arith.addf %52, %51 : vector<8x32xf32>
    %54 = arith.divf %52, %53 : vector<8x32xf32>
    %55 = arith.mulf %42, %26 : vector<8x32xf32>
    %56 = arith.mulf %34, %46 : vector<8x32xf32>
    %57 = arith.addf %55, %56 : vector<8x32xf32>
    %58 = math.tanh %57 : vector<8x32xf32>
    %59 = arith.mulf %54, %58 : vector<8x32xf32>
    %cst_25 = arith.constant dense<0.000000e+00> : vector<8x32xf32>
    %60 = tpu.matmul %59, %19, %cst_25 {dimension_numbers = #tpu.dot_dimension_numbers<[1], [0], [0], [1], [0, 0, 1, 1], [], []>} : vector<8x32xf32>, vector<32x32xf32>, vector<8x32xf32> -> vector<8x32xf32>
    %61 = arith.addf %60, %22 : vector<8x32xf32>
    %62 = math.tanh %61 : vector<8x32xf32>
    %63 = vector.extract_strided_slice %6 {offsets = [8, 0], sizes = [8, 32], strides = [1, 1]} : vector<64x32xf32> to vector<8x32xf32>
    %cst_26 = arith.constant dense<0.000000e+00> : vector<8x32xf32>
    %64 = tpu.matmul %62, %12, %cst_26 {dimension_numbers = #tpu.dot_dimension_numbers<[1], [0], [0], [1], [0, 0, 1, 1], [], []>} : vector<8x32xf32>, vector<32x32xf32>, vector<8x32xf32> -> vector<8x32xf32>
    %65 = arith.addf %63, %64 : vector<8x32xf32>
    %66 = arith.negf %65 : vector<8x32xf32>
    %67 = math.exp %66 : vector<8x32xf32>
    %cst_27 = arith.constant 1.000000e+00 : f32
    %68 = vector.broadcast %cst_27 : f32 to vector<8x32xf32>
    %69 = arith.addf %68, %67 : vector<8x32xf32>
    %70 = arith.divf %68, %69 : vector<8x32xf32>
    %71 = vector.extract_strided_slice %7 {offsets = [8, 0], sizes = [8, 32], strides = [1, 1]} : vector<64x32xf32> to vector<8x32xf32>
    %cst_28 = arith.constant dense<0.000000e+00> : vector<8x32xf32>
    %72 = tpu.matmul %62, %14, %cst_28 {dimension_numbers = #tpu.dot_dimension_numbers<[1], [0], [0], [1], [0, 0, 1, 1], [], []>} : vector<8x32xf32>, vector<32x32xf32>, vector<8x32xf32> -> vector<8x32xf32>
    %73 = arith.addf %71, %72 : vector<8x32xf32>
    %74 = arith.negf %73 : vector<8x32xf32>
    %75 = math.exp %74 : vector<8x32xf32>
    %cst_29 = arith.constant 1.000000e+00 : f32
    %76 = vector.broadcast %cst_29 : f32 to vector<8x32xf32>
    %77 = arith.addf %76, %75 : vector<8x32xf32>
    %78 = arith.divf %76, %77 : vector<8x32xf32>
    %79 = vector.extract_strided_slice %8 {offsets = [8, 0], sizes = [8, 32], strides = [1, 1]} : vector<64x32xf32> to vector<8x32xf32>
    %cst_30 = arith.constant dense<0.000000e+00> : vector<8x32xf32>
    %80 = tpu.matmul %62, %16, %cst_30 {dimension_numbers = #tpu.dot_dimension_numbers<[1], [0], [0], [1], [0, 0, 1, 1], [], []>} : vector<8x32xf32>, vector<32x32xf32>, vector<8x32xf32> -> vector<8x32xf32>
    %81 = arith.addf %79, %80 : vector<8x32xf32>
    %82 = math.tanh %81 : vector<8x32xf32>
    %83 = vector.extract_strided_slice %9 {offsets = [8, 0], sizes = [8, 32], strides = [1, 1]} : vector<64x32xf32> to vector<8x32xf32>
    %cst_31 = arith.constant dense<0.000000e+00> : vector<8x32xf32>
    %84 = tpu.matmul %62, %18, %cst_31 {dimension_numbers = #tpu.dot_dimension_numbers<[1], [0], [0], [1], [0, 0, 1, 1], [], []>} : vector<8x32xf32>, vector<32x32xf32>, vector<8x32xf32> -> vector<8x32xf32>
    %85 = arith.addf %83, %84 : vector<8x32xf32>
    %86 = arith.negf %85 : vector<8x32xf32>
    %87 = math.exp %86 : vector<8x32xf32>
    %cst_32 = arith.constant 1.000000e+00 : f32
    %88 = vector.broadcast %cst_32 : f32 to vector<8x32xf32>
    %89 = arith.addf %88, %87 : vector<8x32xf32>
    %90 = arith.divf %88, %89 : vector<8x32xf32>
    %91 = arith.mulf %78, %57 : vector<8x32xf32>
    %92 = arith.mulf %70, %82 : vector<8x32xf32>
    %93 = arith.addf %91, %92 : vector<8x32xf32>
    %94 = math.tanh %93 : vector<8x32xf32>
    %95 = arith.mulf %90, %94 : vector<8x32xf32>
    %cst_33 = arith.constant dense<0.000000e+00> : vector<8x32xf32>
    %96 = tpu.matmul %95, %19, %cst_33 {dimension_numbers = #tpu.dot_dimension_numbers<[1], [0], [0], [1], [0, 0, 1, 1], [], []>} : vector<8x32xf32>, vector<32x32xf32>, vector<8x32xf32> -> vector<8x32xf32>
    %97 = arith.addf %96, %22 : vector<8x32xf32>
    %98 = math.tanh %97 : vector<8x32xf32>
    %99 = vector.extract_strided_slice %6 {offsets = [16, 0], sizes = [8, 32], strides = [1, 1]} : vector<64x32xf32> to vector<8x32xf32>
    %cst_34 = arith.constant dense<0.000000e+00> : vector<8x32xf32>
    %100 = tpu.matmul %98, %12, %cst_34 {dimension_numbers = #tpu.dot_dimension_numbers<[1], [0], [0], [1], [0, 0, 1, 1], [], []>} : vector<8x32xf32>, vector<32x32xf32>, vector<8x32xf32> -> vector<8x32xf32>
    %101 = arith.addf %99, %100 : vector<8x32xf32>
    %102 = arith.negf %101 : vector<8x32xf32>
    %103 = math.exp %102 : vector<8x32xf32>
    %cst_35 = arith.constant 1.000000e+00 : f32
    %104 = vector.broadcast %cst_35 : f32 to vector<8x32xf32>
    %105 = arith.addf %104, %103 : vector<8x32xf32>
    %106 = arith.divf %104, %105 : vector<8x32xf32>
    %107 = vector.extract_strided_slice %7 {offsets = [16, 0], sizes = [8, 32], strides = [1, 1]} : vector<64x32xf32> to vector<8x32xf32>
    %cst_36 = arith.constant dense<0.000000e+00> : vector<8x32xf32>
    %108 = tpu.matmul %98, %14, %cst_36 {dimension_numbers = #tpu.dot_dimension_numbers<[1], [0], [0], [1], [0, 0, 1, 1], [], []>} : vector<8x32xf32>, vector<32x32xf32>, vector<8x32xf32> -> vector<8x32xf32>
    %109 = arith.addf %107, %108 : vector<8x32xf32>
    %110 = arith.negf %109 : vector<8x32xf32>
    %111 = math.exp %110 : vector<8x32xf32>
    %cst_37 = arith.constant 1.000000e+00 : f32
    %112 = vector.broadcast %cst_37 : f32 to vector<8x32xf32>
    %113 = arith.addf %112, %111 : vector<8x32xf32>
    %114 = arith.divf %112, %113 : vector<8x32xf32>
    %115 = vector.extract_strided_slice %8 {offsets = [16, 0], sizes = [8, 32], strides = [1, 1]} : vector<64x32xf32> to vector<8x32xf32>
    %cst_38 = arith.constant dense<0.000000e+00> : vector<8x32xf32>
    %116 = tpu.matmul %98, %16, %cst_38 {dimension_numbers = #tpu.dot_dimension_numbers<[1], [0], [0], [1], [0, 0, 1, 1], [], []>} : vector<8x32xf32>, vector<32x32xf32>, vector<8x32xf32> -> vector<8x32xf32>
    %117 = arith.addf %115, %116 : vector<8x32xf32>
    %118 = math.tanh %117 : vector<8x32xf32>
    %119 = vector.extract_strided_slice %9 {offsets = [16, 0], sizes = [8, 32], strides = [1, 1]} : vector<64x32xf32> to vector<8x32xf32>
    %cst_39 = arith.constant dense<0.000000e+00> : vector<8x32xf32>
    %120 = tpu.matmul %98, %18, %cst_39 {dimension_numbers = #tpu.dot_dimension_numbers<[1], [0], [0], [1], [0, 0, 1, 1], [], []>} : vector<8x32xf32>, vector<32x32xf32>, vector<8x32xf32> -> vector<8x32xf32>
    %121 = arith.addf %119, %120 : vector<8x32xf32>
    %122 = arith.negf %121 : vector<8x32xf32>
    %123 = math.exp %122 : vector<8x32xf32>
    %cst_40 = arith.constant 1.000000e+00 : f32
    %124 = vector.broadcast %cst_40 : f32 to vector<8x32xf32>
    %125 = arith.addf %124, %123 : vector<8x32xf32>
    %126 = arith.divf %124, %125 : vector<8x32xf32>
    %127 = arith.mulf %114, %93 : vector<8x32xf32>
    %128 = arith.mulf %106, %118 : vector<8x32xf32>
    %129 = arith.addf %127, %128 : vector<8x32xf32>
    %130 = math.tanh %129 : vector<8x32xf32>
    %131 = arith.mulf %126, %130 : vector<8x32xf32>
    %cst_41 = arith.constant dense<0.000000e+00> : vector<8x32xf32>
    %132 = tpu.matmul %131, %19, %cst_41 {dimension_numbers = #tpu.dot_dimension_numbers<[1], [0], [0], [1], [0, 0, 1, 1], [], []>} : vector<8x32xf32>, vector<32x32xf32>, vector<8x32xf32> -> vector<8x32xf32>
    %133 = arith.addf %132, %22 : vector<8x32xf32>
    %134 = math.tanh %133 : vector<8x32xf32>
    %135 = vector.extract_strided_slice %6 {offsets = [24, 0], sizes = [8, 32], strides = [1, 1]} : vector<64x32xf32> to vector<8x32xf32>
    %cst_42 = arith.constant dense<0.000000e+00> : vector<8x32xf32>
    %136 = tpu.matmul %134, %12, %cst_42 {dimension_numbers = #tpu.dot_dimension_numbers<[1], [0], [0], [1], [0, 0, 1, 1], [], []>} : vector<8x32xf32>, vector<32x32xf32>, vector<8x32xf32> -> vector<8x32xf32>
    %137 = arith.addf %135, %136 : vector<8x32xf32>
    %138 = arith.negf %137 : vector<8x32xf32>
    %139 = math.exp %138 : vector<8x32xf32>
    %cst_43 = arith.constant 1.000000e+00 : f32
    %140 = vector.broadcast %cst_43 : f32 to vector<8x32xf32>
    %141 = arith.addf %140, %139 : vector<8x32xf32>
    %142 = arith.divf %140, %141 : vector<8x32xf32>
    %143 = vector.extract_strided_slice %7 {offsets = [24, 0], sizes = [8, 32], strides = [1, 1]} : vector<64x32xf32> to vector<8x32xf32>
    %cst_44 = arith.constant dense<0.000000e+00> : vector<8x32xf32>
    %144 = tpu.matmul %134, %14, %cst_44 {dimension_numbers = #tpu.dot_dimension_numbers<[1], [0], [0], [1], [0, 0, 1, 1], [], []>} : vector<8x32xf32>, vector<32x32xf32>, vector<8x32xf32> -> vector<8x32xf32>
    %145 = arith.addf %143, %144 : vector<8x32xf32>
    %146 = arith.negf %145 : vector<8x32xf32>
    %147 = math.exp %146 : vector<8x32xf32>
    %cst_45 = arith.constant 1.000000e+00 : f32
    %148 = vector.broadcast %cst_45 : f32 to vector<8x32xf32>
    %149 = arith.addf %148, %147 : vector<8x32xf32>
    %150 = arith.divf %148, %149 : vector<8x32xf32>
    %151 = vector.extract_strided_slice %8 {offsets = [24, 0], sizes = [8, 32], strides = [1, 1]} : vector<64x32xf32> to vector<8x32xf32>
    %cst_46 = arith.constant dense<0.000000e+00> : vector<8x32xf32>
    %152 = tpu.matmul %134, %16, %cst_46 {dimension_numbers = #tpu.dot_dimension_numbers<[1], [0], [0], [1], [0, 0, 1, 1], [], []>} : vector<8x32xf32>, vector<32x32xf32>, vector<8x32xf32> -> vector<8x32xf32>
    %153 = arith.addf %151, %152 : vector<8x32xf32>
    %154 = math.tanh %153 : vector<8x32xf32>
    %155 = vector.extract_strided_slice %9 {offsets = [24, 0], sizes = [8, 32], strides = [1, 1]} : vector<64x32xf32> to vector<8x32xf32>
    %cst_47 = arith.constant dense<0.000000e+00> : vector<8x32xf32>
    %156 = tpu.matmul %134, %18, %cst_47 {dimension_numbers = #tpu.dot_dimension_numbers<[1], [0], [0], [1], [0, 0, 1, 1], [], []>} : vector<8x32xf32>, vector<32x32xf32>, vector<8x32xf32> -> vector<8x32xf32>
    %157 = arith.addf %155, %156 : vector<8x32xf32>
    %158 = arith.negf %157 : vector<8x32xf32>
    %159 = math.exp %158 : vector<8x32xf32>
    %cst_48 = arith.constant 1.000000e+00 : f32
    %160 = vector.broadcast %cst_48 : f32 to vector<8x32xf32>
    %161 = arith.addf %160, %159 : vector<8x32xf32>
    %162 = arith.divf %160, %161 : vector<8x32xf32>
    %163 = arith.mulf %150, %129 : vector<8x32xf32>
    %164 = arith.mulf %142, %154 : vector<8x32xf32>
    %165 = arith.addf %163, %164 : vector<8x32xf32>
    %166 = math.tanh %165 : vector<8x32xf32>
    %167 = arith.mulf %162, %166 : vector<8x32xf32>
    %cst_49 = arith.constant dense<0.000000e+00> : vector<8x32xf32>
    %168 = tpu.matmul %167, %19, %cst_49 {dimension_numbers = #tpu.dot_dimension_numbers<[1], [0], [0], [1], [0, 0, 1, 1], [], []>} : vector<8x32xf32>, vector<32x32xf32>, vector<8x32xf32> -> vector<8x32xf32>
    %169 = arith.addf %168, %22 : vector<8x32xf32>
    %170 = math.tanh %169 : vector<8x32xf32>
    %171 = vector.extract_strided_slice %6 {offsets = [32, 0], sizes = [8, 32], strides = [1, 1]} : vector<64x32xf32> to vector<8x32xf32>
    %cst_50 = arith.constant dense<0.000000e+00> : vector<8x32xf32>
    %172 = tpu.matmul %170, %12, %cst_50 {dimension_numbers = #tpu.dot_dimension_numbers<[1], [0], [0], [1], [0, 0, 1, 1], [], []>} : vector<8x32xf32>, vector<32x32xf32>, vector<8x32xf32> -> vector<8x32xf32>
    %173 = arith.addf %171, %172 : vector<8x32xf32>
    %174 = arith.negf %173 : vector<8x32xf32>
    %175 = math.exp %174 : vector<8x32xf32>
    %cst_51 = arith.constant 1.000000e+00 : f32
    %176 = vector.broadcast %cst_51 : f32 to vector<8x32xf32>
    %177 = arith.addf %176, %175 : vector<8x32xf32>
    %178 = arith.divf %176, %177 : vector<8x32xf32>
    %179 = vector.extract_strided_slice %7 {offsets = [32, 0], sizes = [8, 32], strides = [1, 1]} : vector<64x32xf32> to vector<8x32xf32>
    %cst_52 = arith.constant dense<0.000000e+00> : vector<8x32xf32>
    %180 = tpu.matmul %170, %14, %cst_52 {dimension_numbers = #tpu.dot_dimension_numbers<[1], [0], [0], [1], [0, 0, 1, 1], [], []>} : vector<8x32xf32>, vector<32x32xf32>, vector<8x32xf32> -> vector<8x32xf32>
    %181 = arith.addf %179, %180 : vector<8x32xf32>
    %182 = arith.negf %181 : vector<8x32xf32>
    %183 = math.exp %182 : vector<8x32xf32>
    %cst_53 = arith.constant 1.000000e+00 : f32
    %184 = vector.broadcast %cst_53 : f32 to vector<8x32xf32>
    %185 = arith.addf %184, %183 : vector<8x32xf32>
    %186 = arith.divf %184, %185 : vector<8x32xf32>
    %187 = vector.extract_strided_slice %8 {offsets = [32, 0], sizes = [8, 32], strides = [1, 1]} : vector<64x32xf32> to vector<8x32xf32>
    %cst_54 = arith.constant dense<0.000000e+00> : vector<8x32xf32>
    %188 = tpu.matmul %170, %16, %cst_54 {dimension_numbers = #tpu.dot_dimension_numbers<[1], [0], [0], [1], [0, 0, 1, 1], [], []>} : vector<8x32xf32>, vector<32x32xf32>, vector<8x32xf32> -> vector<8x32xf32>
    %189 = arith.addf %187, %188 : vector<8x32xf32>
    %190 = math.tanh %189 : vector<8x32xf32>
    %191 = vector.extract_strided_slice %9 {offsets = [32, 0], sizes = [8, 32], strides = [1, 1]} : vector<64x32xf32> to vector<8x32xf32>
    %cst_55 = arith.constant dense<0.000000e+00> : vector<8x32xf32>
    %192 = tpu.matmul %170, %18, %cst_55 {dimension_numbers = #tpu.dot_dimension_numbers<[1], [0], [0], [1], [0, 0, 1, 1], [], []>} : vector<8x32xf32>, vector<32x32xf32>, vector<8x32xf32> -> vector<8x32xf32>
    %193 = arith.addf %191, %192 : vector<8x32xf32>
    %194 = arith.negf %193 : vector<8x32xf32>
    %195 = math.exp %194 : vector<8x32xf32>
    %cst_56 = arith.constant 1.000000e+00 : f32
    %196 = vector.broadcast %cst_56 : f32 to vector<8x32xf32>
    %197 = arith.addf %196, %195 : vector<8x32xf32>
    %198 = arith.divf %196, %197 : vector<8x32xf32>
    %199 = arith.mulf %186, %165 : vector<8x32xf32>
    %200 = arith.mulf %178, %190 : vector<8x32xf32>
    %201 = arith.addf %199, %200 : vector<8x32xf32>
    %202 = math.tanh %201 : vector<8x32xf32>
    %203 = arith.mulf %198, %202 : vector<8x32xf32>
    %cst_57 = arith.constant dense<0.000000e+00> : vector<8x32xf32>
    %204 = tpu.matmul %203, %19, %cst_57 {dimension_numbers = #tpu.dot_dimension_numbers<[1], [0], [0], [1], [0, 0, 1, 1], [], []>} : vector<8x32xf32>, vector<32x32xf32>, vector<8x32xf32> -> vector<8x32xf32>
    %205 = arith.addf %204, %22 : vector<8x32xf32>
    %206 = math.tanh %205 : vector<8x32xf32>
    %207 = vector.extract_strided_slice %6 {offsets = [40, 0], sizes = [8, 32], strides = [1, 1]} : vector<64x32xf32> to vector<8x32xf32>
    %cst_58 = arith.constant dense<0.000000e+00> : vector<8x32xf32>
    %208 = tpu.matmul %206, %12, %cst_58 {dimension_numbers = #tpu.dot_dimension_numbers<[1], [0], [0], [1], [0, 0, 1, 1], [], []>} : vector<8x32xf32>, vector<32x32xf32>, vector<8x32xf32> -> vector<8x32xf32>
    %209 = arith.addf %207, %208 : vector<8x32xf32>
    %210 = arith.negf %209 : vector<8x32xf32>
    %211 = math.exp %210 : vector<8x32xf32>
    %cst_59 = arith.constant 1.000000e+00 : f32
    %212 = vector.broadcast %cst_59 : f32 to vector<8x32xf32>
    %213 = arith.addf %212, %211 : vector<8x32xf32>
    %214 = arith.divf %212, %213 : vector<8x32xf32>
    %215 = vector.extract_strided_slice %7 {offsets = [40, 0], sizes = [8, 32], strides = [1, 1]} : vector<64x32xf32> to vector<8x32xf32>
    %cst_60 = arith.constant dense<0.000000e+00> : vector<8x32xf32>
    %216 = tpu.matmul %206, %14, %cst_60 {dimension_numbers = #tpu.dot_dimension_numbers<[1], [0], [0], [1], [0, 0, 1, 1], [], []>} : vector<8x32xf32>, vector<32x32xf32>, vector<8x32xf32> -> vector<8x32xf32>
    %217 = arith.addf %215, %216 : vector<8x32xf32>
    %218 = arith.negf %217 : vector<8x32xf32>
    %219 = math.exp %218 : vector<8x32xf32>
    %cst_61 = arith.constant 1.000000e+00 : f32
    %220 = vector.broadcast %cst_61 : f32 to vector<8x32xf32>
    %221 = arith.addf %220, %219 : vector<8x32xf32>
    %222 = arith.divf %220, %221 : vector<8x32xf32>
    %223 = vector.extract_strided_slice %8 {offsets = [40, 0], sizes = [8, 32], strides = [1, 1]} : vector<64x32xf32> to vector<8x32xf32>
    %cst_62 = arith.constant dense<0.000000e+00> : vector<8x32xf32>
    %224 = tpu.matmul %206, %16, %cst_62 {dimension_numbers = #tpu.dot_dimension_numbers<[1], [0], [0], [1], [0, 0, 1, 1], [], []>} : vector<8x32xf32>, vector<32x32xf32>, vector<8x32xf32> -> vector<8x32xf32>
    %225 = arith.addf %223, %224 : vector<8x32xf32>
    %226 = math.tanh %225 : vector<8x32xf32>
    %227 = vector.extract_strided_slice %9 {offsets = [40, 0], sizes = [8, 32], strides = [1, 1]} : vector<64x32xf32> to vector<8x32xf32>
    %cst_63 = arith.constant dense<0.000000e+00> : vector<8x32xf32>
    %228 = tpu.matmul %206, %18, %cst_63 {dimension_numbers = #tpu.dot_dimension_numbers<[1], [0], [0], [1], [0, 0, 1, 1], [], []>} : vector<8x32xf32>, vector<32x32xf32>, vector<8x32xf32> -> vector<8x32xf32>
    %229 = arith.addf %227, %228 : vector<8x32xf32>
    %230 = arith.negf %229 : vector<8x32xf32>
    %231 = math.exp %230 : vector<8x32xf32>
    %cst_64 = arith.constant 1.000000e+00 : f32
    %232 = vector.broadcast %cst_64 : f32 to vector<8x32xf32>
    %233 = arith.addf %232, %231 : vector<8x32xf32>
    %234 = arith.divf %232, %233 : vector<8x32xf32>
    %235 = arith.mulf %222, %201 : vector<8x32xf32>
    %236 = arith.mulf %214, %226 : vector<8x32xf32>
    %237 = arith.addf %235, %236 : vector<8x32xf32>
    %238 = math.tanh %237 : vector<8x32xf32>
    %239 = arith.mulf %234, %238 : vector<8x32xf32>
    %cst_65 = arith.constant dense<0.000000e+00> : vector<8x32xf32>
    %240 = tpu.matmul %239, %19, %cst_65 {dimension_numbers = #tpu.dot_dimension_numbers<[1], [0], [0], [1], [0, 0, 1, 1], [], []>} : vector<8x32xf32>, vector<32x32xf32>, vector<8x32xf32> -> vector<8x32xf32>
    %241 = arith.addf %240, %22 : vector<8x32xf32>
    %242 = math.tanh %241 : vector<8x32xf32>
    %243 = vector.extract_strided_slice %6 {offsets = [48, 0], sizes = [8, 32], strides = [1, 1]} : vector<64x32xf32> to vector<8x32xf32>
    %cst_66 = arith.constant dense<0.000000e+00> : vector<8x32xf32>
    %244 = tpu.matmul %242, %12, %cst_66 {dimension_numbers = #tpu.dot_dimension_numbers<[1], [0], [0], [1], [0, 0, 1, 1], [], []>} : vector<8x32xf32>, vector<32x32xf32>, vector<8x32xf32> -> vector<8x32xf32>
    %245 = arith.addf %243, %244 : vector<8x32xf32>
    %246 = arith.negf %245 : vector<8x32xf32>
    %247 = math.exp %246 : vector<8x32xf32>
    %cst_67 = arith.constant 1.000000e+00 : f32
    %248 = vector.broadcast %cst_67 : f32 to vector<8x32xf32>
    %249 = arith.addf %248, %247 : vector<8x32xf32>
    %250 = arith.divf %248, %249 : vector<8x32xf32>
    %251 = vector.extract_strided_slice %7 {offsets = [48, 0], sizes = [8, 32], strides = [1, 1]} : vector<64x32xf32> to vector<8x32xf32>
    %cst_68 = arith.constant dense<0.000000e+00> : vector<8x32xf32>
    %252 = tpu.matmul %242, %14, %cst_68 {dimension_numbers = #tpu.dot_dimension_numbers<[1], [0], [0], [1], [0, 0, 1, 1], [], []>} : vector<8x32xf32>, vector<32x32xf32>, vector<8x32xf32> -> vector<8x32xf32>
    %253 = arith.addf %251, %252 : vector<8x32xf32>
    %254 = arith.negf %253 : vector<8x32xf32>
    %255 = math.exp %254 : vector<8x32xf32>
    %cst_69 = arith.constant 1.000000e+00 : f32
    %256 = vector.broadcast %cst_69 : f32 to vector<8x32xf32>
    %257 = arith.addf %256, %255 : vector<8x32xf32>
    %258 = arith.divf %256, %257 : vector<8x32xf32>
    %259 = vector.extract_strided_slice %8 {offsets = [48, 0], sizes = [8, 32], strides = [1, 1]} : vector<64x32xf32> to vector<8x32xf32>
    %cst_70 = arith.constant dense<0.000000e+00> : vector<8x32xf32>
    %260 = tpu.matmul %242, %16, %cst_70 {dimension_numbers = #tpu.dot_dimension_numbers<[1], [0], [0], [1], [0, 0, 1, 1], [], []>} : vector<8x32xf32>, vector<32x32xf32>, vector<8x32xf32> -> vector<8x32xf32>
    %261 = arith.addf %259, %260 : vector<8x32xf32>
    %262 = math.tanh %261 : vector<8x32xf32>
    %263 = vector.extract_strided_slice %9 {offsets = [48, 0], sizes = [8, 32], strides = [1, 1]} : vector<64x32xf32> to vector<8x32xf32>
    %cst_71 = arith.constant dense<0.000000e+00> : vector<8x32xf32>
    %264 = tpu.matmul %242, %18, %cst_71 {dimension_numbers = #tpu.dot_dimension_numbers<[1], [0], [0], [1], [0, 0, 1, 1], [], []>} : vector<8x32xf32>, vector<32x32xf32>, vector<8x32xf32> -> vector<8x32xf32>
    %265 = arith.addf %263, %264 : vector<8x32xf32>
    %266 = arith.negf %265 : vector<8x32xf32>
    %267 = math.exp %266 : vector<8x32xf32>
    %cst_72 = arith.constant 1.000000e+00 : f32
    %268 = vector.broadcast %cst_72 : f32 to vector<8x32xf32>
    %269 = arith.addf %268, %267 : vector<8x32xf32>
    %270 = arith.divf %268, %269 : vector<8x32xf32>
    %271 = arith.mulf %258, %237 : vector<8x32xf32>
    %272 = arith.mulf %250, %262 : vector<8x32xf32>
    %273 = arith.addf %271, %272 : vector<8x32xf32>
    %274 = math.tanh %273 : vector<8x32xf32>
    %275 = arith.mulf %270, %274 : vector<8x32xf32>
    %cst_73 = arith.constant dense<0.000000e+00> : vector<8x32xf32>
    %276 = tpu.matmul %275, %19, %cst_73 {dimension_numbers = #tpu.dot_dimension_numbers<[1], [0], [0], [1], [0, 0, 1, 1], [], []>} : vector<8x32xf32>, vector<32x32xf32>, vector<8x32xf32> -> vector<8x32xf32>
    %277 = arith.addf %276, %22 : vector<8x32xf32>
    %278 = math.tanh %277 : vector<8x32xf32>
    %279 = vector.extract_strided_slice %6 {offsets = [56, 0], sizes = [8, 32], strides = [1, 1]} : vector<64x32xf32> to vector<8x32xf32>
    %cst_74 = arith.constant dense<0.000000e+00> : vector<8x32xf32>
    %280 = tpu.matmul %278, %12, %cst_74 {dimension_numbers = #tpu.dot_dimension_numbers<[1], [0], [0], [1], [0, 0, 1, 1], [], []>} : vector<8x32xf32>, vector<32x32xf32>, vector<8x32xf32> -> vector<8x32xf32>
    %281 = arith.addf %279, %280 : vector<8x32xf32>
    %282 = arith.negf %281 : vector<8x32xf32>
    %283 = math.exp %282 : vector<8x32xf32>
    %cst_75 = arith.constant 1.000000e+00 : f32
    %284 = vector.broadcast %cst_75 : f32 to vector<8x32xf32>
    %285 = arith.addf %284, %283 : vector<8x32xf32>
    %286 = arith.divf %284, %285 : vector<8x32xf32>
    %287 = vector.extract_strided_slice %7 {offsets = [56, 0], sizes = [8, 32], strides = [1, 1]} : vector<64x32xf32> to vector<8x32xf32>
    %cst_76 = arith.constant dense<0.000000e+00> : vector<8x32xf32>
    %288 = tpu.matmul %278, %14, %cst_76 {dimension_numbers = #tpu.dot_dimension_numbers<[1], [0], [0], [1], [0, 0, 1, 1], [], []>} : vector<8x32xf32>, vector<32x32xf32>, vector<8x32xf32> -> vector<8x32xf32>
    %289 = arith.addf %287, %288 : vector<8x32xf32>
    %290 = arith.negf %289 : vector<8x32xf32>
    %291 = math.exp %290 : vector<8x32xf32>
    %cst_77 = arith.constant 1.000000e+00 : f32
    %292 = vector.broadcast %cst_77 : f32 to vector<8x32xf32>
    %293 = arith.addf %292, %291 : vector<8x32xf32>
    %294 = arith.divf %292, %293 : vector<8x32xf32>
    %295 = vector.extract_strided_slice %8 {offsets = [56, 0], sizes = [8, 32], strides = [1, 1]} : vector<64x32xf32> to vector<8x32xf32>
    %cst_78 = arith.constant dense<0.000000e+00> : vector<8x32xf32>
    %296 = tpu.matmul %278, %16, %cst_78 {dimension_numbers = #tpu.dot_dimension_numbers<[1], [0], [0], [1], [0, 0, 1, 1], [], []>} : vector<8x32xf32>, vector<32x32xf32>, vector<8x32xf32> -> vector<8x32xf32>
    %297 = arith.addf %295, %296 : vector<8x32xf32>
    %298 = math.tanh %297 : vector<8x32xf32>
    %299 = vector.extract_strided_slice %9 {offsets = [56, 0], sizes = [8, 32], strides = [1, 1]} : vector<64x32xf32> to vector<8x32xf32>
    %cst_79 = arith.constant dense<0.000000e+00> : vector<8x32xf32>
    %300 = tpu.matmul %278, %18, %cst_79 {dimension_numbers = #tpu.dot_dimension_numbers<[1], [0], [0], [1], [0, 0, 1, 1], [], []>} : vector<8x32xf32>, vector<32x32xf32>, vector<8x32xf32> -> vector<8x32xf32>
    %301 = arith.addf %299, %300 : vector<8x32xf32>
    %302 = arith.negf %301 : vector<8x32xf32>
    %303 = math.exp %302 : vector<8x32xf32>
    %cst_80 = arith.constant 1.000000e+00 : f32
    %304 = vector.broadcast %cst_80 : f32 to vector<8x32xf32>
    %305 = arith.addf %304, %303 : vector<8x32xf32>
    %306 = arith.divf %304, %305 : vector<8x32xf32>
    %307 = arith.mulf %294, %273 : vector<8x32xf32>
    %308 = arith.mulf %286, %298 : vector<8x32xf32>
    %309 = arith.addf %307, %308 : vector<8x32xf32>
    %310 = math.tanh %309 : vector<8x32xf32>
    %311 = arith.mulf %306, %310 : vector<8x32xf32>
    %cst_81 = arith.constant dense<0.000000e+00> : vector<8x32xf32>
    %312 = tpu.matmul %311, %19, %cst_81 {dimension_numbers = #tpu.dot_dimension_numbers<[1], [0], [0], [1], [0, 0, 1, 1], [], []>} : vector<8x32xf32>, vector<32x32xf32>, vector<8x32xf32> -> vector<8x32xf32>
    %313 = arith.addf %312, %22 : vector<8x32xf32>
    %314 = math.tanh %313 : vector<8x32xf32>
    %cst_82 = arith.constant dense<0.000000e+00> : vector<8x8xf32>
    %315 = tpu.matmul %314, %23, %cst_82 {dimension_numbers = #tpu.dot_dimension_numbers<[1], [0], [0], [1], [0, 0, 1, 1], [], []>} : vector<8x32xf32>, vector<32x8xf32>, vector<8x8xf32> -> vector<8x8xf32>
    %316 = vector.broadcast %24 : vector<1x8xf32> to vector<8x8xf32>
    %317 = arith.addf %315, %316 : vector<8x8xf32>
    %c0_83 = arith.constant 0 : index
    %c0_84 = arith.constant 0 : index
    %318 = vector.load %arg8[%c0_83, %c0_84] : memref<8x8xf32, #tpu.memory_space<vmem>>, vector<8x8xf32>
    tpu.vector_store %arg8[%c0_83, %c0_84], %317 {strides = array<i32>} : memref<8x8xf32, #tpu.memory_space<vmem>>, vector<8x8xf32>,
    return
  }
}

</mosaic_0001>

<llo_original>
// kernel: tpu_custom_call.1
$region0: #{tpu_custom_call.1}
  #allocation0 [shape = 'u32[]', space=smem, size = 0x4, offset = 0x4, fixed_abs, tag = 'smem constant byte address 0x4 - core index']
  #allocation1 [shape = 'u32[144,128]{1,0:T(1,128)}', space=vmem, size = 0x12000, scoped, tag = 'internal scratch']
  %s0 = inlined_call_operand.vmem [shape: f32[64,16], index: 0, kind: input, shape index: {}]
  %s1 = inlined_call_operand.vmem [shape: f32[16,128], index: 1, kind: input, shape index: {}]
  %s2 = inlined_call_operand.hbm [shape: f32[4,32,32], index: 2, kind: input, shape index: {}]
  %s3 = inlined_call_operand.vmem [shape: f32[1,128], index: 3, kind: input, shape index: {}]
  %s4 = inlined_call_operand.vmem [shape: f32[32,32], index: 4, kind: input, shape index: {}]
  %s5 = inlined_call_operand.vmem [shape: f32[1,32], index: 5, kind: input, shape index: {}]
  %s6 = inlined_call_operand.vmem [shape: f32[32,8], index: 6, kind: input, shape index: {}]
  %s7 = inlined_call_operand.vmem [shape: f32[1,8], index: 7, kind: input, shape index: {}]
  %s8 = inlined_call_operand.hbm [shape: f32[8,8], index: 8, kind: output, shape index: {}]
  %s9 = sld [smem:[#allocation0]]
  $region46: #{tpu_custom_call.1} parent=0
    _
  %s11 = ssub.s32 1, %s9
  %s12 = scalar_select 0, %s11, %s9
  $region1: #{tpu_custom_call.1} parent=0
    #allocation2 [shape = 'u8[65536]{0}', space=vmem, size = 0x10000, scoped, tag = 'input window, operand 2, single buffered']
    #allocation3 [shape = 's32[1]{0}', space=sflag, size = 0x4, scoped, tag = 'scoped memory for tpu_custom_call.1']
    #allocation4 [shape = 's32[1]{0}', space=sflag, size = 0x4, scoped, tag = 'scoped memory for tpu_custom_call.1']
    #allocation5 [shape = 'u8[4096]{0}', space=vmem, size = 0x1000, scoped, tag = 'output window, operand 0, single buffered']
    %13 = vsyncpa [#allocation3], 0
    %14 = vsyncpa [#allocation4], 0
    // Predicated region
    $region2: #{tpu_custom_call.1} parent=1 // pred_check
      _
    $region3: #{tpu_custom_call.1} parent=1 // pred_check_branch
      %16 = sbr.rel (0) target = $region5
    $region4: #{tpu_custom_call.1} parent=1 // pred_region
      _
    $region5: #{tpu_custom_call.1} parent=1 // pred_fallthru
      _
    // Predicated region
    $region6: #{tpu_custom_call.1} parent=1 // pred_check
      _
    $region7: #{tpu_custom_call.1} parent=1 // pred_check_branch
      %18 = sbr.rel (0) target = $region9
    $region8: #{tpu_custom_call.1} parent=1 // pred_region
      _
    $region9: #{tpu_custom_call.1} parent=1 // pred_fallthru
      _
    // Predicated region
    $region10: #{tpu_custom_call.1} parent=1 // pred_check
      _
    $region11: #{tpu_custom_call.1} parent=1 // pred_check_branch
      %20 = sbr.rel (0) target = $region13
    $region12: #{tpu_custom_call.1} parent=1 // pred_region
      %s22 = ssub.s32 2048, 2048
      %23 = vsyncadd [#allocation3], %s22
      %s24 = sshll.u32 [#allocation2], 4
      %s25 = int_to_ptr.vmem [resolvable:$true] %s24
      %30 = dma.hbm_to_vmem [thread:$0]  %s2, 2048, %s25, [#allocation3], 128, 128, 8
    $region13: #{tpu_custom_call.1} parent=1 // pred_fallthru
      _
    // Predicated region
    $region14: #{tpu_custom_call.1} parent=1 // pred_check
      _
    $region15: #{tpu_custom_call.1} parent=1 // pred_check_branch
      %32 = sbr.rel (0) target = $region17
    $region16: #{tpu_custom_call.1} parent=1 // pred_region
      _
    $region17: #{tpu_custom_call.1} parent=1 // pred_fallthru
      _
    // Predicated region
    $region18: #{tpu_custom_call.1} parent=1 // pred_check
      _
    $region19: #{tpu_custom_call.1} parent=1 // pred_check_branch
      %34 = sbr.rel (0) target = $region21
    $region20: #{tpu_custom_call.1} parent=1 // pred_region
      _
    $region21: #{tpu_custom_call.1} parent=1 // pred_fallthru
      _
    // Predicated region
    $region22: #{tpu_custom_call.1} parent=1 // pred_check
      _
    $region23: #{tpu_custom_call.1} parent=1 // pred_check_branch
      %36 = sbr.rel (0) target = $region25
    $region24: #{tpu_custom_call.1} parent=1 // pred_region
      _
    $region25: #{tpu_custom_call.1} parent=1 // pred_fallthru
      _
    // Predicated region
    $region26: #{tpu_custom_call.1} parent=1 // pred_check
      _
    $region27: #{tpu_custom_call.1} parent=1 // pred_check_branch
      %38 = sbr.rel (0) target = $region29
    $region28: #{tpu_custom_call.1} parent=1 // pred_region
      _
    $region29: #{tpu_custom_call.1} parent=1 // pred_fallthru
      _
    // Predicated region
    $region30: #{tpu_custom_call.1} parent=1 // pred_check
      _
    $region31: #{tpu_custom_call.1} parent=1 // pred_check_branch
      %40 = sbr.rel (0) target = $region33
    $region32: #{tpu_custom_call.1} parent=1 // pred_region
      _
    $region33: #{tpu_custom_call.1} parent=1 // pred_fallthru
      _
    // Predicated region
    $region34: #{tpu_custom_call.1} parent=1 // pred_check
      _
    $region35: #{tpu_custom_call.1} parent=1 // pred_check_branch
      %42 = sbr.rel (0) target = $region37
    $region36: #{tpu_custom_call.1} parent=1 // pred_region
      %43 = dma.done [#allocation3], 2048
    $region37: #{tpu_custom_call.1} parent=1 // pred_fallthru
      _
    %v44 = vld [vmem:[%s0] sm:$0xff]
    %v45 = vld [vmem:[%s0 + $0x8] sm:$0xff]
    %v46 = vld [vmem:[%s0 + $0x10] sm:$0xff]
    %v47 = vld [vmem:[%s0 + $0x18] sm:$0xff]
    %v48 = vld [vmem:[%s0 + $0x20] sm:$0xff]
    %v49 = vld [vmem:[%s0 + $0x28] sm:$0xff]
    %v50 = vld [vmem:[%s0 + $0x30] sm:$0xff]
    %v51 = vld [vmem:[%s0 + $0x38] sm:$0xff]
    %v52 = vld [vmem:[%s1] sm:$0xff]
    %v53 = vld [vmem:[%s1 + $0x8] sm:$0xff]
    %v54 = vld [vmem:[%s3] sm:$0x1]
    %v56 = vlaneseq
    %v57 = vshrl.u32 %v56, 7
    %v58 = vsub.s32 0, %v57
    %v59 = vrot.slane %v54, %v58
    %vm61 = vcmask 130048
    %v63 = vsel %vm61, %v44, 0
    %v66 = vsel %vm61, %v45, 0
    %v69 = vsel %vm61, %v46, 0
    %v72 = vsel %vm61, %v47, 0
    %v75 = vsel %vm61, %v48, 0
    %v78 = vsel %vm61, %v49, 0
    %v81 = vsel %vm61, %v50, 0
    %v84 = vsel %vm61, %v51, 0
    %86 = vmatprep.subr.mxu0 0.0
    %87 = vmatpush1.msra.mxu0 0.0
    %88 = vmatprep.subr.mxu0 0.0
    %89 = vmatpush1.msra.mxu0 0.0
    %90 = vmatprep.subr.mxu0 0.0
    %91 = vmatpush1.msra.mxu0 0.0
    %92 = vmatprep.subr.mxu0 0.0
    %93 = vmatpush1.msra.mxu0 0.0
    %94 = vmatprep.subr.mxu0 0.0
    %95 = vmatpush1.msra.mxu0 0.0
    %96 = vmatprep.subr.mxu0 0.0
    %97 = vmatpush1.msra.mxu0 0.0
    %98 = vmatprep.subr.mxu0 0.0
    %99 = vmatpush1.msra.mxu0 0.0
    %100 = vmatprep.subr.mxu0 0.0
    %101 = vmatpush1.msra.mxu0 0.0
    %102 = vmatprep.subr.mxu0 0.0
    %103 = vmatpush1.msra.mxu0 0.0
    %104 = vmatprep.subr.mxu0 0.0
    %105 = vmatpush1.msra.mxu0 0.0
    %106 = vmatprep.subr.mxu0 0.0
    %107 = vmatpush1.msra.mxu0 0.0
    %108 = vmatprep.subr.mxu0 0.0
    %109 = vmatpush1.msra.mxu0 0.0
    %110 = vmatprep.subr.mxu0 0.0
    %111 = vmatpush1.msra.mxu0 0.0
    %112 = vmatprep.subr.mxu0 0.0
    %113 = vmatpush1.msra.mxu0 0.0
    %114 = vmatprep.subr.mxu0 0.0
    %115 = vmatpush1.msra.mxu0 %v53
    %116 = vmatprep.subr.mxu0 0.0
    %117 = vmatpush1.msra.mxu0 %v52
    %118 = vmatprep.subr.mxu0 0.0
    %119 = vmatpush2.msra.mxu0 0.0
    %120 = vmatprep.subr.mxu0 0.0
    %121 = vmatpush2.msra.mxu0 0.0
    %122 = vmatprep.subr.mxu0 0.0
    %123 = vmatpush2.msra.mxu0 0.0
    %124 = vmatprep.subr.mxu0 0.0
    %125 = vmatpush2.msra.mxu0 0.0
    %126 = vmatprep.subr.mxu0 0.0
    %127 = vmatpush2.msra.mxu0 0.0
    %128 = vmatprep.subr.mxu0 0.0
    %129 = vmatpush2.msra.mxu0 0.0
    %130 = vmatprep.subr.mxu0 0.0
    %131 = vmatpush2.msra.mxu0 0.0
    %132 = vmatprep.subr.mxu0 0.0
    %133 = vmatpush2.msra.mxu0 0.0
    %134 = vmatprep.subr.mxu0 0.0
    %135 = vmatpush2.msra.mxu0 0.0
    %136 = vmatprep.subr.mxu0 0.0
    %137 = vmatpush2.msra.mxu0 0.0
    %138 = vmatprep.subr.mxu0 0.0
    %139 = vmatpush2.msra.mxu0 0.0
    %140 = vmatprep.subr.mxu0 0.0
    %141 = vmatpush2.msra.mxu0 0.0
    %142 = vmatprep.subr.mxu0 0.0
    %143 = vmatpush2.msra.mxu0 0.0
    %144 = vmatprep.subr.mxu0 0.0
    %145 = vmatpush2.msra.mxu0 0.0
    %146 = vmatprep.subr.mxu0 0.0
    %147 = vmatpush2.msra.mxu0 0.0
    %148 = vmatprep.subr.mxu0 0.0
    %149 = vmatpush2.msra.mxu0 0.0
    %150 = vmatprep.mubr.f32.mxu0 0.0
    %151 = vmatmul.mubr.f32.gmra.mxu0 %v63
    %v152 = vpop.f32.mrf.mxu0
    %v153 = vadd.f32 %v59, %v152
    %v154 = vpop.f32.mrf.mxu0
    %155 = vmatprep.mubr.f32.mxu0 0.0
    %156 = vmatmul.mubr.f32.gmra.mxu0 %v66
    %v157 = vpop.f32.mrf.mxu0
    %v158 = vadd.f32 %v59, %v157
    %v159 = vpop.f32.mrf.mxu0
    %160 = vmatprep.mubr.f32.mxu0 0.0
    %161 = vmatmul.mubr.f32.gmra.mxu0 %v69
    %v162 = vpop.f32.mrf.mxu0
    %v163 = vadd.f32 %v59, %v162
    %v164 = vpop.f32.mrf.mxu0
    %165 = vmatprep.mubr.f32.mxu0 0.0
    %166 = vmatmul.mubr.f32.gmra.mxu0 %v72
    %v167 = vpop.f32.mrf.mxu0
    %v168 = vadd.f32 %v59, %v167
    %v169 = vpop.f32.mrf.mxu0
    %170 = vmatprep.mubr.f32.mxu0 0.0
    %171 = vmatmul.mubr.f32.gmra.mxu0 %v75
    %v172 = vpop.f32.mrf.mxu0
    %v173 = vadd.f32 %v59, %v172
    %v174 = vpop.f32.mrf.mxu0
    %175 = vmatprep.mubr.f32.mxu0 0.0
    %176 = vmatmul.mubr.f32.gmra.mxu0 %v78
    %v177 = vpop.f32.mrf.mxu0
    %v178 = vadd.f32 %v59, %v177
    %v179 = vpop.f32.mrf.mxu0
    %180 = vmatprep.mubr.f32.mxu0 0.0
    %181 = vmatmul.mubr.f32.gmra.mxu0 %v81
    %v182 = vpop.f32.mrf.mxu0
    %v183 = vadd.f32 %v59, %v182
    %v184 = vpop.f32.mrf.mxu0
    %185 = vmatprep.mubr.f32.mxu0 0.0
    %186 = vmatmul.mubr.f32.gmra.mxu0 %v84
    %v187 = vpop.f32.mrf.mxu0
    %v188 = vadd.f32 %v59, %v187
    %v189 = vpop.f32.mrf.mxu0
    %190 = vdwg.mxu0
    %v191 = vld [vmem:[#allocation2] sm:$0xff]
    %v192 = vld [vmem:[#allocation2 + $0x8] sm:$0xff]
    %v193 = vld [vmem:[#allocation2 + $0x10] sm:$0xff]
    %v194 = vld [vmem:[#allocation2 + $0x18] sm:$0xff]
    %v195 = vld [vmem:[#allocation2 + $0x20] sm:$0xff]
    %v196 = vld [vmem:[#allocation2 + $0x28] sm:$0xff]
    %v197 = vld [vmem:[#allocation2 + $0x30] sm:$0xff]
    %v198 = vld [vmem:[#allocation2 + $0x38] sm:$0xff]
    %v199 = vld [vmem:[#allocation2 + $0x40] sm:$0xff]
    %v200 = vld [vmem:[#allocation2 + $0x48] sm:$0xff]
    %v201 = vld [vmem:[#allocation2 + $0x50] sm:$0xff]
    %v202 = vld [vmem:[#allocation2 + $0x58] sm:$0xff]
    %v203 = vld [vmem:[#allocation2 + $0x60] sm:$0xff]
    %v204 = vld [vmem:[#allocation2 + $0x68] sm:$0xff]
    %v205 = vld [vmem:[#allocation2 + $0x70] sm:$0xff]
    %v206 = vld [vmem:[#allocation2 + $0x78] sm:$0xff]
    %v207 = vld [vmem:[%s4] sm:$0xff]
    %v208 = vld [vmem:[%s4 + $0x8] sm:$0xff]
    %v209 = vld [vmem:[%s4 + $0x10] sm:$0xff]
    %v210 = vld [vmem:[%s4 + $0x18] sm:$0xff]
    %v211 = vld [vmem:[%s5] sm:$0x1]
    %v213 = vlaneseq
    %v214 = vshrl.u32 %v213, 7
    %v215 = vsub.s32 0, %v214
    %v216 = vrot.slane %v211, %v215
    %v218 = vld [vmem:[%s6] sm:$0xff]
    %v219 = vld [vmem:[%s6 + $0x8] sm:$0xff]
    %v220 = vld [vmem:[%s6 + $0x10] sm:$0xff]
    %v221 = vld [vmem:[%s6 + $0x18] sm:$0xff]
    %v222 = vld [vmem:[%s7] sm:$0x1]
    %vm223 = vcmask 261120
    %v225 = vsel %vm223, 0.0, 0
    %227 = vmatprep.subr.mxu0 0.0
    %228 = vmatpush1.msra.mxu0 0.0
    %229 = vmatprep.subr.mxu0 0.0
    %230 = vmatpush1.msra.mxu0 0.0
    %231 = vmatprep.subr.mxu0 0.0
    %232 = vmatpush1.msra.mxu0 0.0
    %233 = vmatprep.subr.mxu0 0.0
    %234 = vmatpush1.msra.mxu0 0.0
    %235 = vmatprep.subr.mxu0 0.0
    %236 = vmatpush1.msra.mxu0 0.0
    %237 = vmatprep.subr.mxu0 0.0
    %238 = vmatpush1.msra.mxu0 0.0
    %239 = vmatprep.subr.mxu0 0.0
    %240 = vmatpush1.msra.mxu0 0.0
    %241 = vmatprep.subr.mxu0 0.0
    %242 = vmatpush1.msra.mxu0 0.0
    %243 = vmatprep.subr.mxu0 0.0
    %244 = vmatpush1.msra.mxu0 0.0
    %245 = vmatprep.subr.mxu0 0.0
    %246 = vmatpush1.msra.mxu0 0.0
    %247 = vmatprep.subr.mxu0 0.0
    %248 = vmatpush1.msra.mxu0 0.0
    %249 = vmatprep.subr.mxu0 0.0
    %250 = vmatpush1.msra.mxu0 0.0
    %251 = vmatprep.subr.mxu0 0.0
    %252 = vmatpush1.msra.mxu0 %v194
    %253 = vmatprep.subr.mxu0 0.0
    %254 = vmatpush1.msra.mxu0 %v193
    %255 = vmatprep.subr.mxu0 0.0
    %256 = vmatpush1.msra.mxu0 %v192
    %257 = vmatprep.subr.mxu0 0.0
    %258 = vmatpush1.msra.mxu0 %v191
    %259 = vmatprep.subr.mxu0 0.0
    %260 = vmatpush2.msra.mxu0 0.0
    %261 = vmatprep.subr.mxu0 0.0
    %262 = vmatpush2.msra.mxu0 0.0
    %263 = vmatprep.subr.mxu0 0.0
    %264 = vmatpush2.msra.mxu0 0.0
    %265 = vmatprep.subr.mxu0 0.0
    %266 = vmatpush2.msra.mxu0 0.0
    %267 = vmatprep.subr.mxu0 0.0
    %268 = vmatpush2.msra.mxu0 0.0
    %269 = vmatprep.subr.mxu0 0.0
    %270 = vmatpush2.msra.mxu0 0.0
    %271 = vmatprep.subr.mxu0 0.0
    %272 = vmatpush2.msra.mxu0 0.0
    %273 = vmatprep.subr.mxu0 0.0
    %274 = vmatpush2.msra.mxu0 0.0
    %275 = vmatprep.subr.mxu0 0.0
    %276 = vmatpush2.msra.mxu0 0.0
    %277 = vmatprep.subr.mxu0 0.0
    %278 = vmatpush2.msra.mxu0 0.0
    %279 = vmatprep.subr.mxu0 0.0
    %280 = vmatpush2.msra.mxu0 0.0
    %281 = vmatprep.subr.mxu0 0.0
    %282 = vmatpush2.msra.mxu0 0.0
    %283 = vmatprep.subr.mxu0 0.0
    %284 = vmatpush2.msra.mxu0 0.0
    %285 = vmatprep.subr.mxu0 0.0
    %286 = vmatpush2.msra.mxu0 0.0
    %287 = vmatprep.subr.mxu0 0.0
    %288 = vmatpush2.msra.mxu0 0.0
    %289 = vmatprep.subr.mxu0 0.0
    %290 = vmatpush2.msra.mxu0 0.0
    %291 = vmatprep.mubr.f32.mxu0 0.0
    %292 = vmatmul.mubr.f32.gmra.mxu0 %v225
    %v293 = vpop.f32.mrf.mxu0
    %v294 = vadd.f32 0.0, %v293
    %v295 = vpop.f32.mrf.mxu0
    %296 = vdwg.mxu0
    %v297 = vadd.f32 %v153, %v294
    %v298 = vxor.u32 %v297, 2147483648
    %v299 = vmul.f32 %v298, 1.442695
    %v300 = vpow.pop %v299
    %v301 = vadd.f32 %v300, 1.0
    %v302 = vrcp.pop %v301
    %v303 = vmul.f32 1.0, %v302
    %304 = vmatprep.subr.mxu0 0.0
    %305 = vmatpush1.msra.mxu0 0.0
    %306 = vmatprep.subr.mxu0 0.0
    %307 = vmatpush1.msra.mxu0 0.0
    %308 = vmatprep.subr.mxu0 0.0
    %309 = vmatpush1.msra.mxu0 0.0
    %310 = vmatprep.subr.mxu0 0.0
    %311 = vmatpush1.msra.mxu0 0.0
    %312 = vmatprep.subr.mxu0 0.0
    %313 = vmatpush1.msra.mxu0 0.0
    %314 = vmatprep.subr.mxu0 0.0
    %315 = vmatpush1.msra.mxu0 0.0
    %316 = vmatprep.subr.mxu0 0.0
    %317 = vmatpush1.msra.mxu0 0.0
    %318 = vmatprep.subr.mxu0 0.0
    %319 = vmatpush1.msra.mxu0 0.0
    %320 = vmatprep.subr.mxu0 0.0
    %321 = vmatpush1.msra.mxu0 0.0
    %322 = vmatprep.subr.mxu0 0.0
    %323 = vmatpush1.msra.mxu0 0.0
    %324 = vmatprep.subr.mxu0 0.0
    %325 = vmatpush1.msra.mxu0 0.0
    %326 = vmatprep.subr.mxu0 0.0
    %327 = vmatpush1.msra.mxu0 0.0
    %328 = vmatprep.subr.mxu0 0.0
    %329 = vmatpush1.msra.mxu0 %v198
    %330 = vmatprep.subr.mxu0 0.0
    %331 = vmatpush1.msra.mxu0 %v197
    %332 = vmatprep.subr.mxu0 0.0
    %333 = vmatpush1.msra.mxu0 %v196
    %334 = vmatprep.subr.mxu0 0.0
    %335 = vmatpush1.msra.mxu0 %v195
    %336 = vmatprep.subr.mxu0 0.0
    %337 = vmatpush2.msra.mxu0 0.0
    %338 = vmatprep.subr.mxu0 0.0
    %339 = vmatpush2.msra.mxu0 0.0
    %340 = vmatprep.subr.mxu0 0.0
    %341 = vmatpush2.msra.mxu0 0.0
    %342 = vmatprep.subr.mxu0 0.0
    %343 = vmatpush2.msra.mxu0 0.0
    %344 = vmatprep.subr.mxu0 0.0
    %345 = vmatpush2.msra.mxu0 0.0
    %346 = vmatprep.subr.mxu0 0.0
    %347 = vmatpush2.msra.mxu0 0.0
    %348 = vmatprep.subr.mxu0 0.0
    %349 = vmatpush2.msra.mxu0 0.0
    %350 = vmatprep.subr.mxu0 0.0
    %351 = vmatpush2.msra.mxu0 0.0
    %352 = vmatprep.subr.mxu0 0.0
    %353 = vmatpush2.msra.mxu0 0.0
    %354 = vmatprep.subr.mxu0 0.0
    %355 = vmatpush2.msra.mxu0 0.0
    %356 = vmatprep.subr.mxu0 0.0
    %357 = vmatpush2.msra.mxu0 0.0
    %358 = vmatprep.subr.mxu0 0.0
    %359 = vmatpush2.msra.mxu0 0.0
    %360 = vmatprep.subr.mxu0 0.0
    %361 = vmatpush2.msra.mxu0 0.0
    %362 = vmatprep.subr.mxu0 0.0
    %363 = vmatpush2.msra.mxu0 0.0
    %364 = vmatprep.subr.mxu0 0.0
    %365 = vmatpush2.msra.mxu0 0.0
    %366 = vmatprep.subr.mxu0 0.0
    %367 = vmatpush2.msra.mxu0 0.0
    %368 = vmatprep.mubr.f32.mxu0 0.0
    %369 = vmatmul.mubr.f32.gmra.mxu0 %v225
    %v370 = vpop.f32.mrf.mxu0
    %v371 = vadd.f32 0.0, %v370
    %v372 = vpop.f32.mrf.mxu0
    %373 = vdwg.mxu0
    %375 = vrot.lane.b32.xlu0 %v371, 32
    %v376 = vpop.permute.xlu0 %375
    %v378 = vadd.f32 %v153, %v376
    %v379 = vxor.u32 %v378, 2147483648
    %v380 = vmul.f32 %v379, 1.442695
    %v381 = vpow.pop %v380
    %v382 = vadd.f32 %v381, 1.0
    %v383 = vrcp.pop %v382
    %v384 = vmul.f32 1.0, %v383
    %385 = vmatprep.subr.mxu0 0.0
    %386 = vmatpush1.msra.mxu0 0.0
    %387 = vmatprep.subr.mxu0 0.0
    %388 = vmatpush1.msra.mxu0 0.0
    %389 = vmatprep.subr.mxu0 0.0
    %390 = vmatpush1.msra.mxu0 0.0
    %391 = vmatprep.subr.mxu0 0.0
    %392 = vmatpush1.msra.mxu0 0.0
    %393 = vmatprep.subr.mxu0 0.0
    %394 = vmatpush1.msra.mxu0 0.0
    %395 = vmatprep.subr.mxu0 0.0
    %396 = vmatpush1.msra.mxu0 0.0
    %397 = vmatprep.subr.mxu0 0.0
    %398 = vmatpush1.msra.mxu0 0.0
    %399 = vmatprep.subr.mxu0 0.0
    %400 = vmatpush1.msra.mxu0 0.0
    %401 = vmatprep.subr.mxu0 0.0
    %402 = vmatpush1.msra.mxu0 0.0
    %403 = vmatprep.subr.mxu0 0.0
    %404 = vmatpush1.msra.mxu0 0.0
    %405 = vmatprep.subr.mxu0 0.0
    %406 = vmatpush1.msra.mxu0 0.0
    %407 = vmatprep.subr.mxu0 0.0
    %408 = vmatpush1.msra.mxu0 0.0
    %409 = vmatprep.subr.mxu0 0.0
    %410 = vmatpush1.msra.mxu0 %v202
    %411 = vmatprep.subr.mxu0 0.0
    %412 = vmatpush1.msra.mxu0 %v201
    %413 = vmatprep.subr.mxu0 0.0
    %414 = vmatpush1.msra.mxu0 %v200
    %415 = vmatprep.subr.mxu0 0.0
    %416 = vmatpush1.msra.mxu0 %v199
    %417 = vmatprep.subr.mxu0 0.0
    %418 = vmatpush2.msra.mxu0 0.0
    %419 = vmatprep.subr.mxu0 0.0
    %420 = vmatpush2.msra.mxu0 0.0
    %421 = vmatprep.subr.mxu0 0.0
    %422 = vmatpush2.msra.mxu0 0.0
    %423 = vmatprep.subr.mxu0 0.0
    %424 = vmatpush2.msra.mxu0 0.0
    %425 = vmatprep.subr.mxu0 0.0
    %426 = vmatpush2.msra.mxu0 0.0
    %427 = vmatprep.subr.mxu0 0.0
    %428 = vmatpush2.msra.mxu0 0.0
    %429 = vmatprep.subr.mxu0 0.0
    %430 = vmatpush2.msra.mxu0 0.0
    %431 = vmatprep.subr.mxu0 0.0
    %432 = vmatpush2.msra.mxu0 0.0
    %433 = vmatprep.subr.mxu0 0.0
    %434 = vmatpush2.msra.mxu0 0.0
    %435 = vmatprep.subr.mxu0 0.0
    %436 = vmatpush2.msra.mxu0 0.0
    %437 = vmatprep.subr.mxu0 0.0
    %438 = vmatpush2.msra.mxu0 0.0
    %439 = vmatprep.subr.mxu0 0.0
    %440 = vmatpush2.msra.mxu0 0.0
    %441 = vmatprep.subr.mxu0 0.0
    %442 = vmatpush2.msra.mxu0 0.0
    %443 = vmatprep.subr.mxu0 0.0
    %444 = vmatpush2.msra.mxu0 0.0
    %445 = vmatprep.subr.mxu0 0.0
    %446 = vmatpush2.msra.mxu0 0.0
    %447 = vmatprep.subr.mxu0 0.0
    %448 = vmatpush2.msra.mxu0 0.0
    %449 = vmatprep.mubr.f32.mxu0 0.0
    %450 = vmatmul.mubr.f32.gmra.mxu0 %v225
    %v451 = vpop.f32.mrf.mxu0
    %v452 = vadd.f32 0.0, %v451
    %v453 = vpop.f32.mrf.mxu0
    %454 = vdwg.mxu0
    %456 = vrot.lane.b32.xlu0 %v452, 64
    %v457 = vpop.permute.xlu0 %456
    %v459 = vadd.f32 %v153, %v457
    %v460 = vtanh.pop %v459
    %461 = vmatprep.subr.mxu0 0.0
    %462 = vmatpush1.msra.mxu0 0.0
    %463 = vmatprep.subr.mxu0 0.0
    %464 = vmatpush1.msra.mxu0 0.0
    %465 = vmatprep.subr.mxu0 0.0
    %466 = vmatpush1.msra.mxu0 0.0
    %467 = vmatprep.subr.mxu0 0.0
    %468 = vmatpush1.msra.mxu0 0.0
    %469 = vmatprep.subr.mxu0 0.0
    %470 = vmatpush1.msra.mxu0 0.0
    %471 = vmatprep.subr.mxu0 0.0
    %472 = vmatpush1.msra.mxu0 0.0
    %473 = vmatprep.subr.mxu0 0.0
    %474 = vmatpush1.msra.mxu0 0.0
    %475 = vmatprep.subr.mxu0 0.0
    %476 = vmatpush1.msra.mxu0 0.0
    %477 = vmatprep.subr.mxu0 0.0
    %478 = vmatpush1.msra.mxu0 0.0
    %479 = vmatprep.subr.mxu0 0.0
    %480 = vmatpush1.msra.mxu0 0.0
    %481 = vmatprep.subr.mxu0 0.0
    %482 = vmatpush1.msra.mxu0 0.0
    %483 = vmatprep.subr.mxu0 0.0
    %484 = vmatpush1.msra.mxu0 0.0
    %485 = vmatprep.subr.mxu0 0.0
    %486 = vmatpush1.msra.mxu0 %v206
    %487 = vmatprep.subr.mxu0 0.0
    %488 = vmatpush1.msra.mxu0 %v205
    %489 = vmatprep.subr.mxu0 0.0
    %490 = vmatpush1.msra.mxu0 %v204
    %491 = vmatprep.subr.mxu0 0.0
    %492 = vmatpush1.msra.mxu0 %v203
    %493 = vmatprep.subr.mxu0 0.0
    %494 = vmatpush2.msra.mxu0 0.0
    %495 = vmatprep.subr.mxu0 0.0
    %496 = vmatpush2.msra.mxu0 0.0
    %497 = vmatprep.subr.mxu0 0.0
    %498 = vmatpush2.msra.mxu0 0.0
    %499 = vmatprep.subr.mxu0 0.0
    %500 = vmatpush2.msra.mxu0 0.0
    %501 = vmatprep.subr.mxu0 0.0
    %502 = vmatpush2.msra.mxu0 0.0
    %503 = vmatprep.subr.mxu0 0.0
    %504 = vmatpush2.msra.mxu0 0.0
    %505 = vmatprep.subr.mxu0 0.0
    %506 = vmatpush2.msra.mxu0 0.0
    %507 = vmatprep.subr.mxu0 0.0
    %508 = vmatpush2.msra.mxu0 0.0
    %509 = vmatprep.subr.mxu0 0.0
    %510 = vmatpush2.msra.mxu0 0.0
    %511 = vmatprep.subr.mxu0 0.0
    %512 = vmatpush2.msra.mxu0 0.0
    %513 = vmatprep.subr.mxu0 0.0
    %514 = vmatpush2.msra.mxu0 0.0
    %515 = vmatprep.subr.mxu0 0.0
    %516 = vmatpush2.msra.mxu0 0.0
    %517 = vmatprep.subr.mxu0 0.0
    %518 = vmatpush2.msra.mxu0 0.0
    %519 = vmatprep.subr.mxu0 0.0
    %520 = vmatpush2.msra.mxu0 0.0
    %521 = vmatprep.subr.mxu0 0.0
    %522 = vmatpush2.msra.mxu0 0.0
    %523 = vmatprep.subr.mxu0 0.0
    %524 = vmatpush2.msra.mxu0 0.0
    %525 = vmatprep.mubr.f32.mxu0 0.0
    %526 = vmatmul.mubr.f32.gmra.mxu0 %v225
    %v527 = vpop.f32.mrf.mxu0
    %v528 = vadd.f32 0.0, %v527
    %v529 = vpop.f32.mrf.mxu0
    %530 = vdwg.mxu0
    %532 = vrot.lane.b32.xlu0 %v528, 96
    %v533 = vpop.permute.xlu0 %532
    %v535 = vadd.f32 %v153, %v533
    %v536 = vxor.u32 %v535, 2147483648
    %v537 = vmul.f32 %v536, 1.442695
    %v538 = vpow.pop %v537
    %v539 = vadd.f32 %v538, 1.0
    %v540 = vrcp.pop %v539
    %v541 = vmul.f32 1.0, %v540
    %v542 = vmul.f32 %v384, 0.0
    %544 = vrot.lane.b32.xlu0 %v460, 64
    %v545 = vpop.permute.xlu0 %544
    %v547 = vmul.f32 %v303, %v545
    %549 = vrot.lane.b32.xlu0 %v547, 32
    %v550 = vpop.permute.xlu0 %549
    %v552 = vadd.f32 %v542, %v550
    %v553 = vtanh.pop %v552
    %555 = vrot.lane.b32.xlu0 %v553, 64
    %v556 = vpop.permute.xlu0 %555
    %v558 = vmul.f32 %v541, %v556
    %560 = vrot.lane.b32.xlu0 %v558, 32
    %v561 = vpop.permute.xlu0 %560
    %v562 = vsel %vm223, %v561, 0
    %564 = vmatprep.subr.mxu0 0.0
    %565 = vmatpush1.msra.mxu0 0.0
    %566 = vmatprep.subr.mxu0 0.0
    %567 = vmatpush1.msra.mxu0 0.0
    %568 = vmatprep.subr.mxu0 0.0
    %569 = vmatpush1.msra.mxu0 0.0
    %570 = vmatprep.subr.mxu0 0.0
    %571 = vmatpush1.msra.mxu0 0.0
    %572 = vmatprep.subr.mxu0 0.0
    %573 = vmatpush1.msra.mxu0 0.0
    %574 = vmatprep.subr.mxu0 0.0
    %575 = vmatpush1.msra.mxu0 0.0
    %576 = vmatprep.subr.mxu0 0.0
    %577 = vmatpush1.msra.mxu0 0.0
    %578 = vmatprep.subr.mxu0 0.0
    %579 = vmatpush1.msra.mxu0 0.0
    %580 = vmatprep.subr.mxu0 0.0
    %581 = vmatpush1.msra.mxu0 0.0
    %582 = vmatprep.subr.mxu0 0.0
    %583 = vmatpush1.msra.mxu0 0.0
    %584 = vmatprep.subr.mxu0 0.0
    %585 = vmatpush1.msra.mxu0 0.0
    %586 = vmatprep.subr.mxu0 0.0
    %587 = vmatpush1.msra.mxu0 0.0
    %588 = vmatprep.subr.mxu0 0.0
    %589 = vmatpush1.msra.mxu0 %v210
    %590 = vmatprep.subr.mxu0 0.0
    %591 = vmatpush1.msra.mxu0 %v209
    %592 = vmatprep.subr.mxu0 0.0
    %593 = vmatpush1.msra.mxu0 %v208
    %594 = vmatprep.subr.mxu0 0.0
    %595 = vmatpush1.msra.mxu0 %v207
    %596 = vmatprep.subr.mxu0 0.0
    %597 = vmatpush2.msra.mxu0 0.0
    %598 = vmatprep.subr.mxu0 0.0
    %599 = vmatpush2.msra.mxu0 0.0
    %600 = vmatprep.subr.mxu0 0.0
    %601 = vmatpush2.msra.mxu0 0.0
    %602 = vmatprep.subr.mxu0 0.0
    %603 = vmatpush2.msra.mxu0 0.0
    %604 = vmatprep.subr.mxu0 0.0
    %605 = vmatpush2.msra.mxu0 0.0
    %606 = vmatprep.subr.mxu0 0.0
    %607 = vmatpush2.msra.mxu0 0.0
    %608 = vmatprep.subr.mxu0 0.0
    %609 = vmatpush2.msra.mxu0 0.0
    %610 = vmatprep.subr.mxu0 0.0
    %611 = vmatpush2.msra.mxu0 0.0
    %612 = vmatprep.subr.mxu0 0.0
    %613 = vmatpush2.msra.mxu0 0.0
    %614 = vmatprep.subr.mxu0 0.0
    %615 = vmatpush2.msra.mxu0 0.0
    %616 = vmatprep.subr.mxu0 0.0
    %617 = vmatpush2.msra.mxu0 0.0
    %618 = vmatprep.subr.mxu0 0.0
    %619 = vmatpush2.msra.mxu0 0.0
    %620 = vmatprep.subr.mxu0 0.0
    %621 = vmatpush2.msra.mxu0 0.0
    %622 = vmatprep.subr.mxu0 0.0
    %623 = vmatpush2.msra.mxu0 0.0
    %624 = vmatprep.subr.mxu0 0.0
    %625 = vmatpush2.msra.mxu0 0.0
    %626 = vmatprep.subr.mxu0 0.0
    %627 = vmatpush2.msra.mxu0 0.0
    %628 = vmatprep.mubr.f32.mxu0 0.0
    %629 = vmatmul.mubr.f32.gmra.mxu0 %v562
    %v630 = vpop.f32.mrf.mxu0
    %v631 = vadd.f32 %v216, %v630
    %v632 = vpop.f32.mrf.mxu0
    %633 = vdwg.mxu0
    %v634 = vtanh.pop %v631
    %v636 = vsel %vm223, %v634, 0
    %638 = vmatprep.subr.mxu0 0.0
    %639 = vmatpush1.msra.mxu0 0.0
    %640 = vmatprep.subr.mxu0 0.0
    %641 = vmatpush1.msra.mxu0 0.0
    %642 = vmatprep.subr.mxu0 0.0
    %643 = vmatpush1.msra.mxu0 0.0
    %644 = vmatprep.subr.mxu0 0.0
    %645 = vmatpush1.msra.mxu0 0.0
    %646 = vmatprep.subr.mxu0 0.0
    %647 = vmatpush1.msra.mxu0 0.0
    %648 = vmatprep.subr.mxu0 0.0
    %649 = vmatpush1.msra.mxu0 0.0
    %650 = vmatprep.subr.mxu0 0.0
    %651 = vmatpush1.msra.mxu0 0.0
    %652 = vmatprep.subr.mxu0 0.0
    %653 = vmatpush1.msra.mxu0 0.0
    %654 = vmatprep.subr.mxu0 0.0
    %655 = vmatpush1.msra.mxu0 0.0
    %656 = vmatprep.subr.mxu0 0.0
    %657 = vmatpush1.msra.mxu0 0.0
    %658 = vmatprep.subr.mxu0 0.0
    %659 = vmatpush1.msra.mxu0 0.0
    %660 = vmatprep.subr.mxu0 0.0
    %661 = vmatpush1.msra.mxu0 0.0
    %662 = vmatprep.subr.mxu0 0.0
    %663 = vmatpush1.msra.mxu0 %v194
    %664 = vmatprep.subr.mxu0 0.0
    %665 = vmatpush1.msra.mxu0 %v193
    %666 = vmatprep.subr.mxu0 0.0
    %667 = vmatpush1.msra.mxu0 %v192
    %668 = vmatprep.subr.mxu0 0.0
    %669 = vmatpush1.msra.mxu0 %v191
    %670 = vmatprep.subr.mxu0 0.0
    %671 = vmatpush2.msra.mxu0 0.0
    %672 = vmatprep.subr.mxu0 0.0
    %673 = vmatpush2.msra.mxu0 0.0
    %674 = vmatprep.subr.mxu0 0.0
    %675 = vmatpush2.msra.mxu0 0.0
    %676 = vmatprep.subr.mxu0 0.0
    %677 = vmatpush2.msra.mxu0 0.0
    %678 = vmatprep.subr.mxu0 0.0
    %679 = vmatpush2.msra.mxu0 0.0
    %680 = vmatprep.subr.mxu0 0.0
    %681 = vmatpush2.msra.mxu0 0.0
    %682 = vmatprep.subr.mxu0 0.0
    %683 = vmatpush2.msra.mxu0 0.0
    %684 = vmatprep.subr.mxu0 0.0
    %685 = vmatpush2.msra.mxu0 0.0
    %686 = vmatprep.subr.mxu0 0.0
    %687 = vmatpush2.msra.mxu0 0.0
    %688 = vmatprep.subr.mxu0 0.0
    %689 = vmatpush2.msra.mxu0 0.0
    %690 = vmatprep.subr.mxu0 0.0
    %691 = vmatpush2.msra.mxu0 0.0
    %692 = vmatprep.subr.mxu0 0.0
    %693 = vmatpush2.msra.mxu0 0.0
    %694 = vmatprep.subr.mxu0 0.0
    %695 = vmatpush2.msra.mxu0 0.0
    %696 = vmatprep.subr.mxu0 0.0
    %697 = vmatpush2.msra.mxu0 0.0
    %698 = vmatprep.subr.mxu0 0.0
    %699 = vmatpush2.msra.mxu0 0.0
    %700 = vmatprep.subr.mxu0 0.0
    %701 = vmatpush2.msra.mxu0 0.0
    %702 = vmatprep.mubr.f32.mxu0 0.0
    %703 = vmatmul.mubr.f32.gmra.mxu0 %v636
    %v704 = vpop.f32.mrf.mxu0
    %v705 = vadd.f32 0.0, %v704
    %v706 = vpop.f32.mrf.mxu0
    %707 = vdwg.mxu0
    %v708 = vadd.f32 %v158, %v705
    %v709 = vxor.u32 %v708, 2147483648
    %v710 = vmul.f32 %v709, 1.442695
    %v711 = vpow.pop %v710
    %v712 = vadd.f32 %v711, 1.0
    %v713 = vrcp.pop %v712
    %v714 = vmul.f32 1.0, %v713
    %715 = vmatprep.subr.mxu0 0.0
    %716 = vmatpush1.msra.mxu0 0.0
    %717 = vmatprep.subr.mxu0 0.0
    %718 = vmatpush1.msra.mxu0 0.0
    %719 = vmatprep.subr.mxu0 0.0
    %720 = vmatpush1.msra.mxu0 0.0
    %721 = vmatprep.subr.mxu0 0.0
    %722 = vmatpush1.msra.mxu0 0.0
    %723 = vmatprep.subr.mxu0 0.0
    %724 = vmatpush1.msra.mxu0 0.0
    %725 = vmatprep.subr.mxu0 0.0
    %726 = vmatpush1.msra.mxu0 0.0
    %727 = vmatprep.subr.mxu0 0.0
    %728 = vmatpush1.msra.mxu0 0.0
    %729 = vmatprep.subr.mxu0 0.0
    %730 = vmatpush1.msra.mxu0 0.0
    %731 = vmatprep.subr.mxu0 0.0
    %732 = vmatpush1.msra.mxu0 0.0
    %733 = vmatprep.subr.mxu0 0.0
    %734 = vmatpush1.msra.mxu0 0.0
    %735 = vmatprep.subr.mxu0 0.0
    %736 = vmatpush1.msra.mxu0 0.0
    %737 = vmatprep.subr.mxu0 0.0
    %738 = vmatpush1.msra.mxu0 0.0
    %739 = vmatprep.subr.mxu0 0.0
    %740 = vmatpush1.msra.mxu0 %v198
    %741 = vmatprep.subr.mxu0 0.0
    %742 = vmatpush1.msra.mxu0 %v197
    %743 = vmatprep.subr.mxu0 0.0
    %744 = vmatpush1.msra.mxu0 %v196
    %745 = vmatprep.subr.mxu0 0.0
    %746 = vmatpush1.msra.mxu0 %v195
    %747 = vmatprep.subr.mxu0 0.0
    %748 = vmatpush2.msra.mxu0 0.0
    %749 = vmatprep.subr.mxu0 0.0
    %750 = vmatpush2.msra.mxu0 0.0
    %751 = vmatprep.subr.mxu0 0.0
    %752 = vmatpush2.msra.mxu0 0.0
    %753 = vmatprep.subr.mxu0 0.0
    %754 = vmatpush2.msra.mxu0 0.0
    %755 = vmatprep.subr.mxu0 0.0
    %756 = vmatpush2.msra.mxu0 0.0
    %757 = vmatprep.subr.mxu0 0.0
    %758 = vmatpush2.msra.mxu0 0.0
    %759 = vmatprep.subr.mxu0 0.0
    %760 = vmatpush2.msra.mxu0 0.0
    %761 = vmatprep.subr.mxu0 0.0
    %762 = vmatpush2.msra.mxu0 0.0
    %763 = vmatprep.subr.mxu0 0.0
    %764 = vmatpush2.msra.mxu0 0.0
    %765 = vmatprep.subr.mxu0 0.0
    %766 = vmatpush2.msra.mxu0 0.0
    %767 = vmatprep.subr.mxu0 0.0
    %768 = vmatpush2.msra.mxu0 0.0
    %769 = vmatprep.subr.mxu0 0.0
    %770 = vmatpush2.msra.mxu0 0.0
    %771 = vmatprep.subr.mxu0 0.0
    %772 = vmatpush2.msra.mxu0 0.0
    %773 = vmatprep.subr.mxu0 0.0
    %774 = vmatpush2.msra.mxu0 0.0
    %775 = vmatprep.subr.mxu0 0.0
    %776 = vmatpush2.msra.mxu0 0.0
    %777 = vmatprep.subr.mxu0 0.0
    %778 = vmatpush2.msra.mxu0 0.0
    %779 = vmatprep.mubr.f32.mxu0 0.0
    %780 = vmatmul.mubr.f32.gmra.mxu0 %v636
    %v781 = vpop.f32.mrf.mxu0
    %v782 = vadd.f32 0.0, %v781
    %v783 = vpop.f32.mrf.mxu0
    %784 = vdwg.mxu0
    %786 = vrot.lane.b32.xlu0 %v782, 32
    %v787 = vpop.permute.xlu0 %786
    %v789 = vadd.f32 %v158, %v787
    %v790 = vxor.u32 %v789, 2147483648
    %v791 = vmul.f32 %v790, 1.442695
    %v792 = vpow.pop %v791
    %v793 = vadd.f32 %v792, 1.0
    %v794 = vrcp.pop %v793
    %v795 = vmul.f32 1.0, %v794
    %796 = vmatprep.subr.mxu0 0.0
    %797 = vmatpush1.msra.mxu0 0.0
    %798 = vmatprep.subr.mxu0 0.0
    %799 = vmatpush1.msra.mxu0 0.0
    %800 = vmatprep.subr.mxu0 0.0
    %801 = vmatpush1.msra.mxu0 0.0
    %802 = vmatprep.subr.mxu0 0.0
    %803 = vmatpush1.msra.mxu0 0.0
    %804 = vmatprep.subr.mxu0 0.0
    %805 = vmatpush1.msra.mxu0 0.0
    %806 = vmatprep.subr.mxu0 0.0
    %807 = vmatpush1.msra.mxu0 0.0
    %808 = vmatprep.subr.mxu0 0.0
    %809 = vmatpush1.msra.mxu0 0.0
    %810 = vmatprep.subr.mxu0 0.0
    %811 = vmatpush1.msra.mxu0 0.0
    %812 = vmatprep.subr.mxu0 0.0
    %813 = vmatpush1.msra.mxu0 0.0
    %814 = vmatprep.subr.mxu0 0.0
    %815 = vmatpush1.msra.mxu0 0.0
    %816 = vmatprep.subr.mxu0 0.0
    %817 = vmatpush1.msra.mxu0 0.0
    %818 = vmatprep.subr.mxu0 0.0
    %819 = vmatpush1.msra.mxu0 0.0
    %820 = vmatprep.subr.mxu0 0.0
    %821 = vmatpush1.msra.mxu0 %v202
    %822 = vmatprep.subr.mxu0 0.0
    %823 = vmatpush1.msra.mxu0 %v201
    %824 = vmatprep.subr.mxu0 0.0
    %825 = vmatpush1.msra.mxu0 %v200
    %826 = vmatprep.subr.mxu0 0.0
    %827 = vmatpush1.msra.mxu0 %v199
    %828 = vmatprep.subr.mxu0 0.0
    %829 = vmatpush2.msra.mxu0 0.0
    %830 = vmatprep.subr.mxu0 0.0
    %831 = vmatpush2.msra.mxu0 0.0
    %832 = vmatprep.subr.mxu0 0.0
    %833 = vmatpush2.msra.mxu0 0.0
    %834 = vmatprep.subr.mxu0 0.0
    %835 = vmatpush2.msra.mxu0 0.0
    %836 = vmatprep.subr.mxu0 0.0
    %837 = vmatpush2.msra.mxu0 0.0
    %838 = vmatprep.subr.mxu0 0.0
    %839 = vmatpush2.msra.mxu0 0.0
    %840 = vmatprep.subr.mxu0 0.0
    %841 = vmatpush2.msra.mxu0 0.0
    %842 = vmatprep.subr.mxu0 0.0
    %843 = vmatpush2.msra.mxu0 0.0
    %844 = vmatprep.subr.mxu0 0.0
    %845 = vmatpush2.msra.mxu0 0.0
    %846 = vmatprep.subr.mxu0 0.0
    %847 = vmatpush2.msra.mxu0 0.0
    %848 = vmatprep.subr.mxu0 0.0
    %849 = vmatpush2.msra.mxu0 0.0
    %850 = vmatprep.subr.mxu0 0.0
    %851 = vmatpush2.msra.mxu0 0.0
    %852 = vmatprep.subr.mxu0 0.0
    %853 = vmatpush2.msra.mxu0 0.0
    %854 = vmatprep.subr.mxu0 0.0
    %855 = vmatpush2.msra.mxu0 0.0
    %856 = vmatprep.subr.mxu0 0.0
    %857 = vmatpush2.msra.mxu0 0.0
    %858 = vmatprep.subr.mxu0 0.0
    %859 = vmatpush2.msra.mxu0 0.0
    %860 = vmatprep.mubr.f32.mxu0 0.0
    %861 = vmatmul.mubr.f32.gmra.mxu0 %v636
    %v862 = vpop.f32.mrf.mxu0
    %v863 = vadd.f32 0.0, %v862
    %v864 = vpop.f32.mrf.mxu0
    %865 = vdwg.mxu0
    %867 = vrot.lane.b32.xlu0 %v863, 64
    %v868 = vpop.permute.xlu0 %867
    %v870 = vadd.f32 %v158, %v868
    %v871 = vtanh.pop %v870
    %872 = vmatprep.subr.mxu0 0.0
    %873 = vmatpush1.msra.mxu0 0.0
    %874 = vmatprep.subr.mxu0 0.0
    %875 = vmatpush1.msra.mxu0 0.0
    %876 = vmatprep.subr.mxu0 0.0
    %877 = vmatpush1.msra.mxu0 0.0
    %878 = vmatprep.subr.mxu0 0.0
    %879 = vmatpush1.msra.mxu0 0.0
    %880 = vmatprep.subr.mxu0 0.0
    %881 = vmatpush1.msra.mxu0 0.0
    %882 = vmatprep.subr.mxu0 0.0
    %883 = vmatpush1.msra.mxu0 0.0
    %884 = vmatprep.subr.mxu0 0.0
    %885 = vmatpush1.msra.mxu0 0.0
    %886 = vmatprep.subr.mxu0 0.0
    %887 = vmatpush1.msra.mxu0 0.0
    %888 = vmatprep.subr.mxu0 0.0
    %889 = vmatpush1.msra.mxu0 0.0
    %890 = vmatprep.subr.mxu0 0.0
    %891 = vmatpush1.msra.mxu0 0.0
    %892 = vmatprep.subr.mxu0 0.0
    %893 = vmatpush1.msra.mxu0 0.0
    %894 = vmatprep.subr.mxu0 0.0
    %895 = vmatpush1.msra.mxu0 0.0
    %896 = vmatprep.subr.mxu0 0.0
    %897 = vmatpush1.msra.mxu0 %v206
    %898 = vmatprep.subr.mxu0 0.0
    %899 = vmatpush1.msra.mxu0 %v205
    %900 = vmatprep.subr.mxu0 0.0
    %901 = vmatpush1.msra.mxu0 %v204
    %902 = vmatprep.subr.mxu0 0.0
    %903 = vmatpush1.msra.mxu0 %v203
    %904 = vmatprep.subr.mxu0 0.0
    %905 = vmatpush2.msra.mxu0 0.0
    %906 = vmatprep.subr.mxu0 0.0
    %907 = vmatpush2.msra.mxu0 0.0
    %908 = vmatprep.subr.mxu0 0.0
    %909 = vmatpush2.msra.mxu0 0.0
    %910 = vmatprep.subr.mxu0 0.0
    %911 = vmatpush2.msra.mxu0 0.0
    %912 = vmatprep.subr.mxu0 0.0
    %913 = vmatpush2.msra.mxu0 0.0
    %914 = vmatprep.subr.mxu0 0.0
    %915 = vmatpush2.msra.mxu0 0.0
    %916 = vmatprep.subr.mxu0 0.0
    %917 = vmatpush2.msra.mxu0 0.0
    %918 = vmatprep.subr.mxu0 0.0
    %919 = vmatpush2.msra.mxu0 0.0
    %920 = vmatprep.subr.mxu0 0.0
    %921 = vmatpush2.msra.mxu0 0.0
    %922 = vmatprep.subr.mxu0 0.0
    %923 = vmatpush2.msra.mxu0 0.0
    %924 = vmatprep.subr.mxu0 0.0
    %925 = vmatpush2.msra.mxu0 0.0
    %926 = vmatprep.subr.mxu0 0.0
    %927 = vmatpush2.msra.mxu0 0.0
    %928 = vmatprep.subr.mxu0 0.0
    %929 = vmatpush2.msra.mxu0 0.0
    %930 = vmatprep.subr.mxu0 0.0
    %931 = vmatpush2.msra.mxu0 0.0
    %932 = vmatprep.subr.mxu0 0.0
    %933 = vmatpush2.msra.mxu0 0.0
    %934 = vmatprep.subr.mxu0 0.0
    %935 = vmatpush2.msra.mxu0 0.0
    %936 = vmatprep.mubr.f32.mxu0 0.0
    %937 = vmatmul.mubr.f32.gmra.mxu0 %v636
    %v938 = vpop.f32.mrf.mxu0
    %v939 = vadd.f32 0.0, %v938
    %v940 = vpop.f32.mrf.mxu0
    %941 = vdwg.mxu0
    %943 = vrot.lane.b32.xlu0 %v939, 96
    %v944 = vpop.permute.xlu0 %943
    %v946 = vadd.f32 %v158, %v944
    %v947 = vxor.u32 %v946, 2147483648
    %v948 = vmul.f32 %v947, 1.442695
    %v949 = vpow.pop %v948
    %v950 = vadd.f32 %v949, 1.0
    %v951 = vrcp.pop %v950
    %v952 = vmul.f32 1.0, %v951
    %v953 = vmul.f32 %v795, %v552
    %955 = vrot.lane.b32.xlu0 %v871, 64
    %v956 = vpop.permute.xlu0 %955
    %v958 = vmul.f32 %v714, %v956
    %960 = vrot.lane.b32.xlu0 %v958, 32
    %v961 = vpop.permute.xlu0 %960
    %v963 = vadd.f32 %v953, %v961
    %v964 = vtanh.pop %v963
    %966 = vrot.lane.b32.xlu0 %v964, 64
    %v967 = vpop.permute.xlu0 %966
    %v969 = vmul.f32 %v952, %v967
    %971 = vrot.lane.b32.xlu0 %v969, 32
    %v972 = vpop.permute.xlu0 %971
    %v973 = vsel %vm223, %v972, 0
    %975 = vmatprep.subr.mxu0 0.0
    %976 = vmatpush1.msra.mxu0 0.0
    %977 = vmatprep.subr.mxu0 0.0
    %978 = vmatpush1.msra.mxu0 0.0
    %979 = vmatprep.subr.mxu0 0.0
    %980 = vmatpush1.msra.mxu0 0.0
    %981 = vmatprep.subr.mxu0 0.0
    %982 = vmatpush1.msra.mxu0 0.0
    %983 = vmatprep.subr.mxu0 0.0
    %984 = vmatpush1.msra.mxu0 0.0
    %985 = vmatprep.subr.mxu0 0.0
    %986 = vmatpush1.msra.mxu0 0.0
    %987 = vmatprep.subr.mxu0 0.0
    %988 = vmatpush1.msra.mxu0 0.0
    %989 = vmatprep.subr.mxu0 0.0
    %990 = vmatpush1.msra.mxu0 0.0
    %991 = vmatprep.subr.mxu0 0.0
    %992 = vmatpush1.msra.mxu0 0.0
    %993 = vmatprep.subr.mxu0 0.0
    %994 = vmatpush1.msra.mxu0 0.0
    %995 = vmatprep.subr.mxu0 0.0
    %996 = vmatpush1.msra.mxu0 0.0
    %997 = vmatprep.subr.mxu0 0.0
    %998 = vmatpush1.msra.mxu0 0.0
    %999 = vmatprep.subr.mxu0 0.0
    %1000 = vmatpush1.msra.mxu0 %v210
    %1001 = vmatprep.subr.mxu0 0.0
    %1002 = vmatpush1.msra.mxu0 %v209
    %1003 = vmatprep.subr.mxu0 0.0
    %1004 = vmatpush1.msra.mxu0 %v208
    %1005 = vmatprep.subr.mxu0 0.0
    %1006 = vmatpush1.msra.mxu0 %v207
    %1007 = vmatprep.subr.mxu0 0.0
    %1008 = vmatpush2.msra.mxu0 0.0
    %1009 = vmatprep.subr.mxu0 0.0
    %1010 = vmatpush2.msra.mxu0 0.0
    %1011 = vmatprep.subr.mxu0 0.0
    %1012 = vmatpush2.msra.mxu0 0.0
    %1013 = vmatprep.subr.mxu0 0.0
    %1014 = vmatpush2.msra.mxu0 0.0
    %1015 = vmatprep.subr.mxu0 0.0
    %1016 = vmatpush2.msra.mxu0 0.0
    %1017 = vmatprep.subr.mxu0 0.0
    %1018 = vmatpush2.msra.mxu0 0.0
    %1019 = vmatprep.subr.mxu0 0.0
    %1020 = vmatpush2.msra.mxu0 0.0
    %1021 = vmatprep.subr.mxu0 0.0
    %1022 = vmatpush2.msra.mxu0 0.0
    %1023 = vmatprep.subr.mxu0 0.0
    %1024 = vmatpush2.msra.mxu0 0.0
    %1025 = vmatprep.subr.mxu0 0.0
    %1026 = vmatpush2.msra.mxu0 0.0
    %1027 = vmatprep.subr.mxu0 0.0
    %1028 = vmatpush2.msra.mxu0 0.0
    %1029 = vmatprep.subr.mxu0 0.0
    %1030 = vmatpush2.msra.mxu0 0.0
    %1031 = vmatprep.subr.mxu0 0.0
    %1032 = vmatpush2.msra.mxu0 0.0
    %1033 = vmatprep.subr.mxu0 0.0
    %1034 = vmatpush2.msra.mxu0 0.0
    %1035 = vmatprep.subr.mxu0 0.0
    %1036 = vmatpush2.msra.mxu0 0.0
    %1037 = vmatprep.subr.mxu0 0.0
    %1038 = vmatpush2.msra.mxu0 0.0
    %1039 = vmatprep.mubr.f32.mxu0 0.0
    %1040 = vmatmul.mubr.f32.gmra.mxu0 %v973
    %v1041 = vpop.f32.mrf.mxu0
    %v1042 = vadd.f32 %v216, %v1041
    %v1043 = vpop.f32.mrf.mxu0
    %1044 = vdwg.mxu0
    %v1045 = vtanh.pop %v1042
    %v1047 = vsel %vm223, %v1045, 0
    %1049 = vmatprep.subr.mxu0 0.0
    %1050 = vmatpush1.msra.mxu0 0.0
    %1051 = vmatprep.subr.mxu0 0.0
    %1052 = vmatpush1.msra.mxu0 0.0
    %1053 = vmatprep.subr.mxu0 0.0
    %1054 = vmatpush1.msra.mxu0 0.0
    %1055 = vmatprep.subr.mxu0 0.0
    %1056 = vmatpush1.msra.mxu0 0.0
    %1057 = vmatprep.subr.mxu0 0.0
    %1058 = vmatpush1.msra.mxu0 0.0
    %1059 = vmatprep.subr.mxu0 0.0
    %1060 = vmatpush1.msra.mxu0 0.0
    %1061 = vmatprep.subr.mxu0 0.0
    %1062 = vmatpush1.msra.mxu0 0.0
    %1063 = vmatprep.subr.mxu0 0.0
    %1064 = vmatpush1.msra.mxu0 0.0
    %1065 = vmatprep.subr.mxu0 0.0
    %1066 = vmatpush1.msra.mxu0 0.0
    %1067 = vmatprep.subr.mxu0 0.0
    %1068 = vmatpush1.msra.mxu0 0.0
    %1069 = vmatprep.subr.mxu0 0.0
    %1070 = vmatpush1.msra.mxu0 0.0
    %1071 = vmatprep.subr.mxu0 0.0
    %1072 = vmatpush1.msra.mxu0 0.0
    %1073 = vmatprep.subr.mxu0 0.0
    %1074 = vmatpush1.msra.mxu0 %v194
    %1075 = vmatprep.subr.mxu0 0.0
    %1076 = vmatpush1.msra.mxu0 %v193
    %1077 = vmatprep.subr.mxu0 0.0
    %1078 = vmatpush1.msra.mxu0 %v192
    %1079 = vmatprep.subr.mxu0 0.0
    %1080 = vmatpush1.msra.mxu0 %v191
    %1081 = vmatprep.subr.mxu0 0.0
    %1082 = vmatpush2.msra.mxu0 0.0
    %1083 = vmatprep.subr.mxu0 0.0
    %1084 = vmatpush2.msra.mxu0 0.0
    %1085 = vmatprep.subr.mxu0 0.0
    %1086 = vmatpush2.msra.mxu0 0.0
    %1087 = vmatprep.subr.mxu0 0.0
    %1088 = vmatpush2.msra.mxu0 0.0
    %1089 = vmatprep.subr.mxu0 0.0
    %1090 = vmatpush2.msra.mxu0 0.0
    %1091 = vmatprep.subr.mxu0 0.0
    %1092 = vmatpush2.msra.mxu0 0.0
    %1093 = vmatprep.subr.mxu0 0.0
    %1094 = vmatpush2.msra.mxu0 0.0
    %1095 = vmatprep.subr.mxu0 0.0
    %1096 = vmatpush2.msra.mxu0 0.0
    %1097 = vmatprep.subr.mxu0 0.0
    %1098 = vmatpush2.msra.mxu0 0.0
    %1099 = vmatprep.subr.mxu0 0.0
    %1100 = vmatpush2.msra.mxu0 0.0
    %1101 = vmatprep.subr.mxu0 0.0
    %1102 = vmatpush2.msra.mxu0 0.0
    %1103 = vmatprep.subr.mxu0 0.0
    %1104 = vmatpush2.msra.mxu0 0.0
    %1105 = vmatprep.subr.mxu0 0.0
    %1106 = vmatpush2.msra.mxu0 0.0
    %1107 = vmatprep.subr.mxu0 0.0
    %1108 = vmatpush2.msra.mxu0 0.0
    %1109 = vmatprep.subr.mxu0 0.0
    %1110 = vmatpush2.msra.mxu0 0.0
    %1111 = vmatprep.subr.mxu0 0.0
    %1112 = vmatpush2.msra.mxu0 0.0
    %1113 = vmatprep.mubr.f32.mxu0 0.0
    %1114 = vmatmul.mubr.f32.gmra.mxu0 %v1047
    %v1115 = vpop.f32.mrf.mxu0
    %v1116 = vadd.f32 0.0, %v1115
    %v1117 = vpop.f32.mrf.mxu0
    %1118 = vdwg.mxu0
    %v1119 = vadd.f32 %v163, %v1116
    %v1120 = vxor.u32 %v1119, 2147483648
    %v1121 = vmul.f32 %v1120, 1.442695
    %v1122 = vpow.pop %v1121
    %v1123 = vadd.f32 %v1122, 1.0
    %v1124 = vrcp.pop %v1123
    %v1125 = vmul.f32 1.0, %v1124
    %1126 = vmatprep.subr.mxu0 0.0
    %1127 = vmatpush1.msra.mxu0 0.0
    %1128 = vmatprep.subr.mxu0 0.0
    %1129 = vmatpush1.msra.mxu0 0.0
    %1130 = vmatprep.subr.mxu0 0.0
    %1131 = vmatpush1.msra.mxu0 0.0
    %1132 = vmatprep.subr.mxu0 0.0
    %1133 = vmatpush1.msra.mxu0 0.0
    %1134 = vmatprep.subr.mxu0 0.0
    %1135 = vmatpush1.msra.mxu0 0.0
    %1136 = vmatprep.subr.mxu0 0.0
    %1137 = vmatpush1.msra.mxu0 0.0
    %1138 = vmatprep.subr.mxu0 0.0
    %1139 = vmatpush1.msra.mxu0 0.0
    %1140 = vmatprep.subr.mxu0 0.0
    %1141 = vmatpush1.msra.mxu0 0.0
    %1142 = vmatprep.subr.mxu0 0.0
    %1143 = vmatpush1.msra.mxu0 0.0
    %1144 = vmatprep.subr.mxu0 0.0
    %1145 = vmatpush1.msra.mxu0 0.0
    %1146 = vmatprep.subr.mxu0 0.0
    %1147 = vmatpush1.msra.mxu0 0.0
    %1148 = vmatprep.subr.mxu0 0.0
    %1149 = vmatpush1.msra.mxu0 0.0
    %1150 = vmatprep.subr.mxu0 0.0
    %1151 = vmatpush1.msra.mxu0 %v198
    %1152 = vmatprep.subr.mxu0 0.0
    %1153 = vmatpush1.msra.mxu0 %v197
    %1154 = vmatprep.subr.mxu0 0.0
    %1155 = vmatpush1.msra.mxu0 %v196
    %1156 = vmatprep.subr.mxu0 0.0
    %1157 = vmatpush1.msra.mxu0 %v195
    %1158 = vmatprep.subr.mxu0 0.0
    %1159 = vmatpush2.msra.mxu0 0.0
    %1160 = vmatprep.subr.mxu0 0.0
    %1161 = vmatpush2.msra.mxu0 0.0
    %1162 = vmatprep.subr.mxu0 0.0
    %1163 = vmatpush2.msra.mxu0 0.0
    %1164 = vmatprep.subr.mxu0 0.0
    %1165 = vmatpush2.msra.mxu0 0.0
    %1166 = vmatprep.subr.mxu0 0.0
    %1167 = vmatpush2.msra.mxu0 0.0
    %1168 = vmatprep.subr.mxu0 0.0
    %1169 = vmatpush2.msra.mxu0 0.0
    %1170 = vmatprep.subr.mxu0 0.0
    %1171 = vmatpush2.msra.mxu0 0.0
    %1172 = vmatprep.subr.mxu0 0.0
    %1173 = vmatpush2.msra.mxu0 0.0
    %1174 = vmatprep.subr.mxu0 0.0
    %1175 = vmatpush2.msra.mxu0 0.0
    %1176 = vmatprep.subr.mxu0 0.0
    %1177 = vmatpush2.msra.mxu0 0.0
    %1178 = vmatprep.subr.mxu0 0.0
    %1179 = vmatpush2.msra.mxu0 0.0
    %1180 = vmatprep.subr.mxu0 0.0
    %1181 = vmatpush2.msra.mxu0 0.0
    %1182 = vmatprep.subr.mxu0 0.0
    %1183 = vmatpush2.msra.mxu0 0.0
    %1184 = vmatprep.subr.mxu0 0.0
    %1185 = vmatpush2.msra.mxu0 0.0
    %1186 = vmatprep.subr.mxu0 0.0
    %1187 = vmatpush2.msra.mxu0 0.0
    %1188 = vmatprep.subr.mxu0 0.0
    %1189 = vmatpush2.msra.mxu0 0.0
    %1190 = vmatprep.mubr.f32.mxu0 0.0
    %1191 = vmatmul.mubr.f32.gmra.mxu0 %v1047
    %v1192 = vpop.f32.mrf.mxu0
    %v1193 = vadd.f32 0.0, %v1192
    %v1194 = vpop.f32.mrf.mxu0
    %1195 = vdwg.mxu0
    %1197 = vrot.lane.b32.xlu0 %v1193, 32
    %v1198 = vpop.permute.xlu0 %1197
    %v1200 = vadd.f32 %v163, %v1198
    %v1201 = vxor.u32 %v1200, 2147483648
    %v1202 = vmul.f32 %v1201, 1.442695
    %v1203 = vpow.pop %v1202
    %v1204 = vadd.f32 %v1203, 1.0
    %v1205 = vrcp.pop %v1204
    %v1206 = vmul.f32 1.0, %v1205
    %1207 = vmatprep.subr.mxu0 0.0
    %1208 = vmatpush1.msra.mxu0 0.0
    %1209 = vmatprep.subr.mxu0 0.0
    %1210 = vmatpush1.msra.mxu0 0.0
    %1211 = vmatprep.subr.mxu0 0.0
    %1212 = vmatpush1.msra.mxu0 0.0
    %1213 = vmatprep.subr.mxu0 0.0
    %1214 = vmatpush1.msra.mxu0 0.0
    %1215 = vmatprep.subr.mxu0 0.0
    %1216 = vmatpush1.msra.mxu0 0.0
    %1217 = vmatprep.subr.mxu0 0.0
    %1218 = vmatpush1.msra.mxu0 0.0
    %1219 = vmatprep.subr.mxu0 0.0
    %1220 = vmatpush1.msra.mxu0 0.0
    %1221 = vmatprep.subr.mxu0 0.0
    %1222 = vmatpush1.msra.mxu0 0.0
    %1223 = vmatprep.subr.mxu0 0.0
    %1224 = vmatpush1.msra.mxu0 0.0
    %1225 = vmatprep.subr.mxu0 0.0
    %1226 = vmatpush1.msra.mxu0 0.0
    %1227 = vmatprep.subr.mxu0 0.0
    %1228 = vmatpush1.msra.mxu0 0.0
    %1229 = vmatprep.subr.mxu0 0.0
    %1230 = vmatpush1.msra.mxu0 0.0
    %1231 = vmatprep.subr.mxu0 0.0
    %1232 = vmatpush1.msra.mxu0 %v202
    %1233 = vmatprep.subr.mxu0 0.0
    %1234 = vmatpush1.msra.mxu0 %v201
    %1235 = vmatprep.subr.mxu0 0.0
    %1236 = vmatpush1.msra.mxu0 %v200
    %1237 = vmatprep.subr.mxu0 0.0
    %1238 = vmatpush1.msra.mxu0 %v199
    %1239 = vmatprep.subr.mxu0 0.0
    %1240 = vmatpush2.msra.mxu0 0.0
    %1241 = vmatprep.subr.mxu0 0.0
    %1242 = vmatpush2.msra.mxu0 0.0
    %1243 = vmatprep.subr.mxu0 0.0
    %1244 = vmatpush2.msra.mxu0 0.0
    %1245 = vmatprep.subr.mxu0 0.0
    %1246 = vmatpush2.msra.mxu0 0.0
    %1247 = vmatprep.subr.mxu0 0.0
    %1248 = vmatpush2.msra.mxu0 0.0
    %1249 = vmatprep.subr.mxu0 0.0
    %1250 = vmatpush2.msra.mxu0 0.0
    %1251 = vmatprep.subr.mxu0 0.0
    %1252 = vmatpush2.msra.mxu0 0.0
    %1253 = vmatprep.subr.mxu0 0.0
    %1254 = vmatpush2.msra.mxu0 0.0
    %1255 = vmatprep.subr.mxu0 0.0
    %1256 = vmatpush2.msra.mxu0 0.0
    %1257 = vmatprep.subr.mxu0 0.0
    %1258 = vmatpush2.msra.mxu0 0.0
    %1259 = vmatprep.subr.mxu0 0.0
    %1260 = vmatpush2.msra.mxu0 0.0
    %1261 = vmatprep.subr.mxu0 0.0
    %1262 = vmatpush2.msra.mxu0 0.0
    %1263 = vmatprep.subr.mxu0 0.0
    %1264 = vmatpush2.msra.mxu0 0.0
    %1265 = vmatprep.subr.mxu0 0.0
    %1266 = vmatpush2.msra.mxu0 0.0
    %1267 = vmatprep.subr.mxu0 0.0
    %1268 = vmatpush2.msra.mxu0 0.0
    %1269 = vmatprep.subr.mxu0 0.0
    %1270 = vmatpush2.msra.mxu0 0.0
    %1271 = vmatprep.mubr.f32.mxu0 0.0
    %1272 = vmatmul.mubr.f32.gmra.mxu0 %v1047
    %v1273 = vpop.f32.mrf.mxu0
    %v1274 = vadd.f32 0.0, %v1273
    %v1275 = vpop.f32.mrf.mxu0
    %1276 = vdwg.mxu0
    %1278 = vrot.lane.b32.xlu0 %v1274, 64
    %v1279 = vpop.permute.xlu0 %1278
    %v1281 = vadd.f32 %v163, %v1279
    %v1282 = vtanh.pop %v1281
    %1283 = vmatprep.subr.mxu0 0.0
    %1284 = vmatpush1.msra.mxu0 0.0
    %1285 = vmatprep.subr.mxu0 0.0
    %1286 = vmatpush1.msra.mxu0 0.0
    %1287 = vmatprep.subr.mxu0 0.0
    %1288 = vmatpush1.msra.mxu0 0.0
    %1289 = vmatprep.subr.mxu0 0.0
    %1290 = vmatpush1.msra.mxu0 0.0
    %1291 = vmatprep.subr.mxu0 0.0
    %1292 = vmatpush1.msra.mxu0 0.0
    %1293 = vmatprep.subr.mxu0 0.0
    %1294 = vmatpush1.msra.mxu0 0.0
    %1295 = vmatprep.subr.mxu0 0.0
    %1296 = vmatpush1.msra.mxu0 0.0
    %1297 = vmatprep.subr.mxu0 0.0
    %1298 = vmatpush1.msra.mxu0 0.0
    %1299 = vmatprep.subr.mxu0 0.0
    %1300 = vmatpush1.msra.mxu0 0.0
    %1301 = vmatprep.subr.mxu0 0.0
    %1302 = vmatpush1.msra.mxu0 0.0
    %1303 = vmatprep.subr.mxu0 0.0
    %1304 = vmatpush1.msra.mxu0 0.0
    %1305 = vmatprep.subr.mxu0 0.0
    %1306 = vmatpush1.msra.mxu0 0.0
    %1307 = vmatprep.subr.mxu0 0.0
    %1308 = vmatpush1.msra.mxu0 %v206
    %1309 = vmatprep.subr.mxu0 0.0
    %1310 = vmatpush1.msra.mxu0 %v205
    %1311 = vmatprep.subr.mxu0 0.0
    %1312 = vmatpush1.msra.mxu0 %v204
    %1313 = vmatprep.subr.mxu0 0.0
    %1314 = vmatpush1.msra.mxu0 %v203
    %1315 = vmatprep.subr.mxu0 0.0
    %1316 = vmatpush2.msra.mxu0 0.0
    %1317 = vmatprep.subr.mxu0 0.0
    %1318 = vmatpush2.msra.mxu0 0.0
    %1319 = vmatprep.subr.mxu0 0.0
    %1320 = vmatpush2.msra.mxu0 0.0
    %1321 = vmatprep.subr.mxu0 0.0
    %1322 = vmatpush2.msra.mxu0 0.0
    %1323 = vmatprep.subr.mxu0 0.0
    %1324 = vmatpush2.msra.mxu0 0.0
    %1325 = vmatprep.subr.mxu0 0.0
    %1326 = vmatpush2.msra.mxu0 0.0
    %1327 = vmatprep.subr.mxu0 0.0
    %1328 = vmatpush2.msra.mxu0 0.0
    %1329 = vmatprep.subr.mxu0 0.0
    %1330 = vmatpush2.msra.mxu0 0.0
    %1331 = vmatprep.subr.mxu0 0.0
    %1332 = vmatpush2.msra.mxu0 0.0
    %1333 = vmatprep.subr.mxu0 0.0
    %1334 = vmatpush2.msra.mxu0 0.0
    %1335 = vmatprep.subr.mxu0 0.0
    %1336 = vmatpush2.msra.mxu0 0.0
    %1337 = vmatprep.subr.mxu0 0.0
    %1338 = vmatpush2.msra.mxu0 0.0
    %1339 = vmatprep.subr.mxu0 0.0
    %1340 = vmatpush2.msra.mxu0 0.0
    %1341 = vmatprep.subr.mxu0 0.0
    %1342 = vmatpush2.msra.mxu0 0.0
    %1343 = vmatprep.subr.mxu0 0.0
    %1344 = vmatpush2.msra.mxu0 0.0
    %1345 = vmatprep.subr.mxu0 0.0
    %1346 = vmatpush2.msra.mxu0 0.0
    %1347 = vmatprep.mubr.f32.mxu0 0.0
    %1348 = vmatmul.mubr.f32.gmra.mxu0 %v1047
    %v1349 = vpop.f32.mrf.mxu0
    %v1350 = vadd.f32 0.0, %v1349
    %v1351 = vpop.f32.mrf.mxu0
    %1352 = vdwg.mxu0
    %1354 = vrot.lane.b32.xlu0 %v1350, 96
    %v1355 = vpop.permute.xlu0 %1354
    %v1357 = vadd.f32 %v163, %v1355
    %v1358 = vxor.u32 %v1357, 2147483648
    %v1359 = vmul.f32 %v1358, 1.442695
    %v1360 = vpow.pop %v1359
    %v1361 = vadd.f32 %v1360, 1.0
    %v1362 = vrcp.pop %v1361
    %v1363 = vmul.f32 1.0, %v1362
    %v1364 = vmul.f32 %v1206, %v963
    %1366 = vrot.lane.b32.xlu0 %v1282, 64
    %v1367 = vpop.permute.xlu0 %1366
    %v1369 = vmul.f32 %v1125, %v1367
    %1371 = vrot.lane.b32.xlu0 %v1369, 32
    %v1372 = vpop.permute.xlu0 %1371
    %v1374 = vadd.f32 %v1364, %v1372
    %v1375 = vtanh.pop %v1374
    %1377 = vrot.lane.b32.xlu0 %v1375, 64
    %v1378 = vpop.permute.xlu0 %1377
    %v1380 = vmul.f32 %v1363, %v1378
    %1382 = vrot.lane.b32.xlu0 %v1380, 32
    %v1383 = vpop.permute.xlu0 %1382
    %v1384 = vsel %vm223, %v1383, 0
    %1386 = vmatprep.subr.mxu0 0.0
    %1387 = vmatpush1.msra.mxu0 0.0
    %1388 = vmatprep.subr.mxu0 0.0
    %1389 = vmatpush1.msra.mxu0 0.0
    %1390 = vmatprep.subr.mxu0 0.0
    %1391 = vmatpush1.msra.mxu0 0.0
    %1392 = vmatprep.subr.mxu0 0.0
    %1393 = vmatpush1.msra.mxu0 0.0
    %1394 = vmatprep.subr.mxu0 0.0
    %1395 = vmatpush1.msra.mxu0 0.0
    %1396 = vmatprep.subr.mxu0 0.0
    %1397 = vmatpush1.msra.mxu0 0.0
    %1398 = vmatprep.subr.mxu0 0.0
    %1399 = vmatpush1.msra.mxu0 0.0
    %1400 = vmatprep.subr.mxu0 0.0
    %1401 = vmatpush1.msra.mxu0 0.0
    %1402 = vmatprep.subr.mxu0 0.0
    %1403 = vmatpush1.msra.mxu0 0.0
    %1404 = vmatprep.subr.mxu0 0.0
    %1405 = vmatpush1.msra.mxu0 0.0
    %1406 = vmatprep.subr.mxu0 0.0
    %1407 = vmatpush1.msra.mxu0 0.0
    %1408 = vmatprep.subr.mxu0 0.0
    %1409 = vmatpush1.msra.mxu0 0.0
    %1410 = vmatprep.subr.mxu0 0.0
    %1411 = vmatpush1.msra.mxu0 %v210
    %1412 = vmatprep.subr.mxu0 0.0
    %1413 = vmatpush1.msra.mxu0 %v209
    %1414 = vmatprep.subr.mxu0 0.0
    %1415 = vmatpush1.msra.mxu0 %v208
    %1416 = vmatprep.subr.mxu0 0.0
    %1417 = vmatpush1.msra.mxu0 %v207
    %1418 = vmatprep.subr.mxu0 0.0
    %1419 = vmatpush2.msra.mxu0 0.0
    %1420 = vmatprep.subr.mxu0 0.0
    %1421 = vmatpush2.msra.mxu0 0.0
    %1422 = vmatprep.subr.mxu0 0.0
    %1423 = vmatpush2.msra.mxu0 0.0
    %1424 = vmatprep.subr.mxu0 0.0
    %1425 = vmatpush2.msra.mxu0 0.0
    %1426 = vmatprep.subr.mxu0 0.0
    %1427 = vmatpush2.msra.mxu0 0.0
    %1428 = vmatprep.subr.mxu0 0.0
    %1429 = vmatpush2.msra.mxu0 0.0
    %1430 = vmatprep.subr.mxu0 0.0
    %1431 = vmatpush2.msra.mxu0 0.0
    %1432 = vmatprep.subr.mxu0 0.0
    %1433 = vmatpush2.msra.mxu0 0.0
    %1434 = vmatprep.subr.mxu0 0.0
    %1435 = vmatpush2.msra.mxu0 0.0
    %1436 = vmatprep.subr.mxu0 0.0
    %1437 = vmatpush2.msra.mxu0 0.0
    %1438 = vmatprep.subr.mxu0 0.0
    %1439 = vmatpush2.msra.mxu0 0.0
    %1440 = vmatprep.subr.mxu0 0.0
    %1441 = vmatpush2.msra.mxu0 0.0
    %1442 = vmatprep.subr.mxu0 0.0
    %1443 = vmatpush2.msra.mxu0 0.0
    %1444 = vmatprep.subr.mxu0 0.0
    %1445 = vmatpush2.msra.mxu0 0.0
    %1446 = vmatprep.subr.mxu0 0.0
    %1447 = vmatpush2.msra.mxu0 0.0
    %1448 = vmatprep.subr.mxu0 0.0
    %1449 = vmatpush2.msra.mxu0 0.0
    %1450 = vmatprep.mubr.f32.mxu0 0.0
    %1451 = vmatmul.mubr.f32.gmra.mxu0 %v1384
    %v1452 = vpop.f32.mrf.mxu0
    %v1453 = vadd.f32 %v216, %v1452
    %v1454 = vpop.f32.mrf.mxu0
    %1455 = vdwg.mxu0
    %v1456 = vtanh.pop %v1453
    %v1458 = vsel %vm223, %v1456, 0
    %1460 = vmatprep.subr.mxu0 0.0
    %1461 = vmatpush1.msra.mxu0 0.0
    %1462 = vmatprep.subr.mxu0 0.0
    %1463 = vmatpush1.msra.mxu0 0.0
    %1464 = vmatprep.subr.mxu0 0.0
    %1465 = vmatpush1.msra.mxu0 0.0
    %1466 = vmatprep.subr.mxu0 0.0
    %1467 = vmatpush1.msra.mxu0 0.0
    %1468 = vmatprep.subr.mxu0 0.0
    %1469 = vmatpush1.msra.mxu0 0.0
    %1470 = vmatprep.subr.mxu0 0.0
    %1471 = vmatpush1.msra.mxu0 0.0
    %1472 = vmatprep.subr.mxu0 0.0
    %1473 = vmatpush1.msra.mxu0 0.0
    %1474 = vmatprep.subr.mxu0 0.0
    %1475 = vmatpush1.msra.mxu0 0.0
    %1476 = vmatprep.subr.mxu0 0.0
    %1477 = vmatpush1.msra.mxu0 0.0
    %1478 = vmatprep.subr.mxu0 0.0
    %1479 = vmatpush1.msra.mxu0 0.0
    %1480 = vmatprep.subr.mxu0 0.0
    %1481 = vmatpush1.msra.mxu0 0.0
    %1482 = vmatprep.subr.mxu0 0.0
    %1483 = vmatpush1.msra.mxu0 0.0
    %1484 = vmatprep.subr.mxu0 0.0
    %1485 = vmatpush1.msra.mxu0 %v194
    %1486 = vmatprep.subr.mxu0 0.0
    %1487 = vmatpush1.msra.mxu0 %v193
    %1488 = vmatprep.subr.mxu0 0.0
    %1489 = vmatpush1.msra.mxu0 %v192
    %1490 = vmatprep.subr.mxu0 0.0
    %1491 = vmatpush1.msra.mxu0 %v191
    %1492 = vmatprep.subr.mxu0 0.0
    %1493 = vmatpush2.msra.mxu0 0.0
    %1494 = vmatprep.subr.mxu0 0.0
    %1495 = vmatpush2.msra.mxu0 0.0
    %1496 = vmatprep.subr.mxu0 0.0
    %1497 = vmatpush2.msra.mxu0 0.0
    %1498 = vmatprep.subr.mxu0 0.0
    %1499 = vmatpush2.msra.mxu0 0.0
    %1500 = vmatprep.subr.mxu0 0.0
    %1501 = vmatpush2.msra.mxu0 0.0
    %1502 = vmatprep.subr.mxu0 0.0
    %1503 = vmatpush2.msra.mxu0 0.0
    %1504 = vmatprep.subr.mxu0 0.0
    %1505 = vmatpush2.msra.mxu0 0.0
    %1506 = vmatprep.subr.mxu0 0.0
    %1507 = vmatpush2.msra.mxu0 0.0
    %1508 = vmatprep.subr.mxu0 0.0
    %1509 = vmatpush2.msra.mxu0 0.0
    %1510 = vmatprep.subr.mxu0 0.0
    %1511 = vmatpush2.msra.mxu0 0.0
    %1512 = vmatprep.subr.mxu0 0.0
    %1513 = vmatpush2.msra.mxu0 0.0
    %1514 = vmatprep.subr.mxu0 0.0
    %1515 = vmatpush2.msra.mxu0 0.0
    %1516 = vmatprep.subr.mxu0 0.0
    %1517 = vmatpush2.msra.mxu0 0.0
    %1518 = vmatprep.subr.mxu0 0.0
    %1519 = vmatpush2.msra.mxu0 0.0
    %1520 = vmatprep.subr.mxu0 0.0
    %1521 = vmatpush2.msra.mxu0 0.0
    %1522 = vmatprep.subr.mxu0 0.0
    %1523 = vmatpush2.msra.mxu0 0.0
    %1524 = vmatprep.mubr.f32.mxu0 0.0
    %1525 = vmatmul.mubr.f32.gmra.mxu0 %v1458
    %v1526 = vpop.f32.mrf.mxu0
    %v1527 = vadd.f32 0.0, %v1526
    %v1528 = vpop.f32.mrf.mxu0
    %1529 = vdwg.mxu0
    %v1530 = vadd.f32 %v168, %v1527
    %v1531 = vxor.u32 %v1530, 2147483648
    %v1532 = vmul.f32 %v1531, 1.442695
    %v1533 = vpow.pop %v1532
    %v1534 = vadd.f32 %v1533, 1.0
    %v1535 = vrcp.pop %v1534
    %v1536 = vmul.f32 1.0, %v1535
    %1537 = vmatprep.subr.mxu0 0.0
    %1538 = vmatpush1.msra.mxu0 0.0
    %1539 = vmatprep.subr.mxu0 0.0
    %1540 = vmatpush1.msra.mxu0 0.0
    %1541 = vmatprep.subr.mxu0 0.0
    %1542 = vmatpush1.msra.mxu0 0.0
    %1543 = vmatprep.subr.mxu0 0.0
    %1544 = vmatpush1.msra.mxu0 0.0
    %1545 = vmatprep.subr.mxu0 0.0
    %1546 = vmatpush1.msra.mxu0 0.0
    %1547 = vmatprep.subr.mxu0 0.0
    %1548 = vmatpush1.msra.mxu0 0.0
    %1549 = vmatprep.subr.mxu0 0.0
    %1550 = vmatpush1.msra.mxu0 0.0
    %1551 = vmatprep.subr.mxu0 0.0
    %1552 = vmatpush1.msra.mxu0 0.0
    %1553 = vmatprep.subr.mxu0 0.0
    %1554 = vmatpush1.msra.mxu0 0.0
    %1555 = vmatprep.subr.mxu0 0.0
    %1556 = vmatpush1.msra.mxu0 0.0
    %1557 = vmatprep.subr.mxu0 0.0
    %1558 = vmatpush1.msra.mxu0 0.0
    %1559 = vmatprep.subr.mxu0 0.0
    %1560 = vmatpush1.msra.mxu0 0.0
    %1561 = vmatprep.subr.mxu0 0.0
    %1562 = vmatpush1.msra.mxu0 %v198
    %1563 = vmatprep.subr.mxu0 0.0
    %1564 = vmatpush1.msra.mxu0 %v197
    %1565 = vmatprep.subr.mxu0 0.0
    %1566 = vmatpush1.msra.mxu0 %v196
    %1567 = vmatprep.subr.mxu0 0.0
    %1568 = vmatpush1.msra.mxu0 %v195
    %1569 = vmatprep.subr.mxu0 0.0
    %1570 = vmatpush2.msra.mxu0 0.0
    %1571 = vmatprep.subr.mxu0 0.0
    %1572 = vmatpush2.msra.mxu0 0.0
    %1573 = vmatprep.subr.mxu0 0.0
    %1574 = vmatpush2.msra.mxu0 0.0
    %1575 = vmatprep.subr.mxu0 0.0
    %1576 = vmatpush2.msra.mxu0 0.0
    %1577 = vmatprep.subr.mxu0 0.0
    %1578 = vmatpush2.msra.mxu0 0.0
    %1579 = vmatprep.subr.mxu0 0.0
    %1580 = vmatpush2.msra.mxu0 0.0
    %1581 = vmatprep.subr.mxu0 0.0
    %1582 = vmatpush2.msra.mxu0 0.0
    %1583 = vmatprep.subr.mxu0 0.0
    %1584 = vmatpush2.msra.mxu0 0.0
    %1585 = vmatprep.subr.mxu0 0.0
    %1586 = vmatpush2.msra.mxu0 0.0
    %1587 = vmatprep.subr.mxu0 0.0
    %1588 = vmatpush2.msra.mxu0 0.0
    %1589 = vmatprep.subr.mxu0 0.0
    %1590 = vmatpush2.msra.mxu0 0.0
    %1591 = vmatprep.subr.mxu0 0.0
    %1592 = vmatpush2.msra.mxu0 0.0
    %1593 = vmatprep.subr.mxu0 0.0
    %1594 = vmatpush2.msra.mxu0 0.0
    %1595 = vmatprep.subr.mxu0 0.0
    %1596 = vmatpush2.msra.mxu0 0.0
    %1597 = vmatprep.subr.mxu0 0.0
    %1598 = vmatpush2.msra.mxu0 0.0
    %1599 = vmatprep.subr.mxu0 0.0
    %1600 = vmatpush2.msra.mxu0 0.0
    %1601 = vmatprep.mubr.f32.mxu0 0.0
    %1602 = vmatmul.mubr.f32.gmra.mxu0 %v1458
    %v1603 = vpop.f32.mrf.mxu0
    %v1604 = vadd.f32 0.0, %v1603
    %v1605 = vpop.f32.mrf.mxu0
    %1606 = vdwg.mxu0
    %1608 = vrot.lane.b32.xlu0 %v1604, 32
    %v1609 = vpop.permute.xlu0 %1608
    %v1611 = vadd.f32 %v168, %v1609
    %v1612 = vxor.u32 %v1611, 2147483648
    %v1613 = vmul.f32 %v1612, 1.442695
    %v1614 = vpow.pop %v1613
    %v1615 = vadd.f32 %v1614, 1.0
    %v1616 = vrcp.pop %v1615
    %v1617 = vmul.f32 1.0, %v1616
    %1618 = vmatprep.subr.mxu0 0.0
    %1619 = vmatpush1.msra.mxu0 0.0
    %1620 = vmatprep.subr.mxu0 0.0
    %1621 = vmatpush1.msra.mxu0 0.0
    %1622 = vmatprep.subr.mxu0 0.0
    %1623 = vmatpush1.msra.mxu0 0.0
    %1624 = vmatprep.subr.mxu0 0.0
    %1625 = vmatpush1.msra.mxu0 0.0
    %1626 = vmatprep.subr.mxu0 0.0
    %1627 = vmatpush1.msra.mxu0 0.0
    %1628 = vmatprep.subr.mxu0 0.0
    %1629 = vmatpush1.msra.mxu0 0.0
    %1630 = vmatprep.subr.mxu0 0.0
    %1631 = vmatpush1.msra.mxu0 0.0
    %1632 = vmatprep.subr.mxu0 0.0
    %1633 = vmatpush1.msra.mxu0 0.0
    %1634 = vmatprep.subr.mxu0 0.0
    %1635 = vmatpush1.msra.mxu0 0.0
    %1636 = vmatprep.subr.mxu0 0.0
    %1637 = vmatpush1.msra.mxu0 0.0
    %1638 = vmatprep.subr.mxu0 0.0
    %1639 = vmatpush1.msra.mxu0 0.0
    %1640 = vmatprep.subr.mxu0 0.0
    %1641 = vmatpush1.msra.mxu0 0.0
    %1642 = vmatprep.subr.mxu0 0.0
    %1643 = vmatpush1.msra.mxu0 %v202
    %1644 = vmatprep.subr.mxu0 0.0
    %1645 = vmatpush1.msra.mxu0 %v201
    %1646 = vmatprep.subr.mxu0 0.0
    %1647 = vmatpush1.msra.mxu0 %v200
    %1648 = vmatprep.subr.mxu0 0.0
    %1649 = vmatpush1.msra.mxu0 %v199
    %1650 = vmatprep.subr.mxu0 0.0
    %1651 = vmatpush2.msra.mxu0 0.0
    %1652 = vmatprep.subr.mxu0 0.0
    %1653 = vmatpush2.msra.mxu0 0.0
    %1654 = vmatprep.subr.mxu0 0.0
    %1655 = vmatpush2.msra.mxu0 0.0
    %1656 = vmatprep.subr.mxu0 0.0
    %1657 = vmatpush2.msra.mxu0 0.0
    %1658 = vmatprep.subr.mxu0 0.0
    %1659 = vmatpush2.msra.mxu0 0.0
    %1660 = vmatprep.subr.mxu0 0.0
    %1661 = vmatpush2.msra.mxu0 0.0
    %1662 = vmatprep.subr.mxu0 0.0
    %1663 = vmatpush2.msra.mxu0 0.0
    %1664 = vmatprep.subr.mxu0 0.0
    %1665 = vmatpush2.msra.mxu0 0.0
    %1666 = vmatprep.subr.mxu0 0.0
    %1667 = vmatpush2.msra.mxu0 0.0
    %1668 = vmatprep.subr.mxu0 0.0
    %1669 = vmatpush2.msra.mxu0 0.0
    %1670 = vmatprep.subr.mxu0 0.0
    %1671 = vmatpush2.msra.mxu0 0.0
    %1672 = vmatprep.subr.mxu0 0.0
    %1673 = vmatpush2.msra.mxu0 0.0
    %1674 = vmatprep.subr.mxu0 0.0
    %1675 = vmatpush2.msra.mxu0 0.0
    %1676 = vmatprep.subr.mxu0 0.0
    %1677 = vmatpush2.msra.mxu0 0.0
    %1678 = vmatprep.subr.mxu0 0.0
    %1679 = vmatpush2.msra.mxu0 0.0
    %1680 = vmatprep.subr.mxu0 0.0
    %1681 = vmatpush2.msra.mxu0 0.0
    %1682 = vmatprep.mubr.f32.mxu0 0.0
    %1683 = vmatmul.mubr.f32.gmra.mxu0 %v1458
    %v1684 = vpop.f32.mrf.mxu0
    %v1685 = vadd.f32 0.0, %v1684
    %v1686 = vpop.f32.mrf.mxu0
    %1687 = vdwg.mxu0
    %1689 = vrot.lane.b32.xlu0 %v1685, 64
    %v1690 = vpop.permute.xlu0 %1689
    %v1692 = vadd.f32 %v168, %v1690
    %v1693 = vtanh.pop %v1692
    %1694 = vmatprep.subr.mxu0 0.0
    %1695 = vmatpush1.msra.mxu0 0.0
    %1696 = vmatprep.subr.mxu0 0.0
    %1697 = vmatpush1.msra.mxu0 0.0
    %1698 = vmatprep.subr.mxu0 0.0
    %1699 = vmatpush1.msra.mxu0 0.0
    %1700 = vmatprep.subr.mxu0 0.0
    %1701 = vmatpush1.msra.mxu0 0.0
    %1702 = vmatprep.subr.mxu0 0.0
    %1703 = vmatpush1.msra.mxu0 0.0
    %1704 = vmatprep.subr.mxu0 0.0
    %1705 = vmatpush1.msra.mxu0 0.0
    %1706 = vmatprep.subr.mxu0 0.0
    %1707 = vmatpush1.msra.mxu0 0.0
    %1708 = vmatprep.subr.mxu0 0.0
    %1709 = vmatpush1.msra.mxu0 0.0
    %1710 = vmatprep.subr.mxu0 0.0
    %1711 = vmatpush1.msra.mxu0 0.0
    %1712 = vmatprep.subr.mxu0 0.0
    %1713 = vmatpush1.msra.mxu0 0.0
    %1714 = vmatprep.subr.mxu0 0.0
    %1715 = vmatpush1.msra.mxu0 0.0
    %1716 = vmatprep.subr.mxu0 0.0
    %1717 = vmatpush1.msra.mxu0 0.0
    %1718 = vmatprep.subr.mxu0 0.0
    %1719 = vmatpush1.msra.mxu0 %v206
    %1720 = vmatprep.subr.mxu0 0.0
    %1721 = vmatpush1.msra.mxu0 %v205
    %1722 = vmatprep.subr.mxu0 0.0
    %1723 = vmatpush1.msra.mxu0 %v204
    %1724 = vmatprep.subr.mxu0 0.0
    %1725 = vmatpush1.msra.mxu0 %v203
    %1726 = vmatprep.subr.mxu0 0.0
    %1727 = vmatpush2.msra.mxu0 0.0
    %1728 = vmatprep.subr.mxu0 0.0
    %1729 = vmatpush2.msra.mxu0 0.0
    %1730 = vmatprep.subr.mxu0 0.0
    %1731 = vmatpush2.msra.mxu0 0.0
    %1732 = vmatprep.subr.mxu0 0.0
    %1733 = vmatpush2.msra.mxu0 0.0
    %1734 = vmatprep.subr.mxu0 0.0
    %1735 = vmatpush2.msra.mxu0 0.0
    %1736 = vmatprep.subr.mxu0 0.0
    %1737 = vmatpush2.msra.mxu0 0.0
    %1738 = vmatprep.subr.mxu0 0.0
    %1739 = vmatpush2.msra.mxu0 0.0
    %1740 = vmatprep.subr.mxu0 0.0
    %1741 = vmatpush2.msra.mxu0 0.0
    %1742 = vmatprep.subr.mxu0 0.0
    %1743 = vmatpush2.msra.mxu0 0.0
    %1744 = vmatprep.subr.mxu0 0.0
    %1745 = vmatpush2.msra.mxu0 0.0
    %1746 = vmatprep.subr.mxu0 0.0
    %1747 = vmatpush2.msra.mxu0 0.0
    %1748 = vmatprep.subr.mxu0 0.0
    %1749 = vmatpush2.msra.mxu0 0.0
    %1750 = vmatprep.subr.mxu0 0.0
    %1751 = vmatpush2.msra.mxu0 0.0
    %1752 = vmatprep.subr.mxu0 0.0
    %1753 = vmatpush2.msra.mxu0 0.0
    %1754 = vmatprep.subr.mxu0 0.0
    %1755 = vmatpush2.msra.mxu0 0.0
    %1756 = vmatprep.subr.mxu0 0.0
    %1757 = vmatpush2.msra.mxu0 0.0
    %1758 = vmatprep.mubr.f32.mxu0 0.0
    %1759 = vmatmul.mubr.f32.gmra.mxu0 %v1458
    %v1760 = vpop.f32.mrf.mxu0
    %v1761 = vadd.f32 0.0, %v1760
    %v1762 = vpop.f32.mrf.mxu0
    %1763 = vdwg.mxu0
    %1765 = vrot.lane.b32.xlu0 %v1761, 96
    %v1766 = vpop.permute.xlu0 %1765
    %v1768 = vadd.f32 %v168, %v1766
    %v1769 = vxor.u32 %v1768, 2147483648
    %v1770 = vmul.f32 %v1769, 1.442695
    %v1771 = vpow.pop %v1770
    %v1772 = vadd.f32 %v1771, 1.0
    %v1773 = vrcp.pop %v1772
    %v1774 = vmul.f32 1.0, %v1773
    %v1775 = vmul.f32 %v1617, %v1374
    %1777 = vrot.lane.b32.xlu0 %v1693, 64
    %v1778 = vpop.permute.xlu0 %1777
    %v1780 = vmul.f32 %v1536, %v1778
    %1782 = vrot.lane.b32.xlu0 %v1780, 32
    %v1783 = vpop.permute.xlu0 %1782
    %v1785 = vadd.f32 %v1775, %v1783
    %v1786 = vtanh.pop %v1785
    %1788 = vrot.lane.b32.xlu0 %v1786, 64
    %v1789 = vpop.permute.xlu0 %1788
    %v1791 = vmul.f32 %v1774, %v1789
    %1793 = vrot.lane.b32.xlu0 %v1791, 32
    %v1794 = vpop.permute.xlu0 %1793
    %v1795 = vsel %vm223, %v1794, 0
    %1797 = vmatprep.subr.mxu0 0.0
    %1798 = vmatpush1.msra.mxu0 0.0
    %1799 = vmatprep.subr.mxu0 0.0
    %1800 = vmatpush1.msra.mxu0 0.0
    %1801 = vmatprep.subr.mxu0 0.0
    %1802 = vmatpush1.msra.mxu0 0.0
    %1803 = vmatprep.subr.mxu0 0.0
    %1804 = vmatpush1.msra.mxu0 0.0
    %1805 = vmatprep.subr.mxu0 0.0
    %1806 = vmatpush1.msra.mxu0 0.0
    %1807 = vmatprep.subr.mxu0 0.0
    %1808 = vmatpush1.msra.mxu0 0.0
    %1809 = vmatprep.subr.mxu0 0.0
    %1810 = vmatpush1.msra.mxu0 0.0
    %1811 = vmatprep.subr.mxu0 0.0
    %1812 = vmatpush1.msra.mxu0 0.0
    %1813 = vmatprep.subr.mxu0 0.0
    %1814 = vmatpush1.msra.mxu0 0.0
    %1815 = vmatprep.subr.mxu0 0.0
    %1816 = vmatpush1.msra.mxu0 0.0
    %1817 = vmatprep.subr.mxu0 0.0
    %1818 = vmatpush1.msra.mxu0 0.0
    %1819 = vmatprep.subr.mxu0 0.0
    %1820 = vmatpush1.msra.mxu0 0.0
    %1821 = vmatprep.subr.mxu0 0.0
    %1822 = vmatpush1.msra.mxu0 %v210
    %1823 = vmatprep.subr.mxu0 0.0
    %1824 = vmatpush1.msra.mxu0 %v209
    %1825 = vmatprep.subr.mxu0 0.0
    %1826 = vmatpush1.msra.mxu0 %v208
    %1827 = vmatprep.subr.mxu0 0.0
    %1828 = vmatpush1.msra.mxu0 %v207
    %1829 = vmatprep.subr.mxu0 0.0
    %1830 = vmatpush2.msra.mxu0 0.0
    %1831 = vmatprep.subr.mxu0 0.0
    %1832 = vmatpush2.msra.mxu0 0.0
    %1833 = vmatprep.subr.mxu0 0.0
    %1834 = vmatpush2.msra.mxu0 0.0
    %1835 = vmatprep.subr.mxu0 0.0
    %1836 = vmatpush2.msra.mxu0 0.0
    %1837 = vmatprep.subr.mxu0 0.0
    %1838 = vmatpush2.msra.mxu0 0.0
    %1839 = vmatprep.subr.mxu0 0.0
    %1840 = vmatpush2.msra.mxu0 0.0
    %1841 = vmatprep.subr.mxu0 0.0
    %1842 = vmatpush2.msra.mxu0 0.0
    %1843 = vmatprep.subr.mxu0 0.0
    %1844 = vmatpush2.msra.mxu0 0.0
    %1845 = vmatprep.subr.mxu0 0.0
    %1846 = vmatpush2.msra.mxu0 0.0
    %1847 = vmatprep.subr.mxu0 0.0
    %1848 = vmatpush2.msra.mxu0 0.0
    %1849 = vmatprep.subr.mxu0 0.0
    %1850 = vmatpush2.msra.mxu0 0.0
    %1851 = vmatprep.subr.mxu0 0.0
    %1852 = vmatpush2.msra.mxu0 0.0
    %1853 = vmatprep.subr.mxu0 0.0
    %1854 = vmatpush2.msra.mxu0 0.0
    %1855 = vmatprep.subr.mxu0 0.0
    %1856 = vmatpush2.msra.mxu0 0.0
    %1857 = vmatprep.subr.mxu0 0.0
    %1858 = vmatpush2.msra.mxu0 0.0
    %1859 = vmatprep.subr.mxu0 0.0
    %1860 = vmatpush2.msra.mxu0 0.0
    %1861 = vmatprep.mubr.f32.mxu0 0.0
    %1862 = vmatmul.mubr.f32.gmra.mxu0 %v1795
    %v1863 = vpop.f32.mrf.mxu0
    %v1864 = vadd.f32 %v216, %v1863
    %v1865 = vpop.f32.mrf.mxu0
    %1866 = vdwg.mxu0
    %v1867 = vtanh.pop %v1864
    %v1869 = vsel %vm223, %v1867, 0
    %1871 = vmatprep.subr.mxu0 0.0
    %1872 = vmatpush1.msra.mxu0 0.0
    %1873 = vmatprep.subr.mxu0 0.0
    %1874 = vmatpush1.msra.mxu0 0.0
    %1875 = vmatprep.subr.mxu0 0.0
    %1876 = vmatpush1.msra.mxu0 0.0
    %1877 = vmatprep.subr.mxu0 0.0
    %1878 = vmatpush1.msra.mxu0 0.0
    %1879 = vmatprep.subr.mxu0 0.0
    %1880 = vmatpush1.msra.mxu0 0.0
    %1881 = vmatprep.subr.mxu0 0.0
    %1882 = vmatpush1.msra.mxu0 0.0
    %1883 = vmatprep.subr.mxu0 0.0
    %1884 = vmatpush1.msra.mxu0 0.0
    %1885 = vmatprep.subr.mxu0 0.0
    %1886 = vmatpush1.msra.mxu0 0.0
    %1887 = vmatprep.subr.mxu0 0.0
    %1888 = vmatpush1.msra.mxu0 0.0
    %1889 = vmatprep.subr.mxu0 0.0
    %1890 = vmatpush1.msra.mxu0 0.0
    %1891 = vmatprep.subr.mxu0 0.0
    %1892 = vmatpush1.msra.mxu0 0.0
    %1893 = vmatprep.subr.mxu0 0.0
    %1894 = vmatpush1.msra.mxu0 0.0
    %1895 = vmatprep.subr.mxu0 0.0
    %1896 = vmatpush1.msra.mxu0 %v194
    %1897 = vmatprep.subr.mxu0 0.0
    %1898 = vmatpush1.msra.mxu0 %v193
    %1899 = vmatprep.subr.mxu0 0.0
    %1900 = vmatpush1.msra.mxu0 %v192
    %1901 = vmatprep.subr.mxu0 0.0
    %1902 = vmatpush1.msra.mxu0 %v191
    %1903 = vmatprep.subr.mxu0 0.0
    %1904 = vmatpush2.msra.mxu0 0.0
    %1905 = vmatprep.subr.mxu0 0.0
    %1906 = vmatpush2.msra.mxu0 0.0
    %1907 = vmatprep.subr.mxu0 0.0
    %1908 = vmatpush2.msra.mxu0 0.0
    %1909 = vmatprep.subr.mxu0 0.0
    %1910 = vmatpush2.msra.mxu0 0.0
    %1911 = vmatprep.subr.mxu0 0.0
    %1912 = vmatpush2.msra.mxu0 0.0
    %1913 = vmatprep.subr.mxu0 0.0
    %1914 = vmatpush2.msra.mxu0 0.0
    %1915 = vmatprep.subr.mxu0 0.0
    %1916 = vmatpush2.msra.mxu0 0.0
    %1917 = vmatprep.subr.mxu0 0.0
    %1918 = vmatpush2.msra.mxu0 0.0
    %1919 = vmatprep.subr.mxu0 0.0
    %1920 = vmatpush2.msra.mxu0 0.0
    %1921 = vmatprep.subr.mxu0 0.0
    %1922 = vmatpush2.msra.mxu0 0.0
    %1923 = vmatprep.subr.mxu0 0.0
    %1924 = vmatpush2.msra.mxu0 0.0
    %1925 = vmatprep.subr.mxu0 0.0
    %1926 = vmatpush2.msra.mxu0 0.0
    %1927 = vmatprep.subr.mxu0 0.0
    %1928 = vmatpush2.msra.mxu0 0.0
    %1929 = vmatprep.subr.mxu0 0.0
    %1930 = vmatpush2.msra.mxu0 0.0
    %1931 = vmatprep.subr.mxu0 0.0
    %1932 = vmatpush2.msra.mxu0 0.0
    %1933 = vmatprep.subr.mxu0 0.0
    %1934 = vmatpush2.msra.mxu0 0.0
    %1935 = vmatprep.mubr.f32.mxu0 0.0
    %1936 = vmatmul.mubr.f32.gmra.mxu0 %v1869
    %v1937 = vpop.f32.mrf.mxu0
    %v1938 = vadd.f32 0.0, %v1937
    %v1939 = vpop.f32.mrf.mxu0
    %1940 = vdwg.mxu0
    %v1941 = vadd.f32 %v173, %v1938
    %v1942 = vxor.u32 %v1941, 2147483648
    %v1943 = vmul.f32 %v1942, 1.442695
    %v1944 = vpow.pop %v1943
    %v1945 = vadd.f32 %v1944, 1.0
    %v1946 = vrcp.pop %v1945
    %v1947 = vmul.f32 1.0, %v1946
    %1948 = vmatprep.subr.mxu0 0.0
    %1949 = vmatpush1.msra.mxu0 0.0
    %1950 = vmatprep.subr.mxu0 0.0
    %1951 = vmatpush1.msra.mxu0 0.0
    %1952 = vmatprep.subr.mxu0 0.0
    %1953 = vmatpush1.msra.mxu0 0.0
    %1954 = vmatprep.subr.mxu0 0.0
    %1955 = vmatpush1.msra.mxu0 0.0
    %1956 = vmatprep.subr.mxu0 0.0
    %1957 = vmatpush1.msra.mxu0 0.0
    %1958 = vmatprep.subr.mxu0 0.0
    %1959 = vmatpush1.msra.mxu0 0.0
    %1960 = vmatprep.subr.mxu0 0.0
    %1961 = vmatpush1.msra.mxu0 0.0
    %1962 = vmatprep.subr.mxu0 0.0
    %1963 = vmatpush1.msra.mxu0 0.0
    %1964 = vmatprep.subr.mxu0 0.0
    %1965 = vmatpush1.msra.mxu0 0.0
    %1966 = vmatprep.subr.mxu0 0.0
    %1967 = vmatpush1.msra.mxu0 0.0
    %1968 = vmatprep.subr.mxu0 0.0
    %1969 = vmatpush1.msra.mxu0 0.0
    %1970 = vmatprep.subr.mxu0 0.0
    %1971 = vmatpush1.msra.mxu0 0.0
    %1972 = vmatprep.subr.mxu0 0.0
    %1973 = vmatpush1.msra.mxu0 %v198
    %1974 = vmatprep.subr.mxu0 0.0
    %1975 = vmatpush1.msra.mxu0 %v197
    %1976 = vmatprep.subr.mxu0 0.0
    %1977 = vmatpush1.msra.mxu0 %v196
    %1978 = vmatprep.subr.mxu0 0.0
    %1979 = vmatpush1.msra.mxu0 %v195
    %1980 = vmatprep.subr.mxu0 0.0
    %1981 = vmatpush2.msra.mxu0 0.0
    %1982 = vmatprep.subr.mxu0 0.0
    %1983 = vmatpush2.msra.mxu0 0.0
    %1984 = vmatprep.subr.mxu0 0.0
    %1985 = vmatpush2.msra.mxu0 0.0
    %1986 = vmatprep.subr.mxu0 0.0
    %1987 = vmatpush2.msra.mxu0 0.0
    %1988 = vmatprep.subr.mxu0 0.0
    %1989 = vmatpush2.msra.mxu0 0.0
    %1990 = vmatprep.subr.mxu0 0.0
    %1991 = vmatpush2.msra.mxu0 0.0
    %1992 = vmatprep.subr.mxu0 0.0
    %1993 = vmatpush2.msra.mxu0 0.0
    %1994 = vmatprep.subr.mxu0 0.0
    %1995 = vmatpush2.msra.mxu0 0.0
    %1996 = vmatprep.subr.mxu0 0.0
    %1997 = vmatpush2.msra.mxu0 0.0
    %1998 = vmatprep.subr.mxu0 0.0
    %1999 = vmatpush2.msra.mxu0 0.0
    %2000 = vmatprep.subr.mxu0 0.0
    %2001 = vmatpush2.msra.mxu0 0.0
    %2002 = vmatprep.subr.mxu0 0.0
    %2003 = vmatpush2.msra.mxu0 0.0
    %2004 = vmatprep.subr.mxu0 0.0
    %2005 = vmatpush2.msra.mxu0 0.0
    %2006 = vmatprep.subr.mxu0 0.0
    %2007 = vmatpush2.msra.mxu0 0.0
    %2008 = vmatprep.subr.mxu0 0.0
    %2009 = vmatpush2.msra.mxu0 0.0
    %2010 = vmatprep.subr.mxu0 0.0
    %2011 = vmatpush2.msra.mxu0 0.0
    %2012 = vmatprep.mubr.f32.mxu0 0.0
    %2013 = vmatmul.mubr.f32.gmra.mxu0 %v1869
    %v2014 = vpop.f32.mrf.mxu0
    %v2015 = vadd.f32 0.0, %v2014
    %v2016 = vpop.f32.mrf.mxu0
    %2017 = vdwg.mxu0
    %2019 = vrot.lane.b32.xlu0 %v2015, 32
    %v2020 = vpop.permute.xlu0 %2019
    %v2022 = vadd.f32 %v173, %v2020
    %v2023 = vxor.u32 %v2022, 2147483648
    %v2024 = vmul.f32 %v2023, 1.442695
    %v2025 = vpow.pop %v2024
    %v2026 = vadd.f32 %v2025, 1.0
    %v2027 = vrcp.pop %v2026
    %v2028 = vmul.f32 1.0, %v2027
    %2029 = vmatprep.subr.mxu0 0.0
    %2030 = vmatpush1.msra.mxu0 0.0
    %2031 = vmatprep.subr.mxu0 0.0
    %2032 = vmatpush1.msra.mxu0 0.0
    %2033 = vmatprep.subr.mxu0 0.0
    %2034 = vmatpush1.msra.mxu0 0.0
    %2035 = vmatprep.subr.mxu0 0.0
    %2036 = vmatpush1.msra.mxu0 0.0
    %2037 = vmatprep.subr.mxu0 0.0
    %2038 = vmatpush1.msra.mxu0 0.0
    %2039 = vmatprep.subr.mxu0 0.0
    %2040 = vmatpush1.msra.mxu0 0.0
    %2041 = vmatprep.subr.mxu0 0.0
    %2042 = vmatpush1.msra.mxu0 0.0
    %2043 = vmatprep.subr.mxu0 0.0
    %2044 = vmatpush1.msra.mxu0 0.0
    %2045 = vmatprep.subr.mxu0 0.0
    %2046 = vmatpush1.msra.mxu0 0.0
    %2047 = vmatprep.subr.mxu0 0.0
    %2048 = vmatpush1.msra.mxu0 0.0
    %2049 = vmatprep.subr.mxu0 0.0
    %2050 = vmatpush1.msra.mxu0 0.0
    %2051 = vmatprep.subr.mxu0 0.0
    %2052 = vmatpush1.msra.mxu0 0.0
    %2053 = vmatprep.subr.mxu0 0.0
    %2054 = vmatpush1.msra.mxu0 %v202
    %2055 = vmatprep.subr.mxu0 0.0
    %2056 = vmatpush1.msra.mxu0 %v201
    %2057 = vmatprep.subr.mxu0 0.0
    %2058 = vmatpush1.msra.mxu0 %v200
    %2059 = vmatprep.subr.mxu0 0.0
    %2060 = vmatpush1.msra.mxu0 %v199
    %2061 = vmatprep.subr.mxu0 0.0
    %2062 = vmatpush2.msra.mxu0 0.0
    %2063 = vmatprep.subr.mxu0 0.0
    %2064 = vmatpush2.msra.mxu0 0.0
    %2065 = vmatprep.subr.mxu0 0.0
    %2066 = vmatpush2.msra.mxu0 0.0
    %2067 = vmatprep.subr.mxu0 0.0
    %2068 = vmatpush2.msra.mxu0 0.0
    %2069 = vmatprep.subr.mxu0 0.0
    %2070 = vmatpush2.msra.mxu0 0.0
    %2071 = vmatprep.subr.mxu0 0.0
    %2072 = vmatpush2.msra.mxu0 0.0
    %2073 = vmatprep.subr.mxu0 0.0
    %2074 = vmatpush2.msra.mxu0 0.0
    %2075 = vmatprep.subr.mxu0 0.0
    %2076 = vmatpush2.msra.mxu0 0.0
    %2077 = vmatprep.subr.mxu0 0.0
    %2078 = vmatpush2.msra.mxu0 0.0
    %2079 = vmatprep.subr.mxu0 0.0
    %2080 = vmatpush2.msra.mxu0 0.0
    %2081 = vmatprep.subr.mxu0 0.0
    %2082 = vmatpush2.msra.mxu0 0.0
    %2083 = vmatprep.subr.mxu0 0.0
    %2084 = vmatpush2.msra.mxu0 0.0
    %2085 = vmatprep.subr.mxu0 0.0
    %2086 = vmatpush2.msra.mxu0 0.0
    %2087 = vmatprep.subr.mxu0 0.0
    %2088 = vmatpush2.msra.mxu0 0.0
    %2089 = vmatprep.subr.mxu0 0.0
    %2090 = vmatpush2.msra.mxu0 0.0
    %2091 = vmatprep.subr.mxu0 0.0
    %2092 = vmatpush2.msra.mxu0 0.0
    %2093 = vmatprep.mubr.f32.mxu0 0.0
    %2094 = vmatmul.mubr.f32.gmra.mxu0 %v1869
    %v2095 = vpop.f32.mrf.mxu0
    %v2096 = vadd.f32 0.0, %v2095
    %v2097 = vpop.f32.mrf.mxu0
    %2098 = vdwg.mxu0
    %2100 = vrot.lane.b32.xlu0 %v2096, 64
    %v2101 = vpop.permute.xlu0 %2100
    %v2103 = vadd.f32 %v173, %v2101
    %v2104 = vtanh.pop %v2103
    %2105 = vmatprep.subr.mxu0 0.0
    %2106 = vmatpush1.msra.mxu0 0.0
    %2107 = vmatprep.subr.mxu0 0.0
    %2108 = vmatpush1.msra.mxu0 0.0
    %2109 = vmatprep.subr.mxu0 0.0
    %2110 = vmatpush1.msra.mxu0 0.0
    %2111 = vmatprep.subr.mxu0 0.0
    %2112 = vmatpush1.msra.mxu0 0.0
    %2113 = vmatprep.subr.mxu0 0.0
    %2114 = vmatpush1.msra.mxu0 0.0
    %2115 = vmatprep.subr.mxu0 0.0
    %2116 = vmatpush1.msra.mxu0 0.0
    %2117 = vmatprep.subr.mxu0 0.0
    %2118 = vmatpush1.msra.mxu0 0.0
    %2119 = vmatprep.subr.mxu0 0.0
    %2120 = vmatpush1.msra.mxu0 0.0
    %2121 = vmatprep.subr.mxu0 0.0
    %2122 = vmatpush1.msra.mxu0 0.0
    %2123 = vmatprep.subr.mxu0 0.0
    %2124 = vmatpush1.msra.mxu0 0.0
    %2125 = vmatprep.subr.mxu0 0.0
    %2126 = vmatpush1.msra.mxu0 0.0
    %2127 = vmatprep.subr.mxu0 0.0
    %2128 = vmatpush1.msra.mxu0 0.0
    %2129 = vmatprep.subr.mxu0 0.0
    %2130 = vmatpush1.msra.mxu0 %v206
    %2131 = vmatprep.subr.mxu0 0.0
    %2132 = vmatpush1.msra.mxu0 %v205
    %2133 = vmatprep.subr.mxu0 0.0
    %2134 = vmatpush1.msra.mxu0 %v204
    %2135 = vmatprep.subr.mxu0 0.0
    %2136 = vmatpush1.msra.mxu0 %v203
    %2137 = vmatprep.subr.mxu0 0.0
    %2138 = vmatpush2.msra.mxu0 0.0
    %2139 = vmatprep.subr.mxu0 0.0
    %2140 = vmatpush2.msra.mxu0 0.0
    %2141 = vmatprep.subr.mxu0 0.0
    %2142 = vmatpush2.msra.mxu0 0.0
    %2143 = vmatprep.subr.mxu0 0.0
    %2144 = vmatpush2.msra.mxu0 0.0
    %2145 = vmatprep.subr.mxu0 0.0
    %2146 = vmatpush2.msra.mxu0 0.0
    %2147 = vmatprep.subr.mxu0 0.0
    %2148 = vmatpush2.msra.mxu0 0.0
    %2149 = vmatprep.subr.mxu0 0.0
    %2150 = vmatpush2.msra.mxu0 0.0
    %2151 = vmatprep.subr.mxu0 0.0
    %2152 = vmatpush2.msra.mxu0 0.0
    %2153 = vmatprep.subr.mxu0 0.0
    %2154 = vmatpush2.msra.mxu0 0.0
    %2155 = vmatprep.subr.mxu0 0.0
    %2156 = vmatpush2.msra.mxu0 0.0
    %2157 = vmatprep.subr.mxu0 0.0
    %2158 = vmatpush2.msra.mxu0 0.0
    %2159 = vmatprep.subr.mxu0 0.0
    %2160 = vmatpush2.msra.mxu0 0.0
    %2161 = vmatprep.subr.mxu0 0.0
    %2162 = vmatpush2.msra.mxu0 0.0
    %2163 = vmatprep.subr.mxu0 0.0
    %2164 = vmatpush2.msra.mxu0 0.0
    %2165 = vmatprep.subr.mxu0 0.0
    %2166 = vmatpush2.msra.mxu0 0.0
    %2167 = vmatprep.subr.mxu0 0.0
    %2168 = vmatpush2.msra.mxu0 0.0
    %2169 = vmatprep.mubr.f32.mxu0 0.0
    %2170 = vmatmul.mubr.f32.gmra.mxu0 %v1869
    %v2171 = vpop.f32.mrf.mxu0
    %v2172 = vadd.f32 0.0, %v2171
    %v2173 = vpop.f32.mrf.mxu0
    %2174 = vdwg.mxu0
    %2176 = vrot.lane.b32.xlu0 %v2172, 96
    %v2177 = vpop.permute.xlu0 %2176
    %v2179 = vadd.f32 %v173, %v2177
    %v2180 = vxor.u32 %v2179, 2147483648
    %v2181 = vmul.f32 %v2180, 1.442695
    %v2182 = vpow.pop %v2181
    %v2183 = vadd.f32 %v2182, 1.0
    %v2184 = vrcp.pop %v2183
    %v2185 = vmul.f32 1.0, %v2184
    %v2186 = vmul.f32 %v2028, %v1785
    %2188 = vrot.lane.b32.xlu0 %v2104, 64
    %v2189 = vpop.permute.xlu0 %2188
    %v2191 = vmul.f32 %v1947, %v2189
    %2193 = vrot.lane.b32.xlu0 %v2191, 32
    %v2194 = vpop.permute.xlu0 %2193
    %v2196 = vadd.f32 %v2186, %v2194
    %v2197 = vtanh.pop %v2196
    %2199 = vrot.lane.b32.xlu0 %v2197, 64
    %v2200 = vpop.permute.xlu0 %2199
    %v2202 = vmul.f32 %v2185, %v2200
    %2204 = vrot.lane.b32.xlu0 %v2202, 32
    %v2205 = vpop.permute.xlu0 %2204
    %v2206 = vsel %vm223, %v2205, 0
    %2208 = vmatprep.subr.mxu0 0.0
    %2209 = vmatpush1.msra.mxu0 0.0
    %2210 = vmatprep.subr.mxu0 0.0
    %2211 = vmatpush1.msra.mxu0 0.0
    %2212 = vmatprep.subr.mxu0 0.0
    %2213 = vmatpush1.msra.mxu0 0.0
    %2214 = vmatprep.subr.mxu0 0.0
    %2215 = vmatpush1.msra.mxu0 0.0
    %2216 = vmatprep.subr.mxu0 0.0
    %2217 = vmatpush1.msra.mxu0 0.0
    %2218 = vmatprep.subr.mxu0 0.0
    %2219 = vmatpush1.msra.mxu0 0.0
    %2220 = vmatprep.subr.mxu0 0.0
    %2221 = vmatpush1.msra.mxu0 0.0
    %2222 = vmatprep.subr.mxu0 0.0
    %2223 = vmatpush1.msra.mxu0 0.0
    %2224 = vmatprep.subr.mxu0 0.0
    %2225 = vmatpush1.msra.mxu0 0.0
    %2226 = vmatprep.subr.mxu0 0.0
    %2227 = vmatpush1.msra.mxu0 0.0
    %2228 = vmatprep.subr.mxu0 0.0
    %2229 = vmatpush1.msra.mxu0 0.0
    %2230 = vmatprep.subr.mxu0 0.0
    %2231 = vmatpush1.msra.mxu0 0.0
    %2232 = vmatprep.subr.mxu0 0.0
    %2233 = vmatpush1.msra.mxu0 %v210
    %2234 = vmatprep.subr.mxu0 0.0
    %2235 = vmatpush1.msra.mxu0 %v209
    %2236 = vmatprep.subr.mxu0 0.0
    %2237 = vmatpush1.msra.mxu0 %v208
    %2238 = vmatprep.subr.mxu0 0.0
    %2239 = vmatpush1.msra.mxu0 %v207
    %2240 = vmatprep.subr.mxu0 0.0
    %2241 = vmatpush2.msra.mxu0 0.0
    %2242 = vmatprep.subr.mxu0 0.0
    %2243 = vmatpush2.msra.mxu0 0.0
    %2244 = vmatprep.subr.mxu0 0.0
    %2245 = vmatpush2.msra.mxu0 0.0
    %2246 = vmatprep.subr.mxu0 0.0
    %2247 = vmatpush2.msra.mxu0 0.0
    %2248 = vmatprep.subr.mxu0 0.0
    %2249 = vmatpush2.msra.mxu0 0.0
    %2250 = vmatprep.subr.mxu0 0.0
    %2251 = vmatpush2.msra.mxu0 0.0
    %2252 = vmatprep.subr.mxu0 0.0
    %2253 = vmatpush2.msra.mxu0 0.0
    %2254 = vmatprep.subr.mxu0 0.0
    %2255 = vmatpush2.msra.mxu0 0.0
    %2256 = vmatprep.subr.mxu0 0.0
    %2257 = vmatpush2.msra.mxu0 0.0
    %2258 = vmatprep.subr.mxu0 0.0
    %2259 = vmatpush2.msra.mxu0 0.0
    %2260 = vmatprep.subr.mxu0 0.0
    %2261 = vmatpush2.msra.mxu0 0.0
    %2262 = vmatprep.subr.mxu0 0.0
    %2263 = vmatpush2.msra.mxu0 0.0
    %2264 = vmatprep.subr.mxu0 0.0
    %2265 = vmatpush2.msra.mxu0 0.0
    %2266 = vmatprep.subr.mxu0 0.0
    %2267 = vmatpush2.msra.mxu0 0.0
    %2268 = vmatprep.subr.mxu0 0.0
    %2269 = vmatpush2.msra.mxu0 0.0
    %2270 = vmatprep.subr.mxu0 0.0
    %2271 = vmatpush2.msra.mxu0 0.0
    %2272 = vmatprep.mubr.f32.mxu0 0.0
    %2273 = vmatmul.mubr.f32.gmra.mxu0 %v2206
    %v2274 = vpop.f32.mrf.mxu0
    %v2275 = vadd.f32 %v216, %v2274
    %v2276 = vpop.f32.mrf.mxu0
    %2277 = vdwg.mxu0
    %v2278 = vtanh.pop %v2275
    %v2280 = vsel %vm223, %v2278, 0
    %2282 = vmatprep.subr.mxu0 0.0
    %2283 = vmatpush1.msra.mxu0 0.0
    %2284 = vmatprep.subr.mxu0 0.0
    %2285 = vmatpush1.msra.mxu0 0.0
    %2286 = vmatprep.subr.mxu0 0.0
    %2287 = vmatpush1.msra.mxu0 0.0
    %2288 = vmatprep.subr.mxu0 0.0
    %2289 = vmatpush1.msra.mxu0 0.0
    %2290 = vmatprep.subr.mxu0 0.0
    %2291 = vmatpush1.msra.mxu0 0.0
    %2292 = vmatprep.subr.mxu0 0.0
    %2293 = vmatpush1.msra.mxu0 0.0
    %2294 = vmatprep.subr.mxu0 0.0
    %2295 = vmatpush1.msra.mxu0 0.0
    %2296 = vmatprep.subr.mxu0 0.0
    %2297 = vmatpush1.msra.mxu0 0.0
    %2298 = vmatprep.subr.mxu0 0.0
    %2299 = vmatpush1.msra.mxu0 0.0
    %2300 = vmatprep.subr.mxu0 0.0
    %2301 = vmatpush1.msra.mxu0 0.0
    %2302 = vmatprep.subr.mxu0 0.0
    %2303 = vmatpush1.msra.mxu0 0.0
    %2304 = vmatprep.subr.mxu0 0.0
    %2305 = vmatpush1.msra.mxu0 0.0
    %2306 = vmatprep.subr.mxu0 0.0
    %2307 = vmatpush1.msra.mxu0 %v194
    %2308 = vmatprep.subr.mxu0 0.0
    %2309 = vmatpush1.msra.mxu0 %v193
    %2310 = vmatprep.subr.mxu0 0.0
    %2311 = vmatpush1.msra.mxu0 %v192
    %2312 = vmatprep.subr.mxu0 0.0
    %2313 = vmatpush1.msra.mxu0 %v191
    %2314 = vmatprep.subr.mxu0 0.0
    %2315 = vmatpush2.msra.mxu0 0.0
    %2316 = vmatprep.subr.mxu0 0.0
    %2317 = vmatpush2.msra.mxu0 0.0
    %2318 = vmatprep.subr.mxu0 0.0
    %2319 = vmatpush2.msra.mxu0 0.0
    %2320 = vmatprep.subr.mxu0 0.0
    %2321 = vmatpush2.msra.mxu0 0.0
    %2322 = vmatprep.subr.mxu0 0.0
    %2323 = vmatpush2.msra.mxu0 0.0
    %2324 = vmatprep.subr.mxu0 0.0
    %2325 = vmatpush2.msra.mxu0 0.0
    %2326 = vmatprep.subr.mxu0 0.0
    %2327 = vmatpush2.msra.mxu0 0.0
    %2328 = vmatprep.subr.mxu0 0.0
    %2329 = vmatpush2.msra.mxu0 0.0
    %2330 = vmatprep.subr.mxu0 0.0
    %2331 = vmatpush2.msra.mxu0 0.0
    %2332 = vmatprep.subr.mxu0 0.0
    %2333 = vmatpush2.msra.mxu0 0.0
    %2334 = vmatprep.subr.mxu0 0.0
    %2335 = vmatpush2.msra.mxu0 0.0
    %2336 = vmatprep.subr.mxu0 0.0
    %2337 = vmatpush2.msra.mxu0 0.0
    %2338 = vmatprep.subr.mxu0 0.0
    %2339 = vmatpush2.msra.mxu0 0.0
    %2340 = vmatprep.subr.mxu0 0.0
    %2341 = vmatpush2.msra.mxu0 0.0
    %2342 = vmatprep.subr.mxu0 0.0
    %2343 = vmatpush2.msra.mxu0 0.0
    %2344 = vmatprep.subr.mxu0 0.0
    %2345 = vmatpush2.msra.mxu0 0.0
    %2346 = vmatprep.mubr.f32.mxu0 0.0
    %2347 = vmatmul.mubr.f32.gmra.mxu0 %v2280
    %v2348 = vpop.f32.mrf.mxu0
    %v2349 = vadd.f32 0.0, %v2348
    %v2350 = vpop.f32.mrf.mxu0
    %2351 = vdwg.mxu0
    %v2352 = vadd.f32 %v178, %v2349
    %v2353 = vxor.u32 %v2352, 2147483648
    %v2354 = vmul.f32 %v2353, 1.442695
    %v2355 = vpow.pop %v2354
    %v2356 = vadd.f32 %v2355, 1.0
    %v2357 = vrcp.pop %v2356
    %v2358 = vmul.f32 1.0, %v2357
    %2359 = vmatprep.subr.mxu0 0.0
    %2360 = vmatpush1.msra.mxu0 0.0
    %2361 = vmatprep.subr.mxu0 0.0
    %2362 = vmatpush1.msra.mxu0 0.0
    %2363 = vmatprep.subr.mxu0 0.0
    %2364 = vmatpush1.msra.mxu0 0.0
    %2365 = vmatprep.subr.mxu0 0.0
    %2366 = vmatpush1.msra.mxu0 0.0
    %2367 = vmatprep.subr.mxu0 0.0
    %2368 = vmatpush1.msra.mxu0 0.0
    %2369 = vmatprep.subr.mxu0 0.0
    %2370 = vmatpush1.msra.mxu0 0.0
    %2371 = vmatprep.subr.mxu0 0.0
    %2372 = vmatpush1.msra.mxu0 0.0
    %2373 = vmatprep.subr.mxu0 0.0
    %2374 = vmatpush1.msra.mxu0 0.0
    %2375 = vmatprep.subr.mxu0 0.0
    %2376 = vmatpush1.msra.mxu0 0.0
    %2377 = vmatprep.subr.mxu0 0.0
    %2378 = vmatpush1.msra.mxu0 0.0
    %2379 = vmatprep.subr.mxu0 0.0
    %2380 = vmatpush1.msra.mxu0 0.0
    %2381 = vmatprep.subr.mxu0 0.0
    %2382 = vmatpush1.msra.mxu0 0.0
    %2383 = vmatprep.subr.mxu0 0.0
    %2384 = vmatpush1.msra.mxu0 %v198
    %2385 = vmatprep.subr.mxu0 0.0
    %2386 = vmatpush1.msra.mxu0 %v197
    %2387 = vmatprep.subr.mxu0 0.0
    %2388 = vmatpush1.msra.mxu0 %v196
    %2389 = vmatprep.subr.mxu0 0.0
    %2390 = vmatpush1.msra.mxu0 %v195
    %2391 = vmatprep.subr.mxu0 0.0
    %2392 = vmatpush2.msra.mxu0 0.0
    %2393 = vmatprep.subr.mxu0 0.0
    %2394 = vmatpush2.msra.mxu0 0.0
    %2395 = vmatprep.subr.mxu0 0.0
    %2396 = vmatpush2.msra.mxu0 0.0
    %2397 = vmatprep.subr.mxu0 0.0
    %2398 = vmatpush2.msra.mxu0 0.0
    %2399 = vmatprep.subr.mxu0 0.0
    %2400 = vmatpush2.msra.mxu0 0.0
    %2401 = vmatprep.subr.mxu0 0.0
    %2402 = vmatpush2.msra.mxu0 0.0
    %2403 = vmatprep.subr.mxu0 0.0
    %2404 = vmatpush2.msra.mxu0 0.0
    %2405 = vmatprep.subr.mxu0 0.0
    %2406 = vmatpush2.msra.mxu0 0.0
    %2407 = vmatprep.subr.mxu0 0.0
    %2408 = vmatpush2.msra.mxu0 0.0
    %2409 = vmatprep.subr.mxu0 0.0
    %2410 = vmatpush2.msra.mxu0 0.0
    %2411 = vmatprep.subr.mxu0 0.0
    %2412 = vmatpush2.msra.mxu0 0.0
    %2413 = vmatprep.subr.mxu0 0.0
    %2414 = vmatpush2.msra.mxu0 0.0
    %2415 = vmatprep.subr.mxu0 0.0
    %2416 = vmatpush2.msra.mxu0 0.0
    %2417 = vmatprep.subr.mxu0 0.0
    %2418 = vmatpush2.msra.mxu0 0.0
    %2419 = vmatprep.subr.mxu0 0.0
    %2420 = vmatpush2.msra.mxu0 0.0
    %2421 = vmatprep.subr.mxu0 0.0
    %2422 = vmatpush2.msra.mxu0 0.0
    %2423 = vmatprep.mubr.f32.mxu0 0.0
    %2424 = vmatmul.mubr.f32.gmra.mxu0 %v2280
    %v2425 = vpop.f32.mrf.mxu0
    %v2426 = vadd.f32 0.0, %v2425
    %v2427 = vpop.f32.mrf.mxu0
    %2428 = vdwg.mxu0
    %2430 = vrot.lane.b32.xlu0 %v2426, 32
    %v2431 = vpop.permute.xlu0 %2430
    %v2433 = vadd.f32 %v178, %v2431
    %v2434 = vxor.u32 %v2433, 2147483648
    %v2435 = vmul.f32 %v2434, 1.442695
    %v2436 = vpow.pop %v2435
    %v2437 = vadd.f32 %v2436, 1.0
    %v2438 = vrcp.pop %v2437
    %v2439 = vmul.f32 1.0, %v2438
    %2440 = vmatprep.subr.mxu0 0.0
    %2441 = vmatpush1.msra.mxu0 0.0
    %2442 = vmatprep.subr.mxu0 0.0
    %2443 = vmatpush1.msra.mxu0 0.0
    %2444 = vmatprep.subr.mxu0 0.0
    %2445 = vmatpush1.msra.mxu0 0.0
    %2446 = vmatprep.subr.mxu0 0.0
    %2447 = vmatpush1.msra.mxu0 0.0
    %2448 = vmatprep.subr.mxu0 0.0
    %2449 = vmatpush1.msra.mxu0 0.0
    %2450 = vmatprep.subr.mxu0 0.0
    %2451 = vmatpush1.msra.mxu0 0.0
    %2452 = vmatprep.subr.mxu0 0.0
    %2453 = vmatpush1.msra.mxu0 0.0
    %2454 = vmatprep.subr.mxu0 0.0
    %2455 = vmatpush1.msra.mxu0 0.0
    %2456 = vmatprep.subr.mxu0 0.0
    %2457 = vmatpush1.msra.mxu0 0.0
    %2458 = vmatprep.subr.mxu0 0.0
    %2459 = vmatpush1.msra.mxu0 0.0
    %2460 = vmatprep.subr.mxu0 0.0
    %2461 = vmatpush1.msra.mxu0 0.0
    %2462 = vmatprep.subr.mxu0 0.0
    %2463 = vmatpush1.msra.mxu0 0.0
    %2464 = vmatprep.subr.mxu0 0.0
    %2465 = vmatpush1.msra.mxu0 %v202
    %2466 = vmatprep.subr.mxu0 0.0
    %2467 = vmatpush1.msra.mxu0 %v201
    %2468 = vmatprep.subr.mxu0 0.0
    %2469 = vmatpush1.msra.mxu0 %v200
    %2470 = vmatprep.subr.mxu0 0.0
    %2471 = vmatpush1.msra.mxu0 %v199
    %2472 = vmatprep.subr.mxu0 0.0
    %2473 = vmatpush2.msra.mxu0 0.0
    %2474 = vmatprep.subr.mxu0 0.0
    %2475 = vmatpush2.msra.mxu0 0.0
    %2476 = vmatprep.subr.mxu0 0.0
    %2477 = vmatpush2.msra.mxu0 0.0
    %2478 = vmatprep.subr.mxu0 0.0
    %2479 = vmatpush2.msra.mxu0 0.0
    %2480 = vmatprep.subr.mxu0 0.0
    %2481 = vmatpush2.msra.mxu0 0.0
    %2482 = vmatprep.subr.mxu0 0.0
    %2483 = vmatpush2.msra.mxu0 0.0
    %2484 = vmatprep.subr.mxu0 0.0
    %2485 = vmatpush2.msra.mxu0 0.0
    %2486 = vmatprep.subr.mxu0 0.0
    %2487 = vmatpush2.msra.mxu0 0.0
    %2488 = vmatprep.subr.mxu0 0.0
    %2489 = vmatpush2.msra.mxu0 0.0
    %2490 = vmatprep.subr.mxu0 0.0
    %2491 = vmatpush2.msra.mxu0 0.0
    %2492 = vmatprep.subr.mxu0 0.0
    %2493 = vmatpush2.msra.mxu0 0.0
    %2494 = vmatprep.subr.mxu0 0.0
    %2495 = vmatpush2.msra.mxu0 0.0
    %2496 = vmatprep.subr.mxu0 0.0
    %2497 = vmatpush2.msra.mxu0 0.0
    %2498 = vmatprep.subr.mxu0 0.0
    %2499 = vmatpush2.msra.mxu0 0.0
    %2500 = vmatprep.subr.mxu0 0.0
    %2501 = vmatpush2.msra.mxu0 0.0
    %2502 = vmatprep.subr.mxu0 0.0
    %2503 = vmatpush2.msra.mxu0 0.0
    %2504 = vmatprep.mubr.f32.mxu0 0.0
    %2505 = vmatmul.mubr.f32.gmra.mxu0 %v2280
    %v2506 = vpop.f32.mrf.mxu0
    %v2507 = vadd.f32 0.0, %v2506
    %v2508 = vpop.f32.mrf.mxu0
    %2509 = vdwg.mxu0
    %2511 = vrot.lane.b32.xlu0 %v2507, 64
    %v2512 = vpop.permute.xlu0 %2511
    %v2514 = vadd.f32 %v178, %v2512
    %v2515 = vtanh.pop %v2514
    %2516 = vmatprep.subr.mxu0 0.0
    %2517 = vmatpush1.msra.mxu0 0.0
    %2518 = vmatprep.subr.mxu0 0.0
    %2519 = vmatpush1.msra.mxu0 0.0
    %2520 = vmatprep.subr.mxu0 0.0
    %2521 = vmatpush1.msra.mxu0 0.0
    %2522 = vmatprep.subr.mxu0 0.0
    %2523 = vmatpush1.msra.mxu0 0.0
    %2524 = vmatprep.subr.mxu0 0.0
    %2525 = vmatpush1.msra.mxu0 0.0
    %2526 = vmatprep.subr.mxu0 0.0
    %2527 = vmatpush1.msra.mxu0 0.0
    %2528 = vmatprep.subr.mxu0 0.0
    %2529 = vmatpush1.msra.mxu0 0.0
    %2530 = vmatprep.subr.mxu0 0.0
    %2531 = vmatpush1.msra.mxu0 0.0
    %2532 = vmatprep.subr.mxu0 0.0
    %2533 = vmatpush1.msra.mxu0 0.0
    %2534 = vmatprep.subr.mxu0 0.0
    %2535 = vmatpush1.msra.mxu0 0.0
    %2536 = vmatprep.subr.mxu0 0.0
    %2537 = vmatpush1.msra.mxu0 0.0
    %2538 = vmatprep.subr.mxu0 0.0
    %2539 = vmatpush1.msra.mxu0 0.0
    %2540 = vmatprep.subr.mxu0 0.0
    %2541 = vmatpush1.msra.mxu0 %v206
    %2542 = vmatprep.subr.mxu0 0.0
    %2543 = vmatpush1.msra.mxu0 %v205
    %2544 = vmatprep.subr.mxu0 0.0
    %2545 = vmatpush1.msra.mxu0 %v204
    %2546 = vmatprep.subr.mxu0 0.0
    %2547 = vmatpush1.msra.mxu0 %v203
    %2548 = vmatprep.subr.mxu0 0.0
    %2549 = vmatpush2.msra.mxu0 0.0
    %2550 = vmatprep.subr.mxu0 0.0
    %2551 = vmatpush2.msra.mxu0 0.0
    %2552 = vmatprep.subr.mxu0 0.0
    %2553 = vmatpush2.msra.mxu0 0.0
    %2554 = vmatprep.subr.mxu0 0.0
    %2555 = vmatpush2.msra.mxu0 0.0
    %2556 = vmatprep.subr.mxu0 0.0
    %2557 = vmatpush2.msra.mxu0 0.0
    %2558 = vmatprep.subr.mxu0 0.0
    %2559 = vmatpush2.msra.mxu0 0.0
    %2560 = vmatprep.subr.mxu0 0.0
    %2561 = vmatpush2.msra.mxu0 0.0
    %2562 = vmatprep.subr.mxu0 0.0
    %2563 = vmatpush2.msra.mxu0 0.0
    %2564 = vmatprep.subr.mxu0 0.0
    %2565 = vmatpush2.msra.mxu0 0.0
    %2566 = vmatprep.subr.mxu0 0.0
    %2567 = vmatpush2.msra.mxu0 0.0
    %2568 = vmatprep.subr.mxu0 0.0
    %2569 = vmatpush2.msra.mxu0 0.0
    %2570 = vmatprep.subr.mxu0 0.0
    %2571 = vmatpush2.msra.mxu0 0.0
    %2572 = vmatprep.subr.mxu0 0.0
    %2573 = vmatpush2.msra.mxu0 0.0
    %2574 = vmatprep.subr.mxu0 0.0
    %2575 = vmatpush2.msra.mxu0 0.0
    %2576 = vmatprep.subr.mxu0 0.0
    %2577 = vmatpush2.msra.mxu0 0.0
    %2578 = vmatprep.subr.mxu0 0.0
    %2579 = vmatpush2.msra.mxu0 0.0
    %2580 = vmatprep.mubr.f32.mxu0 0.0
    %2581 = vmatmul.mubr.f32.gmra.mxu0 %v2280
    %v2582 = vpop.f32.mrf.mxu0
    %v2583 = vadd.f32 0.0, %v2582
    %v2584 = vpop.f32.mrf.mxu0
    %2585 = vdwg.mxu0
    %2587 = vrot.lane.b32.xlu0 %v2583, 96
    %v2588 = vpop.permute.xlu0 %2587
    %v2590 = vadd.f32 %v178, %v2588
    %v2591 = vxor.u32 %v2590, 2147483648
    %v2592 = vmul.f32 %v2591, 1.442695
    %v2593 = vpow.pop %v2592
    %v2594 = vadd.f32 %v2593, 1.0
    %v2595 = vrcp.pop %v2594
    %v2596 = vmul.f32 1.0, %v2595
    %v2597 = vmul.f32 %v2439, %v2196
    %2599 = vrot.lane.b32.xlu0 %v2515, 64
    %v2600 = vpop.permute.xlu0 %2599
    %v2602 = vmul.f32 %v2358, %v2600
    %2604 = vrot.lane.b32.xlu0 %v2602, 32
    %v2605 = vpop.permute.xlu0 %2604
    %v2607 = vadd.f32 %v2597, %v2605
    %v2608 = vtanh.pop %v2607
    %2610 = vrot.lane.b32.xlu0 %v2608, 64
    %v2611 = vpop.permute.xlu0 %2610
    %v2613 = vmul.f32 %v2596, %v2611
    %2615 = vrot.lane.b32.xlu0 %v2613, 32
    %v2616 = vpop.permute.xlu0 %2615
    %v2617 = vsel %vm223, %v2616, 0
    %2619 = vmatprep.subr.mxu0 0.0
    %2620 = vmatpush1.msra.mxu0 0.0
    %2621 = vmatprep.subr.mxu0 0.0
    %2622 = vmatpush1.msra.mxu0 0.0
    %2623 = vmatprep.subr.mxu0 0.0
    %2624 = vmatpush1.msra.mxu0 0.0
    %2625 = vmatprep.subr.mxu0 0.0
    %2626 = vmatpush1.msra.mxu0 0.0
    %2627 = vmatprep.subr.mxu0 0.0
    %2628 = vmatpush1.msra.mxu0 0.0
    %2629 = vmatprep.subr.mxu0 0.0
    %2630 = vmatpush1.msra.mxu0 0.0
    %2631 = vmatprep.subr.mxu0 0.0
    %2632 = vmatpush1.msra.mxu0 0.0
    %2633 = vmatprep.subr.mxu0 0.0
    %2634 = vmatpush1.msra.mxu0 0.0
    %2635 = vmatprep.subr.mxu0 0.0
    %2636 = vmatpush1.msra.mxu0 0.0
    %2637 = vmatprep.subr.mxu0 0.0
    %2638 = vmatpush1.msra.mxu0 0.0
    %2639 = vmatprep.subr.mxu0 0.0
    %2640 = vmatpush1.msra.mxu0 0.0
    %2641 = vmatprep.subr.mxu0 0.0
    %2642 = vmatpush1.msra.mxu0 0.0
    %2643 = vmatprep.subr.mxu0 0.0
    %2644 = vmatpush1.msra.mxu0 %v210
    %2645 = vmatprep.subr.mxu0 0.0
    %2646 = vmatpush1.msra.mxu0 %v209
    %2647 = vmatprep.subr.mxu0 0.0
    %2648 = vmatpush1.msra.mxu0 %v208
    %2649 = vmatprep.subr.mxu0 0.0
    %2650 = vmatpush1.msra.mxu0 %v207
    %2651 = vmatprep.subr.mxu0 0.0
    %2652 = vmatpush2.msra.mxu0 0.0
    %2653 = vmatprep.subr.mxu0 0.0
    %2654 = vmatpush2.msra.mxu0 0.0
    %2655 = vmatprep.subr.mxu0 0.0
    %2656 = vmatpush2.msra.mxu0 0.0
    %2657 = vmatprep.subr.mxu0 0.0
    %2658 = vmatpush2.msra.mxu0 0.0
    %2659 = vmatprep.subr.mxu0 0.0
    %2660 = vmatpush2.msra.mxu0 0.0
    %2661 = vmatprep.subr.mxu0 0.0
    %2662 = vmatpush2.msra.mxu0 0.0
    %2663 = vmatprep.subr.mxu0 0.0
    %2664 = vmatpush2.msra.mxu0 0.0
    %2665 = vmatprep.subr.mxu0 0.0
    %2666 = vmatpush2.msra.mxu0 0.0
    %2667 = vmatprep.subr.mxu0 0.0
    %2668 = vmatpush2.msra.mxu0 0.0
    %2669 = vmatprep.subr.mxu0 0.0
    %2670 = vmatpush2.msra.mxu0 0.0
    %2671 = vmatprep.subr.mxu0 0.0
    %2672 = vmatpush2.msra.mxu0 0.0
    %2673 = vmatprep.subr.mxu0 0.0
    %2674 = vmatpush2.msra.mxu0 0.0
    %2675 = vmatprep.subr.mxu0 0.0
    %2676 = vmatpush2.msra.mxu0 0.0
    %2677 = vmatprep.subr.mxu0 0.0
    %2678 = vmatpush2.msra.mxu0 0.0
    %2679 = vmatprep.subr.mxu0 0.0
    %2680 = vmatpush2.msra.mxu0 0.0
    %2681 = vmatprep.subr.mxu0 0.0
    %2682 = vmatpush2.msra.mxu0 0.0
    %2683 = vmatprep.mubr.f32.mxu0 0.0
    %2684 = vmatmul.mubr.f32.gmra.mxu0 %v2617
    %v2685 = vpop.f32.mrf.mxu0
    %v2686 = vadd.f32 %v216, %v2685
    %v2687 = vpop.f32.mrf.mxu0
    %2688 = vdwg.mxu0
    %v2689 = vtanh.pop %v2686
    %v2691 = vsel %vm223, %v2689, 0
    %2693 = vmatprep.subr.mxu0 0.0
    %2694 = vmatpush1.msra.mxu0 0.0
    %2695 = vmatprep.subr.mxu0 0.0
    %2696 = vmatpush1.msra.mxu0 0.0
    %2697 = vmatprep.subr.mxu0 0.0
    %2698 = vmatpush1.msra.mxu0 0.0
    %2699 = vmatprep.subr.mxu0 0.0
    %2700 = vmatpush1.msra.mxu0 0.0
    %2701 = vmatprep.subr.mxu0 0.0
    %2702 = vmatpush1.msra.mxu0 0.0
    %2703 = vmatprep.subr.mxu0 0.0
    %2704 = vmatpush1.msra.mxu0 0.0
    %2705 = vmatprep.subr.mxu0 0.0
    %2706 = vmatpush1.msra.mxu0 0.0
    %2707 = vmatprep.subr.mxu0 0.0
    %2708 = vmatpush1.msra.mxu0 0.0
    %2709 = vmatprep.subr.mxu0 0.0
    %2710 = vmatpush1.msra.mxu0 0.0
    %2711 = vmatprep.subr.mxu0 0.0
    %2712 = vmatpush1.msra.mxu0 0.0
    %2713 = vmatprep.subr.mxu0 0.0
    %2714 = vmatpush1.msra.mxu0 0.0
    %2715 = vmatprep.subr.mxu0 0.0
    %2716 = vmatpush1.msra.mxu0 0.0
    %2717 = vmatprep.subr.mxu0 0.0
    %2718 = vmatpush1.msra.mxu0 %v194
    %2719 = vmatprep.subr.mxu0 0.0
    %2720 = vmatpush1.msra.mxu0 %v193
    %2721 = vmatprep.subr.mxu0 0.0
    %2722 = vmatpush1.msra.mxu0 %v192
    %2723 = vmatprep.subr.mxu0 0.0
    %2724 = vmatpush1.msra.mxu0 %v191
    %2725 = vmatprep.subr.mxu0 0.0
    %2726 = vmatpush2.msra.mxu0 0.0
    %2727 = vmatprep.subr.mxu0 0.0
    %2728 = vmatpush2.msra.mxu0 0.0
    %2729 = vmatprep.subr.mxu0 0.0
    %2730 = vmatpush2.msra.mxu0 0.0
    %2731 = vmatprep.subr.mxu0 0.0
    %2732 = vmatpush2.msra.mxu0 0.0
    %2733 = vmatprep.subr.mxu0 0.0
    %2734 = vmatpush2.msra.mxu0 0.0
    %2735 = vmatprep.subr.mxu0 0.0
    %2736 = vmatpush2.msra.mxu0 0.0
    %2737 = vmatprep.subr.mxu0 0.0
    %2738 = vmatpush2.msra.mxu0 0.0
    %2739 = vmatprep.subr.mxu0 0.0
    %2740 = vmatpush2.msra.mxu0 0.0
    %2741 = vmatprep.subr.mxu0 0.0
    %2742 = vmatpush2.msra.mxu0 0.0
    %2743 = vmatprep.subr.mxu0 0.0
    %2744 = vmatpush2.msra.mxu0 0.0
    %2745 = vmatprep.subr.mxu0 0.0
    %2746 = vmatpush2.msra.mxu0 0.0
    %2747 = vmatprep.subr.mxu0 0.0
    %2748 = vmatpush2.msra.mxu0 0.0
    %2749 = vmatprep.subr.mxu0 0.0
    %2750 = vmatpush2.msra.mxu0 0.0
    %2751 = vmatprep.subr.mxu0 0.0
    %2752 = vmatpush2.msra.mxu0 0.0
    %2753 = vmatprep.subr.mxu0 0.0
    %2754 = vmatpush2.msra.mxu0 0.0
    %2755 = vmatprep.subr.mxu0 0.0
    %2756 = vmatpush2.msra.mxu0 0.0
    %2757 = vmatprep.mubr.f32.mxu0 0.0
    %2758 = vmatmul.mubr.f32.gmra.mxu0 %v2691
    %v2759 = vpop.f32.mrf.mxu0
    %v2760 = vadd.f32 0.0, %v2759
    %v2761 = vpop.f32.mrf.mxu0
    %2762 = vdwg.mxu0
    %v2763 = vadd.f32 %v183, %v2760
    %v2764 = vxor.u32 %v2763, 2147483648
    %v2765 = vmul.f32 %v2764, 1.442695
    %v2766 = vpow.pop %v2765
    %v2767 = vadd.f32 %v2766, 1.0
    %v2768 = vrcp.pop %v2767
    %v2769 = vmul.f32 1.0, %v2768
    %2770 = vmatprep.subr.mxu0 0.0
    %2771 = vmatpush1.msra.mxu0 0.0
    %2772 = vmatprep.subr.mxu0 0.0
    %2773 = vmatpush1.msra.mxu0 0.0
    %2774 = vmatprep.subr.mxu0 0.0
    %2775 = vmatpush1.msra.mxu0 0.0
    %2776 = vmatprep.subr.mxu0 0.0
    %2777 = vmatpush1.msra.mxu0 0.0
    %2778 = vmatprep.subr.mxu0 0.0
    %2779 = vmatpush1.msra.mxu0 0.0
    %2780 = vmatprep.subr.mxu0 0.0
    %2781 = vmatpush1.msra.mxu0 0.0
    %2782 = vmatprep.subr.mxu0 0.0
    %2783 = vmatpush1.msra.mxu0 0.0
    %2784 = vmatprep.subr.mxu0 0.0
    %2785 = vmatpush1.msra.mxu0 0.0
    %2786 = vmatprep.subr.mxu0 0.0
    %2787 = vmatpush1.msra.mxu0 0.0
    %2788 = vmatprep.subr.mxu0 0.0
    %2789 = vmatpush1.msra.mxu0 0.0
    %2790 = vmatprep.subr.mxu0 0.0
    %2791 = vmatpush1.msra.mxu0 0.0
    %2792 = vmatprep.subr.mxu0 0.0
    %2793 = vmatpush1.msra.mxu0 0.0
    %2794 = vmatprep.subr.mxu0 0.0
    %2795 = vmatpush1.msra.mxu0 %v198
    %2796 = vmatprep.subr.mxu0 0.0
    %2797 = vmatpush1.msra.mxu0 %v197
    %2798 = vmatprep.subr.mxu0 0.0
    %2799 = vmatpush1.msra.mxu0 %v196
    %2800 = vmatprep.subr.mxu0 0.0
    %2801 = vmatpush1.msra.mxu0 %v195
    %2802 = vmatprep.subr.mxu0 0.0
    %2803 = vmatpush2.msra.mxu0 0.0
    %2804 = vmatprep.subr.mxu0 0.0
    %2805 = vmatpush2.msra.mxu0 0.0
    %2806 = vmatprep.subr.mxu0 0.0
    %2807 = vmatpush2.msra.mxu0 0.0
    %2808 = vmatprep.subr.mxu0 0.0
    %2809 = vmatpush2.msra.mxu0 0.0
    %2810 = vmatprep.subr.mxu0 0.0
    %2811 = vmatpush2.msra.mxu0 0.0
    %2812 = vmatprep.subr.mxu0 0.0
    %2813 = vmatpush2.msra.mxu0 0.0
    %2814 = vmatprep.subr.mxu0 0.0
    %2815 = vmatpush2.msra.mxu0 0.0
    %2816 = vmatprep.subr.mxu0 0.0
    %2817 = vmatpush2.msra.mxu0 0.0
    %2818 = vmatprep.subr.mxu0 0.0
    %2819 = vmatpush2.msra.mxu0 0.0
    %2820 = vmatprep.subr.mxu0 0.0
    %2821 = vmatpush2.msra.mxu0 0.0
    %2822 = vmatprep.subr.mxu0 0.0
    %2823 = vmatpush2.msra.mxu0 0.0
    %2824 = vmatprep.subr.mxu0 0.0
    %2825 = vmatpush2.msra.mxu0 0.0
    %2826 = vmatprep.subr.mxu0 0.0
    %2827 = vmatpush2.msra.mxu0 0.0
    %2828 = vmatprep.subr.mxu0 0.0
    %2829 = vmatpush2.msra.mxu0 0.0
    %2830 = vmatprep.subr.mxu0 0.0
    %2831 = vmatpush2.msra.mxu0 0.0
    %2832 = vmatprep.subr.mxu0 0.0
    %2833 = vmatpush2.msra.mxu0 0.0
    %2834 = vmatprep.mubr.f32.mxu0 0.0
    %2835 = vmatmul.mubr.f32.gmra.mxu0 %v2691
    %v2836 = vpop.f32.mrf.mxu0
    %v2837 = vadd.f32 0.0, %v2836
    %v2838 = vpop.f32.mrf.mxu0
    %2839 = vdwg.mxu0
    %2841 = vrot.lane.b32.xlu0 %v2837, 32
    %v2842 = vpop.permute.xlu0 %2841
    %v2844 = vadd.f32 %v183, %v2842
    %v2845 = vxor.u32 %v2844, 2147483648
    %v2846 = vmul.f32 %v2845, 1.442695
    %v2847 = vpow.pop %v2846
    %v2848 = vadd.f32 %v2847, 1.0
    %v2849 = vrcp.pop %v2848
    %v2850 = vmul.f32 1.0, %v2849
    %2851 = vmatprep.subr.mxu0 0.0
    %2852 = vmatpush1.msra.mxu0 0.0
    %2853 = vmatprep.subr.mxu0 0.0
    %2854 = vmatpush1.msra.mxu0 0.0
    %2855 = vmatprep.subr.mxu0 0.0
    %2856 = vmatpush1.msra.mxu0 0.0
    %2857 = vmatprep.subr.mxu0 0.0
    %2858 = vmatpush1.msra.mxu0 0.0
    %2859 = vmatprep.subr.mxu0 0.0
    %2860 = vmatpush1.msra.mxu0 0.0
    %2861 = vmatprep.subr.mxu0 0.0
    %2862 = vmatpush1.msra.mxu0 0.0
    %2863 = vmatprep.subr.mxu0 0.0
    %2864 = vmatpush1.msra.mxu0 0.0
    %2865 = vmatprep.subr.mxu0 0.0
    %2866 = vmatpush1.msra.mxu0 0.0
    %2867 = vmatprep.subr.mxu0 0.0
    %2868 = vmatpush1.msra.mxu0 0.0
    %2869 = vmatprep.subr.mxu0 0.0
    %2870 = vmatpush1.msra.mxu0 0.0
    %2871 = vmatprep.subr.mxu0 0.0
    %2872 = vmatpush1.msra.mxu0 0.0
    %2873 = vmatprep.subr.mxu0 0.0
    %2874 = vmatpush1.msra.mxu0 0.0
    %2875 = vmatprep.subr.mxu0 0.0
    %2876 = vmatpush1.msra.mxu0 %v202
    %2877 = vmatprep.subr.mxu0 0.0
    %2878 = vmatpush1.msra.mxu0 %v201
    %2879 = vmatprep.subr.mxu0 0.0
    %2880 = vmatpush1.msra.mxu0 %v200
    %2881 = vmatprep.subr.mxu0 0.0
    %2882 = vmatpush1.msra.mxu0 %v199
    %2883 = vmatprep.subr.mxu0 0.0
    %2884 = vmatpush2.msra.mxu0 0.0
    %2885 = vmatprep.subr.mxu0 0.0
    %2886 = vmatpush2.msra.mxu0 0.0
    %2887 = vmatprep.subr.mxu0 0.0
    %2888 = vmatpush2.msra.mxu0 0.0
    %2889 = vmatprep.subr.mxu0 0.0
    %2890 = vmatpush2.msra.mxu0 0.0
    %2891 = vmatprep.subr.mxu0 0.0
    %2892 = vmatpush2.msra.mxu0 0.0
    %2893 = vmatprep.subr.mxu0 0.0
    %2894 = vmatpush2.msra.mxu0 0.0
    %2895 = vmatprep.subr.mxu0 0.0
    %2896 = vmatpush2.msra.mxu0 0.0
    %2897 = vmatprep.subr.mxu0 0.0
    %2898 = vmatpush2.msra.mxu0 0.0
    %2899 = vmatprep.subr.mxu0 0.0
    %2900 = vmatpush2.msra.mxu0 0.0
    %2901 = vmatprep.subr.mxu0 0.0
    %2902 = vmatpush2.msra.mxu0 0.0
    %2903 = vmatprep.subr.mxu0 0.0
    %2904 = vmatpush2.msra.mxu0 0.0
    %2905 = vmatprep.subr.mxu0 0.0
    %2906 = vmatpush2.msra.mxu0 0.0
    %2907 = vmatprep.subr.mxu0 0.0
    %2908 = vmatpush2.msra.mxu0 0.0
    %2909 = vmatprep.subr.mxu0 0.0
    %2910 = vmatpush2.msra.mxu0 0.0
    %2911 = vmatprep.subr.mxu0 0.0
    %2912 = vmatpush2.msra.mxu0 0.0
    %2913 = vmatprep.subr.mxu0 0.0
    %2914 = vmatpush2.msra.mxu0 0.0
    %2915 = vmatprep.mubr.f32.mxu0 0.0
    %2916 = vmatmul.mubr.f32.gmra.mxu0 %v2691
    %v2917 = vpop.f32.mrf.mxu0
    %v2918 = vadd.f32 0.0, %v2917
    %v2919 = vpop.f32.mrf.mxu0
    %2920 = vdwg.mxu0
    %2922 = vrot.lane.b32.xlu0 %v2918, 64
    %v2923 = vpop.permute.xlu0 %2922
    %v2925 = vadd.f32 %v183, %v2923
    %v2926 = vtanh.pop %v2925
    %2927 = vmatprep.subr.mxu0 0.0
    %2928 = vmatpush1.msra.mxu0 0.0
    %2929 = vmatprep.subr.mxu0 0.0
    %2930 = vmatpush1.msra.mxu0 0.0
    %2931 = vmatprep.subr.mxu0 0.0
    %2932 = vmatpush1.msra.mxu0 0.0
    %2933 = vmatprep.subr.mxu0 0.0
    %2934 = vmatpush1.msra.mxu0 0.0
    %2935 = vmatprep.subr.mxu0 0.0
    %2936 = vmatpush1.msra.mxu0 0.0
    %2937 = vmatprep.subr.mxu0 0.0
    %2938 = vmatpush1.msra.mxu0 0.0
    %2939 = vmatprep.subr.mxu0 0.0
    %2940 = vmatpush1.msra.mxu0 0.0
    %2941 = vmatprep.subr.mxu0 0.0
    %2942 = vmatpush1.msra.mxu0 0.0
    %2943 = vmatprep.subr.mxu0 0.0
    %2944 = vmatpush1.msra.mxu0 0.0
    %2945 = vmatprep.subr.mxu0 0.0
    %2946 = vmatpush1.msra.mxu0 0.0
    %2947 = vmatprep.subr.mxu0 0.0
    %2948 = vmatpush1.msra.mxu0 0.0
    %2949 = vmatprep.subr.mxu0 0.0
    %2950 = vmatpush1.msra.mxu0 0.0
    %2951 = vmatprep.subr.mxu0 0.0
    %2952 = vmatpush1.msra.mxu0 %v206
    %2953 = vmatprep.subr.mxu0 0.0
    %2954 = vmatpush1.msra.mxu0 %v205
    %2955 = vmatprep.subr.mxu0 0.0
    %2956 = vmatpush1.msra.mxu0 %v204
    %2957 = vmatprep.subr.mxu0 0.0
    %2958 = vmatpush1.msra.mxu0 %v203
    %2959 = vmatprep.subr.mxu0 0.0
    %2960 = vmatpush2.msra.mxu0 0.0
    %2961 = vmatprep.subr.mxu0 0.0
    %2962 = vmatpush2.msra.mxu0 0.0
    %2963 = vmatprep.subr.mxu0 0.0
    %2964 = vmatpush2.msra.mxu0 0.0
    %2965 = vmatprep.subr.mxu0 0.0
    %2966 = vmatpush2.msra.mxu0 0.0
    %2967 = vmatprep.subr.mxu0 0.0
    %2968 = vmatpush2.msra.mxu0 0.0
    %2969 = vmatprep.subr.mxu0 0.0
    %2970 = vmatpush2.msra.mxu0 0.0
    %2971 = vmatprep.subr.mxu0 0.0
    %2972 = vmatpush2.msra.mxu0 0.0
    %2973 = vmatprep.subr.mxu0 0.0
    %2974 = vmatpush2.msra.mxu0 0.0
    %2975 = vmatprep.subr.mxu0 0.0
    %2976 = vmatpush2.msra.mxu0 0.0
    %2977 = vmatprep.subr.mxu0 0.0
    %2978 = vmatpush2.msra.mxu0 0.0
    %2979 = vmatprep.subr.mxu0 0.0
    %2980 = vmatpush2.msra.mxu0 0.0
    %2981 = vmatprep.subr.mxu0 0.0
    %2982 = vmatpush2.msra.mxu0 0.0
    %2983 = vmatprep.subr.mxu0 0.0
    %2984 = vmatpush2.msra.mxu0 0.0
    %2985 = vmatprep.subr.mxu0 0.0
    %2986 = vmatpush2.msra.mxu0 0.0
    %2987 = vmatprep.subr.mxu0 0.0
    %2988 = vmatpush2.msra.mxu0 0.0
    %2989 = vmatprep.subr.mxu0 0.0
    %2990 = vmatpush2.msra.mxu0 0.0
    %2991 = vmatprep.mubr.f32.mxu0 0.0
    %2992 = vmatmul.mubr.f32.gmra.mxu0 %v2691
    %v2993 = vpop.f32.mrf.mxu0
    %v2994 = vadd.f32 0.0, %v2993
    %v2995 = vpop.f32.mrf.mxu0
    %2996 = vdwg.mxu0
    %2998 = vrot.lane.b32.xlu0 %v2994, 96
    %v2999 = vpop.permute.xlu0 %2998
    %v3001 = vadd.f32 %v183, %v2999
    %v3002 = vxor.u32 %v3001, 2147483648
    %v3003 = vmul.f32 %v3002, 1.442695
    %v3004 = vpow.pop %v3003
    %v3005 = vadd.f32 %v3004, 1.0
    %v3006 = vrcp.pop %v3005
    %v3007 = vmul.f32 1.0, %v3006
    %v3008 = vmul.f32 %v2850, %v2607
    %3010 = vrot.lane.b32.xlu0 %v2926, 64
    %v3011 = vpop.permute.xlu0 %3010
    %v3013 = vmul.f32 %v2769, %v3011
    %3015 = vrot.lane.b32.xlu0 %v3013, 32
    %v3016 = vpop.permute.xlu0 %3015
    %v3018 = vadd.f32 %v3008, %v3016
    %v3019 = vtanh.pop %v3018
    %3021 = vrot.lane.b32.xlu0 %v3019, 64
    %v3022 = vpop.permute.xlu0 %3021
    %v3024 = vmul.f32 %v3007, %v3022
    %3026 = vrot.lane.b32.xlu0 %v3024, 32
    %v3027 = vpop.permute.xlu0 %3026
    %v3028 = vsel %vm223, %v3027, 0
    %3030 = vmatprep.subr.mxu0 0.0
    %3031 = vmatpush1.msra.mxu0 0.0
    %3032 = vmatprep.subr.mxu0 0.0
    %3033 = vmatpush1.msra.mxu0 0.0
    %3034 = vmatprep.subr.mxu0 0.0
    %3035 = vmatpush1.msra.mxu0 0.0
    %3036 = vmatprep.subr.mxu0 0.0
    %3037 = vmatpush1.msra.mxu0 0.0
    %3038 = vmatprep.subr.mxu0 0.0
    %3039 = vmatpush1.msra.mxu0 0.0
    %3040 = vmatprep.subr.mxu0 0.0
    %3041 = vmatpush1.msra.mxu0 0.0
    %3042 = vmatprep.subr.mxu0 0.0
    %3043 = vmatpush1.msra.mxu0 0.0
    %3044 = vmatprep.subr.mxu0 0.0
    %3045 = vmatpush1.msra.mxu0 0.0
    %3046 = vmatprep.subr.mxu0 0.0
    %3047 = vmatpush1.msra.mxu0 0.0
    %3048 = vmatprep.subr.mxu0 0.0
    %3049 = vmatpush1.msra.mxu0 0.0
    %3050 = vmatprep.subr.mxu0 0.0
    %3051 = vmatpush1.msra.mxu0 0.0
    %3052 = vmatprep.subr.mxu0 0.0
    %3053 = vmatpush1.msra.mxu0 0.0
    %3054 = vmatprep.subr.mxu0 0.0
    %3055 = vmatpush1.msra.mxu0 %v210
    %3056 = vmatprep.subr.mxu0 0.0
    %3057 = vmatpush1.msra.mxu0 %v209
    %3058 = vmatprep.subr.mxu0 0.0
    %3059 = vmatpush1.msra.mxu0 %v208
    %3060 = vmatprep.subr.mxu0 0.0
    %3061 = vmatpush1.msra.mxu0 %v207
    %3062 = vmatprep.subr.mxu0 0.0
    %3063 = vmatpush2.msra.mxu0 0.0
    %3064 = vmatprep.subr.mxu0 0.0
    %3065 = vmatpush2.msra.mxu0 0.0
    %3066 = vmatprep.subr.mxu0 0.0
    %3067 = vmatpush2.msra.mxu0 0.0
    %3068 = vmatprep.subr.mxu0 0.0
    %3069 = vmatpush2.msra.mxu0 0.0
    %3070 = vmatprep.subr.mxu0 0.0
    %3071 = vmatpush2.msra.mxu0 0.0
    %3072 = vmatprep.subr.mxu0 0.0
    %3073 = vmatpush2.msra.mxu0 0.0
    %3074 = vmatprep.subr.mxu0 0.0
    %3075 = vmatpush2.msra.mxu0 0.0
    %3076 = vmatprep.subr.mxu0 0.0
    %3077 = vmatpush2.msra.mxu0 0.0
    %3078 = vmatprep.subr.mxu0 0.0
    %3079 = vmatpush2.msra.mxu0 0.0
    %3080 = vmatprep.subr.mxu0 0.0
    %3081 = vmatpush2.msra.mxu0 0.0
    %3082 = vmatprep.subr.mxu0 0.0
    %3083 = vmatpush2.msra.mxu0 0.0
    %3084 = vmatprep.subr.mxu0 0.0
    %3085 = vmatpush2.msra.mxu0 0.0
    %3086 = vmatprep.subr.mxu0 0.0
    %3087 = vmatpush2.msra.mxu0 0.0
    %3088 = vmatprep.subr.mxu0 0.0
    %3089 = vmatpush2.msra.mxu0 0.0
    %3090 = vmatprep.subr.mxu0 0.0
    %3091 = vmatpush2.msra.mxu0 0.0
    %3092 = vmatprep.subr.mxu0 0.0
    %3093 = vmatpush2.msra.mxu0 0.0
    %3094 = vmatprep.mubr.f32.mxu0 0.0
    %3095 = vmatmul.mubr.f32.gmra.mxu0 %v3028
    %v3096 = vpop.f32.mrf.mxu0
    %v3097 = vadd.f32 %v216, %v3096
    %v3098 = vpop.f32.mrf.mxu0
    %3099 = vdwg.mxu0
    %v3100 = vtanh.pop %v3097
    %v3102 = vsel %vm223, %v3100, 0
    %3104 = vmatprep.subr.mxu0 0.0
    %3105 = vmatpush1.msra.mxu0 0.0
    %3106 = vmatprep.subr.mxu0 0.0
    %3107 = vmatpush1.msra.mxu0 0.0
    %3108 = vmatprep.subr.mxu0 0.0
    %3109 = vmatpush1.msra.mxu0 0.0
    %3110 = vmatprep.subr.mxu0 0.0
    %3111 = vmatpush1.msra.mxu0 0.0
    %3112 = vmatprep.subr.mxu0 0.0
    %3113 = vmatpush1.msra.mxu0 0.0
    %3114 = vmatprep.subr.mxu0 0.0
    %3115 = vmatpush1.msra.mxu0 0.0
    %3116 = vmatprep.subr.mxu0 0.0
    %3117 = vmatpush1.msra.mxu0 0.0
    %3118 = vmatprep.subr.mxu0 0.0
    %3119 = vmatpush1.msra.mxu0 0.0
    %3120 = vmatprep.subr.mxu0 0.0
    %3121 = vmatpush1.msra.mxu0 0.0
    %3122 = vmatprep.subr.mxu0 0.0
    %3123 = vmatpush1.msra.mxu0 0.0
    %3124 = vmatprep.subr.mxu0 0.0
    %3125 = vmatpush1.msra.mxu0 0.0
    %3126 = vmatprep.subr.mxu0 0.0
    %3127 = vmatpush1.msra.mxu0 0.0
    %3128 = vmatprep.subr.mxu0 0.0
    %3129 = vmatpush1.msra.mxu0 %v194
    %3130 = vmatprep.subr.mxu0 0.0
    %3131 = vmatpush1.msra.mxu0 %v193
    %3132 = vmatprep.subr.mxu0 0.0
    %3133 = vmatpush1.msra.mxu0 %v192
    %3134 = vmatprep.subr.mxu0 0.0
    %3135 = vmatpush1.msra.mxu0 %v191
    %3136 = vmatprep.subr.mxu0 0.0
    %3137 = vmatpush2.msra.mxu0 0.0
    %3138 = vmatprep.subr.mxu0 0.0
    %3139 = vmatpush2.msra.mxu0 0.0
    %3140 = vmatprep.subr.mxu0 0.0
    %3141 = vmatpush2.msra.mxu0 0.0
    %3142 = vmatprep.subr.mxu0 0.0
    %3143 = vmatpush2.msra.mxu0 0.0
    %3144 = vmatprep.subr.mxu0 0.0
    %3145 = vmatpush2.msra.mxu0 0.0
    %3146 = vmatprep.subr.mxu0 0.0
    %3147 = vmatpush2.msra.mxu0 0.0
    %3148 = vmatprep.subr.mxu0 0.0
    %3149 = vmatpush2.msra.mxu0 0.0
    %3150 = vmatprep.subr.mxu0 0.0
    %3151 = vmatpush2.msra.mxu0 0.0
    %3152 = vmatprep.subr.mxu0 0.0
    %3153 = vmatpush2.msra.mxu0 0.0
    %3154 = vmatprep.subr.mxu0 0.0
    %3155 = vmatpush2.msra.mxu0 0.0
    %3156 = vmatprep.subr.mxu0 0.0
    %3157 = vmatpush2.msra.mxu0 0.0
    %3158 = vmatprep.subr.mxu0 0.0
    %3159 = vmatpush2.msra.mxu0 0.0
    %3160 = vmatprep.subr.mxu0 0.0
    %3161 = vmatpush2.msra.mxu0 0.0
    %3162 = vmatprep.subr.mxu0 0.0
    %3163 = vmatpush2.msra.mxu0 0.0
    %3164 = vmatprep.subr.mxu0 0.0
    %3165 = vmatpush2.msra.mxu0 0.0
    %3166 = vmatprep.subr.mxu0 0.0
    %3167 = vmatpush2.msra.mxu0 0.0
    %3168 = vmatprep.mubr.f32.mxu0 0.0
    %3169 = vmatmul.mubr.f32.gmra.mxu0 %v3102
    %v3170 = vpop.f32.mrf.mxu0
    %v3171 = vadd.f32 0.0, %v3170
    %v3172 = vpop.f32.mrf.mxu0
    %3173 = vdwg.mxu0
    %v3174 = vadd.f32 %v188, %v3171
    %v3175 = vxor.u32 %v3174, 2147483648
    %v3176 = vmul.f32 %v3175, 1.442695
    %v3177 = vpow.pop %v3176
    %v3178 = vadd.f32 %v3177, 1.0
    %v3179 = vrcp.pop %v3178
    %v3180 = vmul.f32 1.0, %v3179
    %3181 = vmatprep.subr.mxu0 0.0
    %3182 = vmatpush1.msra.mxu0 0.0
    %3183 = vmatprep.subr.mxu0 0.0
    %3184 = vmatpush1.msra.mxu0 0.0
    %3185 = vmatprep.subr.mxu0 0.0
    %3186 = vmatpush1.msra.mxu0 0.0
    %3187 = vmatprep.subr.mxu0 0.0
    %3188 = vmatpush1.msra.mxu0 0.0
    %3189 = vmatprep.subr.mxu0 0.0
    %3190 = vmatpush1.msra.mxu0 0.0
    %3191 = vmatprep.subr.mxu0 0.0
    %3192 = vmatpush1.msra.mxu0 0.0
    %3193 = vmatprep.subr.mxu0 0.0
    %3194 = vmatpush1.msra.mxu0 0.0
    %3195 = vmatprep.subr.mxu0 0.0
    %3196 = vmatpush1.msra.mxu0 0.0
    %3197 = vmatprep.subr.mxu0 0.0
    %3198 = vmatpush1.msra.mxu0 0.0
    %3199 = vmatprep.subr.mxu0 0.0
    %3200 = vmatpush1.msra.mxu0 0.0
    %3201 = vmatprep.subr.mxu0 0.0
    %3202 = vmatpush1.msra.mxu0 0.0
    %3203 = vmatprep.subr.mxu0 0.0
    %3204 = vmatpush1.msra.mxu0 0.0
    %3205 = vmatprep.subr.mxu0 0.0
    %3206 = vmatpush1.msra.mxu0 %v198
    %3207 = vmatprep.subr.mxu0 0.0
    %3208 = vmatpush1.msra.mxu0 %v197
    %3209 = vmatprep.subr.mxu0 0.0
    %3210 = vmatpush1.msra.mxu0 %v196
    %3211 = vmatprep.subr.mxu0 0.0
    %3212 = vmatpush1.msra.mxu0 %v195
    %3213 = vmatprep.subr.mxu0 0.0
    %3214 = vmatpush2.msra.mxu0 0.0
    %3215 = vmatprep.subr.mxu0 0.0
    %3216 = vmatpush2.msra.mxu0 0.0
    %3217 = vmatprep.subr.mxu0 0.0
    %3218 = vmatpush2.msra.mxu0 0.0
    %3219 = vmatprep.subr.mxu0 0.0
    %3220 = vmatpush2.msra.mxu0 0.0
    %3221 = vmatprep.subr.mxu0 0.0
    %3222 = vmatpush2.msra.mxu0 0.0
    %3223 = vmatprep.subr.mxu0 0.0
    %3224 = vmatpush2.msra.mxu0 0.0
    %3225 = vmatprep.subr.mxu0 0.0
    %3226 = vmatpush2.msra.mxu0 0.0
    %3227 = vmatprep.subr.mxu0 0.0
    %3228 = vmatpush2.msra.mxu0 0.0
    %3229 = vmatprep.subr.mxu0 0.0
    %3230 = vmatpush2.msra.mxu0 0.0
    %3231 = vmatprep.subr.mxu0 0.0
    %3232 = vmatpush2.msra.mxu0 0.0
    %3233 = vmatprep.subr.mxu0 0.0
    %3234 = vmatpush2.msra.mxu0 0.0
    %3235 = vmatprep.subr.mxu0 0.0
    %3236 = vmatpush2.msra.mxu0 0.0
    %3237 = vmatprep.subr.mxu0 0.0
    %3238 = vmatpush2.msra.mxu0 0.0
    %3239 = vmatprep.subr.mxu0 0.0
    %3240 = vmatpush2.msra.mxu0 0.0
    %3241 = vmatprep.subr.mxu0 0.0
    %3242 = vmatpush2.msra.mxu0 0.0
    %3243 = vmatprep.subr.mxu0 0.0
    %3244 = vmatpush2.msra.mxu0 0.0
    %3245 = vmatprep.mubr.f32.mxu0 0.0
    %3246 = vmatmul.mubr.f32.gmra.mxu0 %v3102
    %v3247 = vpop.f32.mrf.mxu0
    %v3248 = vadd.f32 0.0, %v3247
    %v3249 = vpop.f32.mrf.mxu0
    %3250 = vdwg.mxu0
    %3252 = vrot.lane.b32.xlu0 %v3248, 32
    %v3253 = vpop.permute.xlu0 %3252
    %v3255 = vadd.f32 %v188, %v3253
    %v3256 = vxor.u32 %v3255, 2147483648
    %v3257 = vmul.f32 %v3256, 1.442695
    %v3258 = vpow.pop %v3257
    %v3259 = vadd.f32 %v3258, 1.0
    %v3260 = vrcp.pop %v3259
    %v3261 = vmul.f32 1.0, %v3260
    %3262 = vmatprep.subr.mxu0 0.0
    %3263 = vmatpush1.msra.mxu0 0.0
    %3264 = vmatprep.subr.mxu0 0.0
    %3265 = vmatpush1.msra.mxu0 0.0
    %3266 = vmatprep.subr.mxu0 0.0
    %3267 = vmatpush1.msra.mxu0 0.0
    %3268 = vmatprep.subr.mxu0 0.0
    %3269 = vmatpush1.msra.mxu0 0.0
    %3270 = vmatprep.subr.mxu0 0.0
    %3271 = vmatpush1.msra.mxu0 0.0
    %3272 = vmatprep.subr.mxu0 0.0
    %3273 = vmatpush1.msra.mxu0 0.0
    %3274 = vmatprep.subr.mxu0 0.0
    %3275 = vmatpush1.msra.mxu0 0.0
    %3276 = vmatprep.subr.mxu0 0.0
    %3277 = vmatpush1.msra.mxu0 0.0
    %3278 = vmatprep.subr.mxu0 0.0
    %3279 = vmatpush1.msra.mxu0 0.0
    %3280 = vmatprep.subr.mxu0 0.0
    %3281 = vmatpush1.msra.mxu0 0.0
    %3282 = vmatprep.subr.mxu0 0.0
    %3283 = vmatpush1.msra.mxu0 0.0
    %3284 = vmatprep.subr.mxu0 0.0
    %3285 = vmatpush1.msra.mxu0 0.0
    %3286 = vmatprep.subr.mxu0 0.0
    %3287 = vmatpush1.msra.mxu0 %v202
    %3288 = vmatprep.subr.mxu0 0.0
    %3289 = vmatpush1.msra.mxu0 %v201
    %3290 = vmatprep.subr.mxu0 0.0
    %3291 = vmatpush1.msra.mxu0 %v200
    %3292 = vmatprep.subr.mxu0 0.0
    %3293 = vmatpush1.msra.mxu0 %v199
    %3294 = vmatprep.subr.mxu0 0.0
    %3295 = vmatpush2.msra.mxu0 0.0
    %3296 = vmatprep.subr.mxu0 0.0
    %3297 = vmatpush2.msra.mxu0 0.0
    %3298 = vmatprep.subr.mxu0 0.0
    %3299 = vmatpush2.msra.mxu0 0.0
    %3300 = vmatprep.subr.mxu0 0.0
    %3301 = vmatpush2.msra.mxu0 0.0
    %3302 = vmatprep.subr.mxu0 0.0
    %3303 = vmatpush2.msra.mxu0 0.0
    %3304 = vmatprep.subr.mxu0 0.0
    %3305 = vmatpush2.msra.mxu0 0.0
    %3306 = vmatprep.subr.mxu0 0.0
    %3307 = vmatpush2.msra.mxu0 0.0
    %3308 = vmatprep.subr.mxu0 0.0
    %3309 = vmatpush2.msra.mxu0 0.0
    %3310 = vmatprep.subr.mxu0 0.0
    %3311 = vmatpush2.msra.mxu0 0.0
    %3312 = vmatprep.subr.mxu0 0.0
    %3313 = vmatpush2.msra.mxu0 0.0
    %3314 = vmatprep.subr.mxu0 0.0
    %3315 = vmatpush2.msra.mxu0 0.0
    %3316 = vmatprep.subr.mxu0 0.0
    %3317 = vmatpush2.msra.mxu0 0.0
    %3318 = vmatprep.subr.mxu0 0.0
    %3319 = vmatpush2.msra.mxu0 0.0
    %3320 = vmatprep.subr.mxu0 0.0
    %3321 = vmatpush2.msra.mxu0 0.0
    %3322 = vmatprep.subr.mxu0 0.0
    %3323 = vmatpush2.msra.mxu0 0.0
    %3324 = vmatprep.subr.mxu0 0.0
    %3325 = vmatpush2.msra.mxu0 0.0
    %3326 = vmatprep.mubr.f32.mxu0 0.0
    %3327 = vmatmul.mubr.f32.gmra.mxu0 %v3102
    %v3328 = vpop.f32.mrf.mxu0
    %v3329 = vadd.f32 0.0, %v3328
    %v3330 = vpop.f32.mrf.mxu0
    %3331 = vdwg.mxu0
    %3333 = vrot.lane.b32.xlu0 %v3329, 64
    %v3334 = vpop.permute.xlu0 %3333
    %v3336 = vadd.f32 %v188, %v3334
    %v3337 = vtanh.pop %v3336
    %3338 = vmatprep.subr.mxu0 0.0
    %3339 = vmatpush1.msra.mxu0 0.0
    %3340 = vmatprep.subr.mxu0 0.0
    %3341 = vmatpush1.msra.mxu0 0.0
    %3342 = vmatprep.subr.mxu0 0.0
    %3343 = vmatpush1.msra.mxu0 0.0
    %3344 = vmatprep.subr.mxu0 0.0
    %3345 = vmatpush1.msra.mxu0 0.0
    %3346 = vmatprep.subr.mxu0 0.0
    %3347 = vmatpush1.msra.mxu0 0.0
    %3348 = vmatprep.subr.mxu0 0.0
    %3349 = vmatpush1.msra.mxu0 0.0
    %3350 = vmatprep.subr.mxu0 0.0
    %3351 = vmatpush1.msra.mxu0 0.0
    %3352 = vmatprep.subr.mxu0 0.0
    %3353 = vmatpush1.msra.mxu0 0.0
    %3354 = vmatprep.subr.mxu0 0.0
    %3355 = vmatpush1.msra.mxu0 0.0
    %3356 = vmatprep.subr.mxu0 0.0
    %3357 = vmatpush1.msra.mxu0 0.0
    %3358 = vmatprep.subr.mxu0 0.0
    %3359 = vmatpush1.msra.mxu0 0.0
    %3360 = vmatprep.subr.mxu0 0.0
    %3361 = vmatpush1.msra.mxu0 0.0
    %3362 = vmatprep.subr.mxu0 0.0
    %3363 = vmatpush1.msra.mxu0 %v206
    %3364 = vmatprep.subr.mxu0 0.0
    %3365 = vmatpush1.msra.mxu0 %v205
    %3366 = vmatprep.subr.mxu0 0.0
    %3367 = vmatpush1.msra.mxu0 %v204
    %3368 = vmatprep.subr.mxu0 0.0
    %3369 = vmatpush1.msra.mxu0 %v203
    %3370 = vmatprep.subr.mxu0 0.0
    %3371 = vmatpush2.msra.mxu0 0.0
    %3372 = vmatprep.subr.mxu0 0.0
    %3373 = vmatpush2.msra.mxu0 0.0
    %3374 = vmatprep.subr.mxu0 0.0
    %3375 = vmatpush2.msra.mxu0 0.0
    %3376 = vmatprep.subr.mxu0 0.0
    %3377 = vmatpush2.msra.mxu0 0.0
    %3378 = vmatprep.subr.mxu0 0.0
    %3379 = vmatpush2.msra.mxu0 0.0
    %3380 = vmatprep.subr.mxu0 0.0
    %3381 = vmatpush2.msra.mxu0 0.0
    %3382 = vmatprep.subr.mxu0 0.0
    %3383 = vmatpush2.msra.mxu0 0.0
    %3384 = vmatprep.subr.mxu0 0.0
    %3385 = vmatpush2.msra.mxu0 0.0
    %3386 = vmatprep.subr.mxu0 0.0
    %3387 = vmatpush2.msra.mxu0 0.0
    %3388 = vmatprep.subr.mxu0 0.0
    %3389 = vmatpush2.msra.mxu0 0.0
    %3390 = vmatprep.subr.mxu0 0.0
    %3391 = vmatpush2.msra.mxu0 0.0
    %3392 = vmatprep.subr.mxu0 0.0
    %3393 = vmatpush2.msra.mxu0 0.0
    %3394 = vmatprep.subr.mxu0 0.0
    %3395 = vmatpush2.msra.mxu0 0.0
    %3396 = vmatprep.subr.mxu0 0.0
    %3397 = vmatpush2.msra.mxu0 0.0
    %3398 = vmatprep.subr.mxu0 0.0
    %3399 = vmatpush2.msra.mxu0 0.0
    %3400 = vmatprep.subr.mxu0 0.0
    %3401 = vmatpush2.msra.mxu0 0.0
    %3402 = vmatprep.mubr.f32.mxu0 0.0
    %3403 = vmatmul.mubr.f32.gmra.mxu0 %v3102
    %v3404 = vpop.f32.mrf.mxu0
    %v3405 = vadd.f32 0.0, %v3404
    %v3406 = vpop.f32.mrf.mxu0
    %3407 = vdwg.mxu0
    %3409 = vrot.lane.b32.xlu0 %v3405, 96
    %v3410 = vpop.permute.xlu0 %3409
    %v3412 = vadd.f32 %v188, %v3410
    %v3413 = vxor.u32 %v3412, 2147483648
    %v3414 = vmul.f32 %v3413, 1.442695
    %v3415 = vpow.pop %v3414
    %v3416 = vadd.f32 %v3415, 1.0
    %v3417 = vrcp.pop %v3416
    %v3418 = vmul.f32 1.0, %v3417
    %v3419 = vmul.f32 %v3261, %v3018
    %3421 = vrot.lane.b32.xlu0 %v3337, 64
    %v3422 = vpop.permute.xlu0 %3421
    %v3424 = vmul.f32 %v3180, %v3422
    %3426 = vrot.lane.b32.xlu0 %v3424, 32
    %v3427 = vpop.permute.xlu0 %3426
    %v3429 = vadd.f32 %v3419, %v3427
    %v3430 = vtanh.pop %v3429
    %3432 = vrot.lane.b32.xlu0 %v3430, 64
    %v3433 = vpop.permute.xlu0 %3432
    %v3435 = vmul.f32 %v3418, %v3433
    %3437 = vrot.lane.b32.xlu0 %v3435, 32
    %v3438 = vpop.permute.xlu0 %3437
    %v3439 = vsel %vm223, %v3438, 0
    %3441 = vmatprep.subr.mxu0 0.0
    %3442 = vmatpush1.msra.mxu0 0.0
    %3443 = vmatprep.subr.mxu0 0.0
    %3444 = vmatpush1.msra.mxu0 0.0
    %3445 = vmatprep.subr.mxu0 0.0
    %3446 = vmatpush1.msra.mxu0 0.0
    %3447 = vmatprep.subr.mxu0 0.0
    %3448 = vmatpush1.msra.mxu0 0.0
    %3449 = vmatprep.subr.mxu0 0.0
    %3450 = vmatpush1.msra.mxu0 0.0
    %3451 = vmatprep.subr.mxu0 0.0
    %3452 = vmatpush1.msra.mxu0 0.0
    %3453 = vmatprep.subr.mxu0 0.0
    %3454 = vmatpush1.msra.mxu0 0.0
    %3455 = vmatprep.subr.mxu0 0.0
    %3456 = vmatpush1.msra.mxu0 0.0
    %3457 = vmatprep.subr.mxu0 0.0
    %3458 = vmatpush1.msra.mxu0 0.0
    %3459 = vmatprep.subr.mxu0 0.0
    %3460 = vmatpush1.msra.mxu0 0.0
    %3461 = vmatprep.subr.mxu0 0.0
    %3462 = vmatpush1.msra.mxu0 0.0
    %3463 = vmatprep.subr.mxu0 0.0
    %3464 = vmatpush1.msra.mxu0 0.0
    %3465 = vmatprep.subr.mxu0 0.0
    %3466 = vmatpush1.msra.mxu0 %v210
    %3467 = vmatprep.subr.mxu0 0.0
    %3468 = vmatpush1.msra.mxu0 %v209
    %3469 = vmatprep.subr.mxu0 0.0
    %3470 = vmatpush1.msra.mxu0 %v208
    %3471 = vmatprep.subr.mxu0 0.0
    %3472 = vmatpush1.msra.mxu0 %v207
    %3473 = vmatprep.subr.mxu0 0.0
    %3474 = vmatpush2.msra.mxu0 0.0
    %3475 = vmatprep.subr.mxu0 0.0
    %3476 = vmatpush2.msra.mxu0 0.0
    %3477 = vmatprep.subr.mxu0 0.0
    %3478 = vmatpush2.msra.mxu0 0.0
    %3479 = vmatprep.subr.mxu0 0.0
    %3480 = vmatpush2.msra.mxu0 0.0
    %3481 = vmatprep.subr.mxu0 0.0
    %3482 = vmatpush2.msra.mxu0 0.0
    %3483 = vmatprep.subr.mxu0 0.0
    %3484 = vmatpush2.msra.mxu0 0.0
    %3485 = vmatprep.subr.mxu0 0.0
    %3486 = vmatpush2.msra.mxu0 0.0
    %3487 = vmatprep.subr.mxu0 0.0
    %3488 = vmatpush2.msra.mxu0 0.0
    %3489 = vmatprep.subr.mxu0 0.0
    %3490 = vmatpush2.msra.mxu0 0.0
    %3491 = vmatprep.subr.mxu0 0.0
    %3492 = vmatpush2.msra.mxu0 0.0
    %3493 = vmatprep.subr.mxu0 0.0
    %3494 = vmatpush2.msra.mxu0 0.0
    %3495 = vmatprep.subr.mxu0 0.0
    %3496 = vmatpush2.msra.mxu0 0.0
    %3497 = vmatprep.subr.mxu0 0.0
    %3498 = vmatpush2.msra.mxu0 0.0
    %3499 = vmatprep.subr.mxu0 0.0
    %3500 = vmatpush2.msra.mxu0 0.0
    %3501 = vmatprep.subr.mxu0 0.0
    %3502 = vmatpush2.msra.mxu0 0.0
    %3503 = vmatprep.subr.mxu0 0.0
    %3504 = vmatpush2.msra.mxu0 0.0
    %3505 = vmatprep.mubr.f32.mxu0 0.0
    %3506 = vmatmul.mubr.f32.gmra.mxu0 %v3439
    %v3507 = vpop.f32.mrf.mxu0
    %v3508 = vadd.f32 %v216, %v3507
    %v3509 = vpop.f32.mrf.mxu0
    %3510 = vdwg.mxu0
    %v3511 = vtanh.pop %v3508
    %v3513 = vlaneseq
    %v3514 = vshrl.u32 %v3513, 7
    %v3515 = vsub.s32 0, %v3514
    %v3516 = vrot.slane %v222, %v3515
    %v3519 = vsel %vm223, %v3511, 0
    %3521 = vmatprep.subr.mxu0 0.0
    %3522 = vmatpush1.msra.mxu0 0.0
    %3523 = vmatprep.subr.mxu0 0.0
    %3524 = vmatpush1.msra.mxu0 0.0
    %3525 = vmatprep.subr.mxu0 0.0
    %3526 = vmatpush1.msra.mxu0 0.0
    %3527 = vmatprep.subr.mxu0 0.0
    %3528 = vmatpush1.msra.mxu0 0.0
    %3529 = vmatprep.subr.mxu0 0.0
    %3530 = vmatpush1.msra.mxu0 0.0
    %3531 = vmatprep.subr.mxu0 0.0
    %3532 = vmatpush1.msra.mxu0 0.0
    %3533 = vmatprep.subr.mxu0 0.0
    %3534 = vmatpush1.msra.mxu0 0.0
    %3535 = vmatprep.subr.mxu0 0.0
    %3536 = vmatpush1.msra.mxu0 0.0
    %3537 = vmatprep.subr.mxu0 0.0
    %3538 = vmatpush1.msra.mxu0 0.0
    %3539 = vmatprep.subr.mxu0 0.0
    %3540 = vmatpush1.msra.mxu0 0.0
    %3541 = vmatprep.subr.mxu0 0.0
    %3542 = vmatpush1.msra.mxu0 0.0
    %3543 = vmatprep.subr.mxu0 0.0
    %3544 = vmatpush1.msra.mxu0 0.0
    %3545 = vmatprep.subr.mxu0 0.0
    %3546 = vmatpush1.msra.mxu0 %v221
    %3547 = vmatprep.subr.mxu0 0.0
    %3548 = vmatpush1.msra.mxu0 %v220
    %3549 = vmatprep.subr.mxu0 0.0
    %3550 = vmatpush1.msra.mxu0 %v219
    %3551 = vmatprep.subr.mxu0 0.0
    %3552 = vmatpush1.msra.mxu0 %v218
    %3553 = vmatprep.subr.mxu0 0.0
    %3554 = vmatpush2.msra.mxu0 0.0
    %3555 = vmatprep.subr.mxu0 0.0
    %3556 = vmatpush2.msra.mxu0 0.0
    %3557 = vmatprep.subr.mxu0 0.0
    %3558 = vmatpush2.msra.mxu0 0.0
    %3559 = vmatprep.subr.mxu0 0.0
    %3560 = vmatpush2.msra.mxu0 0.0
    %3561 = vmatprep.subr.mxu0 0.0
    %3562 = vmatpush2.msra.mxu0 0.0
    %3563 = vmatprep.subr.mxu0 0.0
    %3564 = vmatpush2.msra.mxu0 0.0
    %3565 = vmatprep.subr.mxu0 0.0
    %3566 = vmatpush2.msra.mxu0 0.0
    %3567 = vmatprep.subr.mxu0 0.0
    %3568 = vmatpush2.msra.mxu0 0.0
    %3569 = vmatprep.subr.mxu0 0.0
    %3570 = vmatpush2.msra.mxu0 0.0
    %3571 = vmatprep.subr.mxu0 0.0
    %3572 = vmatpush2.msra.mxu0 0.0
    %3573 = vmatprep.subr.mxu0 0.0
    %3574 = vmatpush2.msra.mxu0 0.0
    %3575 = vmatprep.subr.mxu0 0.0
    %3576 = vmatpush2.msra.mxu0 0.0
    %3577 = vmatprep.subr.mxu0 0.0
    %3578 = vmatpush2.msra.mxu0 0.0
    %3579 = vmatprep.subr.mxu0 0.0
    %3580 = vmatpush2.msra.mxu0 0.0
    %3581 = vmatprep.subr.mxu0 0.0
    %3582 = vmatpush2.msra.mxu0 0.0
    %3583 = vmatprep.subr.mxu0 0.0
    %3584 = vmatpush2.msra.mxu0 0.0
    %3585 = vmatprep.mubr.f32.mxu0 0.0
    %3586 = vmatmul.mubr.f32.gmra.mxu0 %v3519
    %v3587 = vpop.f32.mrf.mxu0
    %v3588 = vadd.f32 %v3516, %v3587
    %v3589 = vpop.f32.mrf.mxu0
    %3590 = vdwg.mxu0
    %vm3591 = vcmask 64512
    %3592 = vst.msk [vmem:[#allocation5] sm:$0xff] %vm3591, %v3588
    // Predicated region
    $region38: #{tpu_custom_call.1} parent=1 // pred_check
      _
    $region39: #{tpu_custom_call.1} parent=1 // pred_check_branch
      %3594 = sbr.rel (0) target = $region41
    $region40: #{tpu_custom_call.1} parent=1 // pred_region
      %s3596 = ssub.s32 128, 128
      %3597 = vsyncadd [#allocation4], %s3596
      %s3599 = sshll.u32 [#allocation5], 4
      %s3600 = int_to_ptr.vmem [resolvable:$true] %s3599
      %3602 = dma.vmem_to_hbm [thread:$0]  %s3600, 128, %s8, [#allocation4]
    $region41: #{tpu_custom_call.1} parent=1 // pred_fallthru
      _
    // Predicated region
    $region42: #{tpu_custom_call.1} parent=1 // pred_check
      _
    $region43: #{tpu_custom_call.1} parent=1 // pred_check_branch
      %3604 = sbr.rel (0) target = $region45
    $region44: #{tpu_custom_call.1} parent=1 // pred_region
      %3605 = dma.done [#allocation4], 128
    $region45: #{tpu_custom_call.1} parent=1 // pred_fallthru
      _
    %3606 = vsyncpa [#allocation3], 1
    %3607 = vsyncpa [#allocation4], 1

</llo_original>
